<compile_context>
chip_gen: v6e
topology: v6e:2x2x1
jax: 0.10.0
libtpu: 0.0.40
codegen_flags: <defaults>
</compile_context>

<pallas_src>
import functools

import jax
import jax.numpy as jnp
from jax.experimental import pallas as pl
from jax.experimental.pallas import tpu as pltpu

_EPS = 1e-5
_TAPS = tuple((dy, dx) for dy in range(3) for dx in range(3))


def _round_up(v, m):
    return (v + m - 1) // m * m


def _choose_row_tile(H, W, Cl, Chp, Cnp, seg_bytes, budget):
    """Largest divisor of H whose per-step VMEM footprint fits the budget."""
    best = 1
    for th in range(1, H + 1):
        if H % th:
            continue
        need = (2 * seg_bytes                               # resident seg (x2 buffers)
                + 2 * 2 * th * W * Cnp * 4                  # x + out blocks, dbl buffered
                + (th + 2) * (W + 2) * Chp * 2              # actv scratch (bf16)
                + 3 * (th + 2) * W * max(Chp, 2 * Cnp) * 4  # f32 accumulators / temps
                + (2 << 20))                                 # weights + headroom
        if need <= budget:
            best = th
    return best


def _spade_kernel(seg_ref, x_ref, mean_ref, rstd_ref, ws_ref, bs_ref,
                  wgb_ref, bgb_ref, o_ref, actv_ref, *,
                  H, W, TH, Cl, Chp, Cnp):
    """One (batch, row-tile) step: conv1+ReLU, conv(gamma|beta), modulation."""
    t = pl.program_id(1)
    row0 = pl.multiple_of(t * TH, TH)

    # ---- mlp_shared: 3x3 conv + bias + ReLU, shift-and-accumulate ---------
    # seg_ref holds the whole (H+4, W+2, Cl) halo-padded segmap (bf16);
    # slice the TH+4 rows this tile needs (dynamic start, static size).
    seg_local = seg_ref[pl.ds(row0, TH + 4), :, :]           # (TH+4, W+2, Cl)
    acc = None
    for k, (dy, dx) in enumerate(_TAPS):
        tap = seg_local[dy:dy + TH + 2, dx:dx + W, :].reshape((TH + 2) * W, Cl)
        d = jnp.dot(tap, ws_ref[k], preferred_element_type=jnp.float32)
        acc = d if acc is None else acc + d                  # ((TH+2)*W, Chp) f32
    # bias + ReLU + cast to bf16 in one step; only the bf16 copy stays live.
    actv = jnp.maximum(acc + bs_ref[...], 0.0).astype(jnp.bfloat16)
    actv = actv.reshape(TH + 2, W, Chp)

    # Halo rows outside the image act as the gamma/beta conv's zero padding.
    g = t * TH - 1 + jax.lax.broadcasted_iota(jnp.int32, (TH + 2, W, Chp), 0)
    actv = jnp.where((g >= 0) & (g < H), actv, jnp.zeros_like(actv))

    # Column-padded scratch; border columns re-zeroed every step so the
    # kernel stays correct when the grid is split across TensorCores.
    actv_ref[:, 0:1, :] = jnp.zeros((TH + 2, 1, Chp), jnp.bfloat16)
    actv_ref[:, W + 1:W + 2, :] = jnp.zeros((TH + 2, 1, Chp), jnp.bfloat16)
    actv_ref[:, 1:W + 1, :] = actv

    # ---- mlp_gamma | mlp_beta as one fused conv (shift-and-accumulate) ----
    acc2 = None
    for k, (dy, dx) in enumerate(_TAPS):
        tap = actv_ref[dy:dy + TH, dx:dx + W, :].reshape(TH * W, Chp)
        d = jnp.dot(tap, wgb_ref[k], preferred_element_type=jnp.float32)
        acc2 = d if acc2 is None else acc2 + d               # (TH*W, 2*Cnp) f32
    gb = acc2 + bgb_ref[...]
    gamma = gb[:, :Cnp]                                      # lane-aligned split
    beta = gb[:, Cnp:]

    # ---- instance norm (precomputed stats) + modulation -------------------
    xv = x_ref[...].reshape(TH * W, Cnp).astype(jnp.float32)
    xn = (xv - mean_ref[...]) * rstd_ref[...]
    out = xn * gamma + beta
    o_ref[...] = out.reshape(TH, W, Cnp).astype(o_ref.dtype)  # lane-dense store


def spade_pallas(x, segmap, params, *, row_tile=None):
    """x: (N, Cn, H, W), segmap: (N, Cl, H, W) -> (N, Cn, H, W)."""
    N, Cn, H, W = x.shape
    Cl = segmap.shape[1]
    Ch = params["w_shared"].shape[-1]
    Cnp = _round_up(Cn, 128)
    Chp = _round_up(Ch, 128)

    # Instance-norm statistics over the FULL H*W per (n, c), computed with a
    # trivial XLA reduce so spatial tiling cannot change the semantics.
    xf = x.astype(jnp.float32)
    mean = jnp.mean(xf, axis=(2, 3))                                 # (N, Cn)
    var = jnp.mean(jnp.square(xf - mean[:, :, None, None]), axis=(2, 3))
    rstd = jax.lax.rsqrt(var + _EPS)
    mean_p = jnp.zeros((N, 1, Cnp), jnp.float32).at[:, 0, :Cn].set(mean)
    rstd_p = jnp.zeros((N, 1, Cnp), jnp.float32).at[:, 0, :Cn].set(rstd)

    # Segmap: NHWC, bf16, small host-side halo pad (2 rows / 1 col per side).
    seg = jnp.transpose(segmap, (0, 2, 3, 1)).astype(jnp.bfloat16)
    seg = jnp.pad(seg, ((0, 0), (2, 2), (1, 1), (0, 0)))     # (N, H+4, W+2, Cl)

    # x: NHWC, channels padded to a 128 multiple (no-op for production Cn).
    x_nhwc = jnp.transpose(x, (0, 2, 3, 1))
    x_p = jnp.pad(x_nhwc, ((0, 0), (0, 0), (0, 0), (0, Cnp - Cn)))

    # Per-tap bf16 weight matrices (k = 3*dy + dx), output channels padded.
    ws = jnp.pad(params["w_shared"], ((0, 0), (0, 0), (0, 0), (0, Chp - Ch)))
    ws = ws.reshape(9, Cl, Chp).astype(jnp.bfloat16)
    bs = jnp.pad(params["b_shared"], (0, Chp - Ch)).reshape(1, Chp).astype(jnp.float32)

    wg = jnp.pad(params["w_gamma"], ((0, 0), (0, 0), (0, Chp - Ch), (0, Cnp - Cn)))
    wb = jnp.pad(params["w_beta"], ((0, 0), (0, 0), (0, Chp - Ch), (0, Cnp - Cn)))
    wgb = jnp.concatenate([wg, wb], axis=-1).reshape(9, Chp, 2 * Cnp)
    wgb = wgb.astype(jnp.bfloat16)
    bg = jnp.pad(params["b_gamma"], (0, Cnp - Cn))
    bb = jnp.pad(params["b_beta"], (0, Cnp - Cn))
    bgb = jnp.concatenate([bg, bb]).reshape(1, 2 * Cnp).astype(jnp.float32)

    # Generation-aware VMEM limit (leave ~25% headroom, cap the request).
    try:
        vmem_cap = pltpu.get_tpu_info().vmem_capacity_bytes
    except Exception:
        vmem_cap = 128 << 20
    vmem_limit = max(32 << 20, min(int(vmem_cap) * 3 // 4, 100 << 20))

    seg_bytes = (H + 4) * (W + 2) * Cl * 2
    if row_tile is None:
        row_tile = _choose_row_tile(H, W, Cl, Chp, Cnp, seg_bytes,
                                    vmem_limit // 2)
    assert H % row_tile == 0, "row_tile must divide H"
    TH = int(row_tile)
    T = H // TH

    kernel = functools.partial(_spade_kernel, H=H, W=W, TH=TH,
                               Cl=Cl, Chp=Chp, Cnp=Cnp)

    flops = 2 * N * H * W * 9 * (Cl * Ch + Ch * 2 * Cn) + 10 * N * H * W * Cn
    bytes_accessed = (x_p.size * 4 + seg.size * 2 + N * H * W * Cnp * 4
                      + ws.size * 2 + wgb.size * 2)

    out_nhwc = pl.pallas_call(
        kernel,
        out_shape=jax.ShapeDtypeStruct((N, H, W, Cnp), x.dtype),
        grid=(N, T),
        in_specs=[
            # Halo-padded segmap stays resident across the row tiles of a batch.
            pl.BlockSpec((None, H + 4, W + 2, Cl), lambda n, t: (n, 0, 0, 0)),
            pl.BlockSpec((None, TH, W, Cnp), lambda n, t: (n, t, 0, 0)),   # x
            pl.BlockSpec((None, 1, Cnp), lambda n, t: (n, 0, 0)),          # mean
            pl.BlockSpec((None, 1, Cnp), lambda n, t: (n, 0, 0)),          # rstd
            pl.BlockSpec((9, Cl, Chp), lambda n, t: (0, 0, 0)),            # w_shared
            pl.BlockSpec((1, Chp), lambda n, t: (0, 0)),                   # b_shared
            pl.BlockSpec((9, Chp, 2 * Cnp), lambda n, t: (0, 0, 0)),       # w_gamma|beta
            pl.BlockSpec((1, 2 * Cnp), lambda n, t: (0, 0)),               # b_gamma|beta
        ],
        out_specs=pl.BlockSpec((None, TH, W, Cnp), lambda n, t: (n, t, 0, 0)),
        scratch_shapes=[pltpu.VMEM((TH + 2, W + 2, Chp), jnp.bfloat16)],
        compiler_params=pltpu.CompilerParams(
            dimension_semantics=("parallel", "parallel"),
            vmem_limit_bytes=vmem_limit),
        cost_estimate=pl.CostEstimate(flops=int(flops), transcendentals=0,
                                      bytes_accessed=int(bytes_accessed)),
    )(seg, x_p, mean_p, rstd_p, ws, bs, wgb, bgb)

    out = out_nhwc[..., :Cn]
    return jnp.transpose(out, (0, 3, 1, 2))                  # back to NCHW


spade_forward = jax.jit(spade_pallas, static_argnames=("row_tile",))


# ----------------------------------------------------------------------------
# Pure-JAX reference. Conv operands are cast to bf16 exactly like the kernel
# (f32 accumulation), so the comparison isolates kernel-structure correctness
# from the intentional bf16 MXU precision choice.
# ----------------------------------------------------------------------------
def spade_reference(x, segmap, params, *, mxu_dtype=jnp.bfloat16):
    x = x.astype(jnp.float32)
    mean = jnp.mean(x, axis=(2, 3), keepdims=True)
    var = jnp.mean((x - mean) ** 2, axis=(2, 3), keepdims=True)
    normalized = (x - mean) * jax.lax.rsqrt(var + _EPS)

    def conv(inp, w_hwio, b):
        w_oihw = jnp.transpose(w_hwio, (3, 2, 0, 1)).astype(mxu_dtype)
        y = jax.lax.conv_general_dilated(
            inp.astype(mxu_dtype), w_oihw, (1, 1), ((1, 1), (1, 1)),
            dimension_numbers=("NCHW", "OIHW", "NCHW"),
            preferred_element_type=jnp.float32)
        return y + b[None, :, None, None]

    actv = jax.nn.relu(conv(segmap, params["w_shared"], params["b_shared"]))
    actv = actv.astype(mxu_dtype)
    gamma = conv(actv, params["w_gamma"], params["b_gamma"])
    beta = conv(actv, params["w_beta"], params["b_beta"])
    return normalized * gamma + beta


if __name__ == "__main__":
    # Small shapes consistent with SPADE(norm_nc, label_nc); nhidden = norm_nc.
    N, norm_nc, label_nc, H, W = 2, 8, 4, 16, 16
    nhidden = norm_nc

    key = jax.random.PRNGKey(0)
    k = jax.random.split(key, 8)
    x = jax.random.normal(k[0], (N, norm_nc, H, W), jnp.float32)
    segmap = jax.random.normal(k[1], (N, label_nc, H, W), jnp.float32)

    # Deterministic synthetic parameters (HWIO layout).
    params = {
        "w_shared": 0.1 * jax.random.normal(k[2], (3, 3, label_nc, nhidden), jnp.float32),
        "b_shared": 0.05 * jax.random.normal(k[3], (nhidden,), jnp.float32),
        "w_gamma": 0.1 * jax.random.normal(k[4], (3, 3, nhidden, norm_nc), jnp.float32),
        "b_gamma": 0.05 * jax.random.normal(k[5], (norm_nc,), jnp.float32),
        "w_beta": 0.1 * jax.random.normal(k[6], (3, 3, nhidden, norm_nc), jnp.float32),
        "b_beta": 0.05 * jax.random.normal(k[7], (norm_nc,), jnp.float32),
    }

    # row_tile=8 -> two row tiles per image, exercising the halo logic.
    out = jax.block_until_ready(spade_forward(x, segmap, params, row_tile=8))
    ref = jax.block_until_ready(spade_reference(x, segmap, params))

    assert out.shape == (N, norm_nc, H, W)
    max_err = float(jnp.max(jnp.abs(out - ref)))
    assert jnp.allclose(out, ref, atol=2e-2, rtol=2e-2), max_err

    print("KERNEL_OK")
</pallas_src>

<mosaic_0001>
module attributes {stable_mosaic.version = 11 : i64} {
  func.func @_spade_kernel(%arg0: i32, %arg1: i32, %arg2: memref<1x20x18x4xbf16, #tpu.memory_space<vmem>>, %arg3: memref<1x8x16x128xf32, #tpu.memory_space<vmem>>, %arg4: memref<1x1x128xf32, #tpu.memory_space<vmem>>, %arg5: memref<1x1x128xf32, #tpu.memory_space<vmem>>, %arg6: memref<9x4x128xbf16, #tpu.memory_space<vmem>>, %arg7: memref<1x128xf32, #tpu.memory_space<vmem>>, %arg8: memref<9x128x256xbf16, #tpu.memory_space<vmem>>, %arg9: memref<1x256xf32, #tpu.memory_space<vmem>>, %arg10: memref<1x8x16x128xf32, #tpu.memory_space<vmem>>, %arg11: memref<10x18x128xbf16, #tpu.memory_space<vmem>>) attributes {dimension_semantics = [#tpu.dimension_semantics<parallel>, #tpu.dimension_semantics<parallel>], iteration_bounds = array<i64: 2, 2>, scalar_prefetch = 0 : i64, scratch_operands = 1 : i64, tpu.core_type = #tpu.core_type<tc>, window_params = [{transform_indices = @transform_0, window_bounds = array<i64: 1, 20, 18, 4>}, {transform_indices = @transform_1, window_bounds = array<i64: 1, 8, 16, 128>}, {transform_indices = @transform_2, window_bounds = array<i64: 1, 1, 128>}, {transform_indices = @transform_3, window_bounds = array<i64: 1, 1, 128>}, {pipeline_mode = #tpu.pipeline_mode<synchronous>, transform_indices = @transform_4, window_bounds = array<i64: 9, 4, 128>}, {pipeline_mode = #tpu.pipeline_mode<synchronous>, transform_indices = @transform_5, window_bounds = array<i64: 1, 128>}, {pipeline_mode = #tpu.pipeline_mode<synchronous>, transform_indices = @transform_6, window_bounds = array<i64: 9, 128, 256>}, {pipeline_mode = #tpu.pipeline_mode<synchronous>, transform_indices = @transform_7, window_bounds = array<i64: 1, 256>}, {transform_indices = @transform_8, window_bounds = array<i64: 1, 8, 16, 128>}]} {
    %c8_i32 = arith.constant 8 : i32
    %0 = arith.muli %arg1, %c8_i32 : i32
    %1 = tpu.assume_multiple %0, 8 : i32
    %c0 = arith.constant 0 : index
    %2 = arith.index_cast %1 : i32 to index
    %c0_0 = arith.constant 0 : index
    %c0_1 = arith.constant 0 : index
    %3 = vector.load %arg2[%c0, %2, %c0_0, %c0_1] : memref<1x20x18x4xbf16, #tpu.memory_space<vmem>>, vector<1x12x18x4xbf16>
    %4 = vector.shape_cast %3 : vector<1x12x18x4xbf16> to vector<12x18x4xbf16>
    %5 = vector.extract_strided_slice %4 {offsets = [0, 0, 0], sizes = [10, 16, 4], strides = [1, 1, 1]} : vector<12x18x4xbf16> to vector<10x16x4xbf16>
    %6 = vector.shape_cast %5 : vector<10x16x4xbf16> to vector<160x4xbf16>
    %c0_2 = arith.constant 0 : index
    %c0_3 = arith.constant 0 : index
    %c0_4 = arith.constant 0 : index
    %7 = vector.load %arg6[%c0_2, %c0_3, %c0_4] : memref<9x4x128xbf16, #tpu.memory_space<vmem>>, vector<1x4x128xbf16>
    %8 = vector.shape_cast %7 : vector<1x4x128xbf16> to vector<4x128xbf16>
    %cst = arith.constant dense<0.000000e+00> : vector<160x128xf32>
    %9 = tpu.matmul %6, %8, %cst {dimension_numbers = #tpu.dot_dimension_numbers<[1], [0], [0], [1], [0, 0, 1, 1], [], []>} : vector<160x4xbf16>, vector<4x128xbf16>, vector<160x128xf32> -> vector<160x128xf32>
    %10 = vector.extract_strided_slice %4 {offsets = [0, 1, 0], sizes = [10, 16, 4], strides = [1, 1, 1]} : vector<12x18x4xbf16> to vector<10x16x4xbf16>
    %11 = vector.shape_cast %10 : vector<10x16x4xbf16> to vector<160x4xbf16>
    %c1 = arith.constant 1 : index
    %c0_5 = arith.constant 0 : index
    %c0_6 = arith.constant 0 : index
    %12 = vector.load %arg6[%c1, %c0_5, %c0_6] : memref<9x4x128xbf16, #tpu.memory_space<vmem>>, vector<1x4x128xbf16>
    %13 = vector.shape_cast %12 : vector<1x4x128xbf16> to vector<4x128xbf16>
    %cst_7 = arith.constant dense<0.000000e+00> : vector<160x128xf32>
    %14 = tpu.matmul %11, %13, %cst_7 {dimension_numbers = #tpu.dot_dimension_numbers<[1], [0], [0], [1], [0, 0, 1, 1], [], []>} : vector<160x4xbf16>, vector<4x128xbf16>, vector<160x128xf32> -> vector<160x128xf32>
    %15 = arith.addf %9, %14 : vector<160x128xf32>
    %16 = vector.extract_strided_slice %4 {offsets = [0, 2, 0], sizes = [10, 16, 4], strides = [1, 1, 1]} : vector<12x18x4xbf16> to vector<10x16x4xbf16>
    %17 = vector.shape_cast %16 : vector<10x16x4xbf16> to vector<160x4xbf16>
    %c2 = arith.constant 2 : index
    %c0_8 = arith.constant 0 : index
    %c0_9 = arith.constant 0 : index
    %18 = vector.load %arg6[%c2, %c0_8, %c0_9] : memref<9x4x128xbf16, #tpu.memory_space<vmem>>, vector<1x4x128xbf16>
    %19 = vector.shape_cast %18 : vector<1x4x128xbf16> to vector<4x128xbf16>
    %cst_10 = arith.constant dense<0.000000e+00> : vector<160x128xf32>
    %20 = tpu.matmul %17, %19, %cst_10 {dimension_numbers = #tpu.dot_dimension_numbers<[1], [0], [0], [1], [0, 0, 1, 1], [], []>} : vector<160x4xbf16>, vector<4x128xbf16>, vector<160x128xf32> -> vector<160x128xf32>
    %21 = arith.addf %15, %20 : vector<160x128xf32>
    %22 = vector.extract_strided_slice %4 {offsets = [1, 0, 0], sizes = [10, 16, 4], strides = [1, 1, 1]} : vector<12x18x4xbf16> to vector<10x16x4xbf16>
    %23 = vector.shape_cast %22 : vector<10x16x4xbf16> to vector<160x4xbf16>
    %c3 = arith.constant 3 : index
    %c0_11 = arith.constant 0 : index
    %c0_12 = arith.constant 0 : index
    %24 = vector.load %arg6[%c3, %c0_11, %c0_12] : memref<9x4x128xbf16, #tpu.memory_space<vmem>>, vector<1x4x128xbf16>
    %25 = vector.shape_cast %24 : vector<1x4x128xbf16> to vector<4x128xbf16>
    %cst_13 = arith.constant dense<0.000000e+00> : vector<160x128xf32>
    %26 = tpu.matmul %23, %25, %cst_13 {dimension_numbers = #tpu.dot_dimension_numbers<[1], [0], [0], [1], [0, 0, 1, 1], [], []>} : vector<160x4xbf16>, vector<4x128xbf16>, vector<160x128xf32> -> vector<160x128xf32>
    %27 = arith.addf %21, %26 : vector<160x128xf32>
    %28 = vector.extract_strided_slice %4 {offsets = [1, 1, 0], sizes = [10, 16, 4], strides = [1, 1, 1]} : vector<12x18x4xbf16> to vector<10x16x4xbf16>
    %29 = vector.shape_cast %28 : vector<10x16x4xbf16> to vector<160x4xbf16>
    %c4 = arith.constant 4 : index
    %c0_14 = arith.constant 0 : index
    %c0_15 = arith.constant 0 : index
    %30 = vector.load %arg6[%c4, %c0_14, %c0_15] : memref<9x4x128xbf16, #tpu.memory_space<vmem>>, vector<1x4x128xbf16>
    %31 = vector.shape_cast %30 : vector<1x4x128xbf16> to vector<4x128xbf16>
    %cst_16 = arith.constant dense<0.000000e+00> : vector<160x128xf32>
    %32 = tpu.matmul %29, %31, %cst_16 {dimension_numbers = #tpu.dot_dimension_numbers<[1], [0], [0], [1], [0, 0, 1, 1], [], []>} : vector<160x4xbf16>, vector<4x128xbf16>, vector<160x128xf32> -> vector<160x128xf32>
    %33 = arith.addf %27, %32 : vector<160x128xf32>
    %34 = vector.extract_strided_slice %4 {offsets = [1, 2, 0], sizes = [10, 16, 4], strides = [1, 1, 1]} : vector<12x18x4xbf16> to vector<10x16x4xbf16>
    %35 = vector.shape_cast %34 : vector<10x16x4xbf16> to vector<160x4xbf16>
    %c5 = arith.constant 5 : index
    %c0_17 = arith.constant 0 : index
    %c0_18 = arith.constant 0 : index
    %36 = vector.load %arg6[%c5, %c0_17, %c0_18] : memref<9x4x128xbf16, #tpu.memory_space<vmem>>, vector<1x4x128xbf16>
    %37 = vector.shape_cast %36 : vector<1x4x128xbf16> to vector<4x128xbf16>
    %cst_19 = arith.constant dense<0.000000e+00> : vector<160x128xf32>
    %38 = tpu.matmul %35, %37, %cst_19 {dimension_numbers = #tpu.dot_dimension_numbers<[1], [0], [0], [1], [0, 0, 1, 1], [], []>} : vector<160x4xbf16>, vector<4x128xbf16>, vector<160x128xf32> -> vector<160x128xf32>
    %39 = arith.addf %33, %38 : vector<160x128xf32>
    %40 = vector.extract_strided_slice %4 {offsets = [2, 0, 0], sizes = [10, 16, 4], strides = [1, 1, 1]} : vector<12x18x4xbf16> to vector<10x16x4xbf16>
    %41 = vector.shape_cast %40 : vector<10x16x4xbf16> to vector<160x4xbf16>
    %c6 = arith.constant 6 : index
    %c0_20 = arith.constant 0 : index
    %c0_21 = arith.constant 0 : index
    %42 = vector.load %arg6[%c6, %c0_20, %c0_21] : memref<9x4x128xbf16, #tpu.memory_space<vmem>>, vector<1x4x128xbf16>
    %43 = vector.shape_cast %42 : vector<1x4x128xbf16> to vector<4x128xbf16>
    %cst_22 = arith.constant dense<0.000000e+00> : vector<160x128xf32>
    %44 = tpu.matmul %41, %43, %cst_22 {dimension_numbers = #tpu.dot_dimension_numbers<[1], [0], [0], [1], [0, 0, 1, 1], [], []>} : vector<160x4xbf16>, vector<4x128xbf16>, vector<160x128xf32> -> vector<160x128xf32>
    %45 = arith.addf %39, %44 : vector<160x128xf32>
    %46 = vector.extract_strided_slice %4 {offsets = [2, 1, 0], sizes = [10, 16, 4], strides = [1, 1, 1]} : vector<12x18x4xbf16> to vector<10x16x4xbf16>
    %47 = vector.shape_cast %46 : vector<10x16x4xbf16> to vector<160x4xbf16>
    %c7 = arith.constant 7 : index
    %c0_23 = arith.constant 0 : index
    %c0_24 = arith.constant 0 : index
    %48 = vector.load %arg6[%c7, %c0_23, %c0_24] : memref<9x4x128xbf16, #tpu.memory_space<vmem>>, vector<1x4x128xbf16>
    %49 = vector.shape_cast %48 : vector<1x4x128xbf16> to vector<4x128xbf16>
    %cst_25 = arith.constant dense<0.000000e+00> : vector<160x128xf32>
    %50 = tpu.matmul %47, %49, %cst_25 {dimension_numbers = #tpu.dot_dimension_numbers<[1], [0], [0], [1], [0, 0, 1, 1], [], []>} : vector<160x4xbf16>, vector<4x128xbf16>, vector<160x128xf32> -> vector<160x128xf32>
    %51 = arith.addf %45, %50 : vector<160x128xf32>
    %52 = vector.extract_strided_slice %4 {offsets = [2, 2, 0], sizes = [10, 16, 4], strides = [1, 1, 1]} : vector<12x18x4xbf16> to vector<10x16x4xbf16>
    %53 = vector.shape_cast %52 : vector<10x16x4xbf16> to vector<160x4xbf16>
    %c8 = arith.constant 8 : index
    %c0_26 = arith.constant 0 : index
    %c0_27 = arith.constant 0 : index
    %54 = vector.load %arg6[%c8, %c0_26, %c0_27] : memref<9x4x128xbf16, #tpu.memory_space<vmem>>, vector<1x4x128xbf16>
    %55 = vector.shape_cast %54 : vector<1x4x128xbf16> to vector<4x128xbf16>
    %cst_28 = arith.constant dense<0.000000e+00> : vector<160x128xf32>
    %56 = tpu.matmul %53, %55, %cst_28 {dimension_numbers = #tpu.dot_dimension_numbers<[1], [0], [0], [1], [0, 0, 1, 1], [], []>} : vector<160x4xbf16>, vector<4x128xbf16>, vector<160x128xf32> -> vector<160x128xf32>
    %57 = arith.addf %51, %56 : vector<160x128xf32>
    %c0_29 = arith.constant 0 : index
    %c0_30 = arith.constant 0 : index
    %58 = vector.load %arg7[%c0_29, %c0_30] : memref<1x128xf32, #tpu.memory_space<vmem>>, vector<1x128xf32>
    %59 = vector.broadcast %58 : vector<1x128xf32> to vector<160x128xf32>
    %60 = arith.addf %57, %59 : vector<160x128xf32>
    %cst_31 = arith.constant 0.000000e+00 : f32
    %61 = vector.broadcast %cst_31 : f32 to vector<160x128xf32>
    %62 = arith.maximumf %60, %61 : vector<160x128xf32>
    %63 = arith.truncf %62 : vector<160x128xf32> to vector<160x128xbf16>
    %64 = vector.shape_cast %63 : vector<160x128xbf16> to vector<10x16x128xbf16>
    %c8_i32_32 = arith.constant 8 : i32
    %65 = arith.muli %arg1, %c8_i32_32 : i32
    %c1_i32 = arith.constant 1 : i32
    %66 = arith.subi %65, %c1_i32 : i32
    %67 = tpu.iota {dimensions = array<i32: 0>} : vector<10x16x128xi32>
    %68 = vector.broadcast %66 : i32 to vector<10x16x128xi32>
    %69 = arith.addi %68, %67 : vector<10x16x128xi32>
    %c0_i32 = arith.constant 0 : i32
    %70 = vector.broadcast %c0_i32 : i32 to vector<10x16x128xi32>
    %71 = arith.cmpi sge, %69, %70 : vector<10x16x128xi32>
    %c16_i32 = arith.constant 16 : i32
    %72 = vector.broadcast %c16_i32 : i32 to vector<10x16x128xi32>
    %73 = arith.cmpi slt, %69, %72 : vector<10x16x128xi32>
    %74 = arith.andi %71, %73 : vector<10x16x128xi1>
    %cst_33 = arith.constant 0.000000e+00 : bf16
    %75 = vector.broadcast %cst_33 : bf16 to vector<10x16x128xbf16>
    %76 = arith.select %74, %64, %75 : vector<10x16x128xi1>, vector<10x16x128xbf16>
    %cst_34 = arith.constant 0.000000e+00 : bf16
    %77 = vector.broadcast %cst_34 : bf16 to vector<10x1x128xbf16>
    %c0_35 = arith.constant 0 : index
    %c0_36 = arith.constant 0 : index
    %c0_37 = arith.constant 0 : index
    %78 = vector.load %arg11[%c0_35, %c0_36, %c0_37] : memref<10x18x128xbf16, #tpu.memory_space<vmem>>, vector<10x1x128xbf16>
    tpu.vector_store %arg11[%c0_35, %c0_36, %c0_37], %77 {strides = array<i32>} : memref<10x18x128xbf16, #tpu.memory_space<vmem>>, vector<10x1x128xbf16>,
    %cst_38 = arith.constant 0.000000e+00 : bf16
    %79 = vector.broadcast %cst_38 : bf16 to vector<10x1x128xbf16>
    %c0_39 = arith.constant 0 : index
    %c17 = arith.constant 17 : index
    %c0_40 = arith.constant 0 : index
    %80 = vector.load %arg11[%c0_39, %c17, %c0_40] : memref<10x18x128xbf16, #tpu.memory_space<vmem>>, vector<10x1x128xbf16>
    tpu.vector_store %arg11[%c0_39, %c17, %c0_40], %79 {strides = array<i32>} : memref<10x18x128xbf16, #tpu.memory_space<vmem>>, vector<10x1x128xbf16>,
    %c0_41 = arith.constant 0 : index
    %c1_42 = arith.constant 1 : index
    %c0_43 = arith.constant 0 : index
    %81 = vector.load %arg11[%c0_41, %c1_42, %c0_43] : memref<10x18x128xbf16, #tpu.memory_space<vmem>>, vector<10x16x128xbf16>
    tpu.vector_store %arg11[%c0_41, %c1_42, %c0_43], %76 {strides = array<i32>} : memref<10x18x128xbf16, #tpu.memory_space<vmem>>, vector<10x16x128xbf16>,
    %c0_44 = arith.constant 0 : index
    %c0_45 = arith.constant 0 : index
    %c0_46 = arith.constant 0 : index
    %82 = vector.load %arg11[%c0_44, %c0_45, %c0_46] : memref<10x18x128xbf16, #tpu.memory_space<vmem>>, vector<8x16x128xbf16>
    %83 = vector.shape_cast %82 : vector<8x16x128xbf16> to vector<128x128xbf16>
    %c0_47 = arith.constant 0 : index
    %c0_48 = arith.constant 0 : index
    %c0_49 = arith.constant 0 : index
    %84 = vector.load %arg8[%c0_47, %c0_48, %c0_49] : memref<9x128x256xbf16, #tpu.memory_space<vmem>>, vector<1x128x256xbf16>
    %85 = vector.shape_cast %84 : vector<1x128x256xbf16> to vector<128x256xbf16>
    %cst_50 = arith.constant dense<0.000000e+00> : vector<128x256xf32>
    %86 = tpu.matmul %83, %85, %cst_50 {dimension_numbers = #tpu.dot_dimension_numbers<[1], [0], [0], [1], [0, 0, 1, 1], [], []>} : vector<128x128xbf16>, vector<128x256xbf16>, vector<128x256xf32> -> vector<128x256xf32>
    %c0_51 = arith.constant 0 : index
    %c1_52 = arith.constant 1 : index
    %c0_53 = arith.constant 0 : index
    %87 = vector.load %arg11[%c0_51, %c1_52, %c0_53] : memref<10x18x128xbf16, #tpu.memory_space<vmem>>, vector<8x16x128xbf16>
    %88 = vector.shape_cast %87 : vector<8x16x128xbf16> to vector<128x128xbf16>
    %c1_54 = arith.constant 1 : index
    %c0_55 = arith.constant 0 : index
    %c0_56 = arith.constant 0 : index
    %89 = vector.load %arg8[%c1_54, %c0_55, %c0_56] : memref<9x128x256xbf16, #tpu.memory_space<vmem>>, vector<1x128x256xbf16>
    %90 = vector.shape_cast %89 : vector<1x128x256xbf16> to vector<128x256xbf16>
    %cst_57 = arith.constant dense<0.000000e+00> : vector<128x256xf32>
    %91 = tpu.matmul %88, %90, %cst_57 {dimension_numbers = #tpu.dot_dimension_numbers<[1], [0], [0], [1], [0, 0, 1, 1], [], []>} : vector<128x128xbf16>, vector<128x256xbf16>, vector<128x256xf32> -> vector<128x256xf32>
    %92 = arith.addf %86, %91 : vector<128x256xf32>
    %c0_58 = arith.constant 0 : index
    %c2_59 = arith.constant 2 : index
    %c0_60 = arith.constant 0 : index
    %93 = vector.load %arg11[%c0_58, %c2_59, %c0_60] : memref<10x18x128xbf16, #tpu.memory_space<vmem>>, vector<8x16x128xbf16>
    %94 = vector.shape_cast %93 : vector<8x16x128xbf16> to vector<128x128xbf16>
    %c2_61 = arith.constant 2 : index
    %c0_62 = arith.constant 0 : index
    %c0_63 = arith.constant 0 : index
    %95 = vector.load %arg8[%c2_61, %c0_62, %c0_63] : memref<9x128x256xbf16, #tpu.memory_space<vmem>>, vector<1x128x256xbf16>
    %96 = vector.shape_cast %95 : vector<1x128x256xbf16> to vector<128x256xbf16>
    %cst_64 = arith.constant dense<0.000000e+00> : vector<128x256xf32>
    %97 = tpu.matmul %94, %96, %cst_64 {dimension_numbers = #tpu.dot_dimension_numbers<[1], [0], [0], [1], [0, 0, 1, 1], [], []>} : vector<128x128xbf16>, vector<128x256xbf16>, vector<128x256xf32> -> vector<128x256xf32>
    %98 = arith.addf %92, %97 : vector<128x256xf32>
    %c1_65 = arith.constant 1 : index
    %c0_66 = arith.constant 0 : index
    %c0_67 = arith.constant 0 : index
    %99 = vector.load %arg11[%c1_65, %c0_66, %c0_67] : memref<10x18x128xbf16, #tpu.memory_space<vmem>>, vector<8x16x128xbf16>
    %100 = vector.shape_cast %99 : vector<8x16x128xbf16> to vector<128x128xbf16>
    %c3_68 = arith.constant 3 : index
    %c0_69 = arith.constant 0 : index
    %c0_70 = arith.constant 0 : index
    %101 = vector.load %arg8[%c3_68, %c0_69, %c0_70] : memref<9x128x256xbf16, #tpu.memory_space<vmem>>, vector<1x128x256xbf16>
    %102 = vector.shape_cast %101 : vector<1x128x256xbf16> to vector<128x256xbf16>
    %cst_71 = arith.constant dense<0.000000e+00> : vector<128x256xf32>
    %103 = tpu.matmul %100, %102, %cst_71 {dimension_numbers = #tpu.dot_dimension_numbers<[1], [0], [0], [1], [0, 0, 1, 1], [], []>} : vector<128x128xbf16>, vector<128x256xbf16>, vector<128x256xf32> -> vector<128x256xf32>
    %104 = arith.addf %98, %103 : vector<128x256xf32>
    %c1_72 = arith.constant 1 : index
    %c1_73 = arith.constant 1 : index
    %c0_74 = arith.constant 0 : index
    %105 = vector.load %arg11[%c1_72, %c1_73, %c0_74] : memref<10x18x128xbf16, #tpu.memory_space<vmem>>, vector<8x16x128xbf16>
    %106 = vector.shape_cast %105 : vector<8x16x128xbf16> to vector<128x128xbf16>
    %c4_75 = arith.constant 4 : index
    %c0_76 = arith.constant 0 : index
    %c0_77 = arith.constant 0 : index
    %107 = vector.load %arg8[%c4_75, %c0_76, %c0_77] : memref<9x128x256xbf16, #tpu.memory_space<vmem>>, vector<1x128x256xbf16>
    %108 = vector.shape_cast %107 : vector<1x128x256xbf16> to vector<128x256xbf16>
    %cst_78 = arith.constant dense<0.000000e+00> : vector<128x256xf32>
    %109 = tpu.matmul %106, %108, %cst_78 {dimension_numbers = #tpu.dot_dimension_numbers<[1], [0], [0], [1], [0, 0, 1, 1], [], []>} : vector<128x128xbf16>, vector<128x256xbf16>, vector<128x256xf32> -> vector<128x256xf32>
    %110 = arith.addf %104, %109 : vector<128x256xf32>
    %c1_79 = arith.constant 1 : index
    %c2_80 = arith.constant 2 : index
    %c0_81 = arith.constant 0 : index
    %111 = vector.load %arg11[%c1_79, %c2_80, %c0_81] : memref<10x18x128xbf16, #tpu.memory_space<vmem>>, vector<8x16x128xbf16>
    %112 = vector.shape_cast %111 : vector<8x16x128xbf16> to vector<128x128xbf16>
    %c5_82 = arith.constant 5 : index
    %c0_83 = arith.constant 0 : index
    %c0_84 = arith.constant 0 : index
    %113 = vector.load %arg8[%c5_82, %c0_83, %c0_84] : memref<9x128x256xbf16, #tpu.memory_space<vmem>>, vector<1x128x256xbf16>
    %114 = vector.shape_cast %113 : vector<1x128x256xbf16> to vector<128x256xbf16>
    %cst_85 = arith.constant dense<0.000000e+00> : vector<128x256xf32>
    %115 = tpu.matmul %112, %114, %cst_85 {dimension_numbers = #tpu.dot_dimension_numbers<[1], [0], [0], [1], [0, 0, 1, 1], [], []>} : vector<128x128xbf16>, vector<128x256xbf16>, vector<128x256xf32> -> vector<128x256xf32>
    %116 = arith.addf %110, %115 : vector<128x256xf32>
    %c2_86 = arith.constant 2 : index
    %c0_87 = arith.constant 0 : index
    %c0_88 = arith.constant 0 : index
    %117 = vector.load %arg11[%c2_86, %c0_87, %c0_88] : memref<10x18x128xbf16, #tpu.memory_space<vmem>>, vector<8x16x128xbf16>
    %118 = vector.shape_cast %117 : vector<8x16x128xbf16> to vector<128x128xbf16>
    %c6_89 = arith.constant 6 : index
    %c0_90 = arith.constant 0 : index
    %c0_91 = arith.constant 0 : index
    %119 = vector.load %arg8[%c6_89, %c0_90, %c0_91] : memref<9x128x256xbf16, #tpu.memory_space<vmem>>, vector<1x128x256xbf16>
    %120 = vector.shape_cast %119 : vector<1x128x256xbf16> to vector<128x256xbf16>
    %cst_92 = arith.constant dense<0.000000e+00> : vector<128x256xf32>
    %121 = tpu.matmul %118, %120, %cst_92 {dimension_numbers = #tpu.dot_dimension_numbers<[1], [0], [0], [1], [0, 0, 1, 1], [], []>} : vector<128x128xbf16>, vector<128x256xbf16>, vector<128x256xf32> -> vector<128x256xf32>
    %122 = arith.addf %116, %121 : vector<128x256xf32>
    %c2_93 = arith.constant 2 : index
    %c1_94 = arith.constant 1 : index
    %c0_95 = arith.constant 0 : index
    %123 = vector.load %arg11[%c2_93, %c1_94, %c0_95] : memref<10x18x128xbf16, #tpu.memory_space<vmem>>, vector<8x16x128xbf16>
    %124 = vector.shape_cast %123 : vector<8x16x128xbf16> to vector<128x128xbf16>
    %c7_96 = arith.constant 7 : index
    %c0_97 = arith.constant 0 : index
    %c0_98 = arith.constant 0 : index
    %125 = vector.load %arg8[%c7_96, %c0_97, %c0_98] : memref<9x128x256xbf16, #tpu.memory_space<vmem>>, vector<1x128x256xbf16>
    %126 = vector.shape_cast %125 : vector<1x128x256xbf16> to vector<128x256xbf16>
    %cst_99 = arith.constant dense<0.000000e+00> : vector<128x256xf32>
    %127 = tpu.matmul %124, %126, %cst_99 {dimension_numbers = #tpu.dot_dimension_numbers<[1], [0], [0], [1], [0, 0, 1, 1], [], []>} : vector<128x128xbf16>, vector<128x256xbf16>, vector<128x256xf32> -> vector<128x256xf32>
    %128 = arith.addf %122, %127 : vector<128x256xf32>
    %c2_100 = arith.constant 2 : index
    %c2_101 = arith.constant 2 : index
    %c0_102 = arith.constant 0 : index
    %129 = vector.load %arg11[%c2_100, %c2_101, %c0_102] : memref<10x18x128xbf16, #tpu.memory_space<vmem>>, vector<8x16x128xbf16>
    %130 = vector.shape_cast %129 : vector<8x16x128xbf16> to vector<128x128xbf16>
    %c8_103 = arith.constant 8 : index
    %c0_104 = arith.constant 0 : index
    %c0_105 = arith.constant 0 : index
    %131 = vector.load %arg8[%c8_103, %c0_104, %c0_105] : memref<9x128x256xbf16, #tpu.memory_space<vmem>>, vector<1x128x256xbf16>
    %132 = vector.shape_cast %131 : vector<1x128x256xbf16> to vector<128x256xbf16>
    %cst_106 = arith.constant dense<0.000000e+00> : vector<128x256xf32>
    %133 = tpu.matmul %130, %132, %cst_106 {dimension_numbers = #tpu.dot_dimension_numbers<[1], [0], [0], [1], [0, 0, 1, 1], [], []>} : vector<128x128xbf16>, vector<128x256xbf16>, vector<128x256xf32> -> vector<128x256xf32>
    %134 = arith.addf %128, %133 : vector<128x256xf32>
    %c0_107 = arith.constant 0 : index
    %c0_108 = arith.constant 0 : index
    %135 = vector.load %arg9[%c0_107, %c0_108] : memref<1x256xf32, #tpu.memory_space<vmem>>, vector<1x256xf32>
    %136 = vector.broadcast %135 : vector<1x256xf32> to vector<128x256xf32>
    %137 = arith.addf %134, %136 : vector<128x256xf32>
    %138 = vector.extract_strided_slice %137 {offsets = [0, 0], sizes = [128, 128], strides = [1, 1]} : vector<128x256xf32> to vector<128x128xf32>
    %139 = vector.extract_strided_slice %137 {offsets = [0, 128], sizes = [128, 128], strides = [1, 1]} : vector<128x256xf32> to vector<128x128xf32>
    %c0_109 = arith.constant 0 : index
    %c0_110 = arith.constant 0 : index
    %c0_111 = arith.constant 0 : index
    %c0_112 = arith.constant 0 : index
    %140 = vector.load %arg3[%c0_109, %c0_110, %c0_111, %c0_112] : memref<1x8x16x128xf32, #tpu.memory_space<vmem>>, vector<1x8x16x128xf32>
    %141 = vector.shape_cast %140 : vector<1x8x16x128xf32> to vector<8x16x128xf32>
    %142 = vector.shape_cast %141 : vector<8x16x128xf32> to vector<128x128xf32>
    %c0_113 = arith.constant 0 : index
    %c0_114 = arith.constant 0 : index
    %c0_115 = arith.constant 0 : index
    %143 = vector.load %arg4[%c0_113, %c0_114, %c0_115] : memref<1x1x128xf32, #tpu.memory_space<vmem>>, vector<1x1x128xf32>
    %144 = vector.shape_cast %143 : vector<1x1x128xf32> to vector<1x128xf32>
    %145 = vector.broadcast %144 : vector<1x128xf32> to vector<128x128xf32>
    %146 = arith.subf %142, %145 : vector<128x128xf32>
    %c0_116 = arith.constant 0 : index
    %c0_117 = arith.constant 0 : index
    %c0_118 = arith.constant 0 : index
    %147 = vector.load %arg5[%c0_116, %c0_117, %c0_118] : memref<1x1x128xf32, #tpu.memory_space<vmem>>, vector<1x1x128xf32>
    %148 = vector.shape_cast %147 : vector<1x1x128xf32> to vector<1x128xf32>
    %149 = vector.broadcast %148 : vector<1x128xf32> to vector<128x128xf32>
    %150 = arith.mulf %146, %149 : vector<128x128xf32>
    %151 = arith.mulf %150, %138 : vector<128x128xf32>
    %152 = arith.addf %151, %139 : vector<128x128xf32>
    %153 = vector.shape_cast %152 : vector<128x128xf32> to vector<8x16x128xf32>
    %c0_119 = arith.constant 0 : index
    %c0_120 = arith.constant 0 : index
    %c0_121 = arith.constant 0 : index
    %c0_122 = arith.constant 0 : index
    %154 = vector.load %arg10[%c0_119, %c0_120, %c0_121, %c0_122] : memref<1x8x16x128xf32, #tpu.memory_space<vmem>>, vector<1x8x16x128xf32>
    %155 = vector.shape_cast %154 : vector<1x8x16x128xf32> to vector<8x16x128xf32>
    %156 = vector.shape_cast %153 : vector<8x16x128xf32> to vector<1x8x16x128xf32>
    tpu.vector_store %arg10[%c0_119, %c0_120, %c0_121, %c0_122], %156 {strides = array<i32>} : memref<1x8x16x128xf32, #tpu.memory_space<vmem>>, vector<1x8x16x128xf32>,
    return
  }
  func.func @transform_0(%arg0: i32, %arg1: i32) -> (i32, i32, i32, i32) {
    %c0_i32 = arith.constant 0 : i32
    %c0_i32_0 = arith.constant 0 : i32
    %c0_i32_1 = arith.constant 0 : i32
    %c0_i32_2 = arith.constant 0 : i32
    return %arg0, %c0_i32, %c0_i32_0, %c0_i32_1 : i32, i32, i32, i32
  }
  func.func @transform_1(%arg0: i32, %arg1: i32) -> (i32, i32, i32, i32) {
    %c0_i32 = arith.constant 0 : i32
    %c0_i32_0 = arith.constant 0 : i32
    %c0_i32_1 = arith.constant 0 : i32
    return %arg0, %arg1, %c0_i32, %c0_i32_0 : i32, i32, i32, i32
  }
  func.func @transform_2(%arg0: i32, %arg1: i32) -> (i32, i32, i32) {
    %c0_i32 = arith.constant 0 : i32
    %c0_i32_0 = arith.constant 0 : i32
    %c0_i32_1 = arith.constant 0 : i32
    return %arg0, %c0_i32, %c0_i32_0 : i32, i32, i32
  }
  func.func @transform_3(%arg0: i32, %arg1: i32) -> (i32, i32, i32) {
    %c0_i32 = arith.constant 0 : i32
    %c0_i32_0 = arith.constant 0 : i32
    %c0_i32_1 = arith.constant 0 : i32
    return %arg0, %c0_i32, %c0_i32_0 : i32, i32, i32
  }
  func.func @transform_4(%arg0: i32, %arg1: i32) -> (i32, i32, i32) {
    %c0_i32 = arith.constant 0 : i32
    %c0_i32_0 = arith.constant 0 : i32
    %c0_i32_1 = arith.constant 0 : i32
    %c0_i32_2 = arith.constant 0 : i32
    return %c0_i32, %c0_i32_0, %c0_i32_1 : i32, i32, i32
  }
  func.func @transform_5(%arg0: i32, %arg1: i32) -> (i32, i32) {
    %c0_i32 = arith.constant 0 : i32
    %c0_i32_0 = arith.constant 0 : i32
    %c0_i32_1 = arith.constant 0 : i32
    return %c0_i32, %c0_i32_0 : i32, i32
  }
  func.func @transform_6(%arg0: i32, %arg1: i32) -> (i32, i32, i32) {
    %c0_i32 = arith.constant 0 : i32
    %c0_i32_0 = arith.constant 0 : i32
    %c0_i32_1 = arith.constant 0 : i32
    %c0_i32_2 = arith.constant 0 : i32
    return %c0_i32, %c0_i32_0, %c0_i32_1 : i32, i32, i32
  }
  func.func @transform_7(%arg0: i32, %arg1: i32) -> (i32, i32) {
    %c0_i32 = arith.constant 0 : i32
    %c0_i32_0 = arith.constant 0 : i32
    %c0_i32_1 = arith.constant 0 : i32
    return %c0_i32, %c0_i32_0 : i32, i32
  }
  func.func @transform_8(%arg0: i32, %arg1: i32) -> (i32, i32, i32, i32) {
    %c0_i32 = arith.constant 0 : i32
    %c0_i32_0 = arith.constant 0 : i32
    %c0_i32_1 = arith.constant 0 : i32
    return %arg0, %arg1, %c0_i32, %c0_i32_0 : i32, i32, i32, i32
  }
}

</mosaic_0001>

<llo_original>
// kernel: spade_pallas.1
$region0: #{spade_pallas.1}
  #allocation0 [shape = 'u32[]', space=smem, size = 0x4, offset = 0x4, fixed_abs, tag = 'smem constant byte address 0x4 - core index']
  #allocation1 [shape = 'u32[144,128]{1,0:T(1,128)}', space=vmem, size = 0x12000, scoped, tag = 'internal scratch']
  #allocation2 [shape = 'bf16[10,18,128]{2,1,0:T(8,128)(2,1)}', space=vmem, size = 0xf000, scoped, tag = 'scratch operand']
  %s0 = inlined_call_operand.vmem [shape: bf16[2,20,18,4], index: 0, kind: input, shape index: {}]
  %s1 = inlined_call_operand.vmem [shape: f32[2,16,16,128], index: 1, kind: input, shape index: {}]
  %s2 = inlined_call_operand.vmem [shape: f32[2,1,128], index: 2, kind: input, shape index: {}]
  %s3 = inlined_call_operand.vmem [shape: f32[2,1,128], index: 3, kind: input, shape index: {}]
  %s4 = inlined_call_operand.vmem [shape: bf16[9,4,128], index: 4, kind: input, shape index: {}]
  %s5 = inlined_call_operand.vmem [shape: f32[1,128], index: 5, kind: input, shape index: {}]
  %s6 = inlined_call_operand.vmem [shape: bf16[9,128,256], index: 6, kind: input, shape index: {}]
  %s7 = inlined_call_operand.vmem [shape: f32[1,256], index: 7, kind: input, shape index: {}]
  %s8 = inlined_call_operand.vmem [shape: f32[2,16,16,128], index: 8, kind: output, shape index: {}]
  %s9 = sld [smem:[#allocation0]]
  $region65: #{spade_pallas.1} parent=0
    _
  %s11 = ssub.s32 1, %s9
  %s12 = scalar_select 0, %s11, %s9
  loop: start=0, step=1, limit=6
  $region2: #{spade_pallas.1} parent=0 // loop_pre_header
    _
  $region3: #{spade_pallas.1} parent=0 // loop_header
    %s14 = sphi 0, %s18
    %p15 = scmp.ge.s32.totalorder %s14, 6
    %s21 = sphi 0, %s33
    %s22 = sphi 0, %s29
    %s23 = sphi 0, %s21
    %s24 = sphi 0, %s22
    %s25 = sphi 0, %s23
    %s26 = sphi 0, %s24
    %s36 = sphi 0, %s38
    %s39 = sphi 0, %s36
    %s40 = sphi 0, %s39
    %s56 = sphi 0, %s40
    %s64 = sphi 0, %s66
    %s67 = sphi 0, %s64
    %s68 = sphi 0, %s67
    %s84 = sphi 0, %s68
    %s90 = sphi 0, %s92
    %s93 = sphi 0, %s90
    %s94 = sphi 0, %s93
    %s110 = sphi 0, %s94
    %s116 = sphi 0, %s118
    %s119 = sphi 0, %s116
    %s120 = sphi 0, %s119
    %s136 = sphi 0, %s120
    %s140 = sphi 0, %s140
    %s142 = sphi 0, %s140
    %s143 = sphi 0, %s142
    %s157 = sphi 0, %s143
    %s161 = sphi 0, %s161
    %s163 = sphi 0, %s161
    %s164 = sphi 0, %s163
    %s178 = sphi 0, %s164
    %s182 = sphi 0, %s182
    %s184 = sphi 0, %s182
    %s185 = sphi 0, %s184
    %s199 = sphi 0, %s185
    %s203 = sphi 0, %s203
    %s205 = sphi 0, %s203
    %s206 = sphi 0, %s205
    %s220 = sphi 0, %s206
    %s228 = sphi 0, %s230
    %s231 = sphi 0, %s228
    %s232 = sphi 0, %s231
    %s248 = sphi 0, %s232
  $region4: #{spade_pallas.1} parent=0 // loop_header_branch
    %17 = sbr.rel (%p15) target = $region8
  $region5: #{spade_pallas.1} parent=0 // loop_body
    %s19 = ssub.s32 %s14, 1
    %s20 = ssub.s32 %s14, 2
    %s27 = sadd.s32 1, %s22
    %p28 = scmp.ge.s32.totalorder %s27, 2
    %s29 = scalar_select %p28, 0, %s27
    %s30 = sadd.s32 1, %s21
    %s31 = scalar_select %p28, %s30, %s21
    %p32 = scmp.ge.s32.totalorder %s31, 2
    %s33 = scalar_select %p32, 0, %s31
    %s34 = ssub.s32 %s21, %s33
    %p35 = scmp.eq.s32.totalorder %s34, 0
    %s37 = sadd.s32 %s36, 1
    %s38 = scalar_select %p35, %s36, %s37
    %p41 = pneg %p35
    %p42 = scmp.eq.s32.totalorder %s14, 3
    %p43 = por %p41, %p42
    %p44 = scmp.ne.s32.totalorder %s36, %s39
    %p45 = scmp.eq.s32.totalorder %s14, 0
    %p46 = por %p44, %p45
    %p47 = scmp.ne.s32.totalorder %s36, %s39
    %p48 = scmp.eq.s32.totalorder %s19, 3
    %p49 = por %p47, %p48
    %p50 = scmp.ne.s32.totalorder %s39, %s40
    %p51 = scmp.eq.s32.totalorder %s19, 0
    %p52 = por %p50, %p51
    %p53 = scmp.ne.s32.totalorder %s39, %s40
    %p54 = scmp.eq.s32.totalorder %s20, 3
    %p55 = por %p53, %p54
    %p57 = scmp.ne.s32.totalorder %s40, %s56
    %p58 = scmp.eq.s32.totalorder %s20, 0
    %p59 = por %p57, %p58
    %s60 = ssub.s32 %s21, %s33
    %s61 = ssub.s32 %s22, %s29
    %s62 = sor.u32 %s60, %s61
    %p63 = scmp.eq.s32.totalorder %s62, 0
    %s65 = sadd.s32 %s64, 1
    %s66 = scalar_select %p63, %s64, %s65
    %p69 = pneg %p63
    %p70 = scmp.eq.s32.totalorder %s14, 3
    %p71 = por %p69, %p70
    %p72 = scmp.ne.s32.totalorder %s64, %s67
    %p73 = scmp.eq.s32.totalorder %s14, 0
    %p74 = por %p72, %p73
    %p75 = scmp.ne.s32.totalorder %s64, %s67
    %p76 = scmp.eq.s32.totalorder %s19, 3
    %p77 = por %p75, %p76
    %p78 = scmp.ne.s32.totalorder %s67, %s68
    %p79 = scmp.eq.s32.totalorder %s19, 0
    %p80 = por %p78, %p79
    %p81 = scmp.ne.s32.totalorder %s67, %s68
    %p82 = scmp.eq.s32.totalorder %s20, 3
    %p83 = por %p81, %p82
    %p85 = scmp.ne.s32.totalorder %s68, %s84
    %p86 = scmp.eq.s32.totalorder %s20, 0
    %p87 = por %p85, %p86
    %s88 = ssub.s32 %s21, %s33
    %p89 = scmp.eq.s32.totalorder %s88, 0
    %s91 = sadd.s32 %s90, 1
    %s92 = scalar_select %p89, %s90, %s91
    %p95 = pneg %p89
    %p96 = scmp.eq.s32.totalorder %s14, 3
    %p97 = por %p95, %p96
    %p98 = scmp.ne.s32.totalorder %s90, %s93
    %p99 = scmp.eq.s32.totalorder %s14, 0
    %p100 = por %p98, %p99
    %p101 = scmp.ne.s32.totalorder %s90, %s93
    %p102 = scmp.eq.s32.totalorder %s19, 3
    %p103 = por %p101, %p102
    %p104 = scmp.ne.s32.totalorder %s93, %s94
    %p105 = scmp.eq.s32.totalorder %s19, 0
    %p106 = por %p104, %p105
    %p107 = scmp.ne.s32.totalorder %s93, %s94
    %p108 = scmp.eq.s32.totalorder %s20, 3
    %p109 = por %p107, %p108
    %p111 = scmp.ne.s32.totalorder %s94, %s110
    %p112 = scmp.eq.s32.totalorder %s20, 0
    %p113 = por %p111, %p112
    %s114 = ssub.s32 %s21, %s33
    %p115 = scmp.eq.s32.totalorder %s114, 0
    %s117 = sadd.s32 %s116, 1
    %s118 = scalar_select %p115, %s116, %s117
    %p121 = pneg %p115
    %p122 = scmp.eq.s32.totalorder %s14, 3
    %p123 = por %p121, %p122
    %p124 = scmp.ne.s32.totalorder %s116, %s119
    %p125 = scmp.eq.s32.totalorder %s14, 0
    %p126 = por %p124, %p125
    %p127 = scmp.ne.s32.totalorder %s116, %s119
    %p128 = scmp.eq.s32.totalorder %s19, 3
    %p129 = por %p127, %p128
    %p130 = scmp.ne.s32.totalorder %s119, %s120
    %p131 = scmp.eq.s32.totalorder %s19, 0
    %p132 = por %p130, %p131
    %p133 = scmp.ne.s32.totalorder %s119, %s120
    %p134 = scmp.eq.s32.totalorder %s20, 3
    %p135 = por %p133, %p134
    %p137 = scmp.ne.s32.totalorder %s120, %s136
    %p138 = scmp.eq.s32.totalorder %s20, 0
    %p139 = por %p137, %p138
    %s141 = sadd.s32 %s140, 1
    %p144 = scmp.eq.s32.totalorder %s14, 3
    %p145 = scmp.ne.s32.totalorder %s140, %s142
    %p146 = scmp.eq.s32.totalorder %s14, 0
    %p147 = por %p145, %p146
    %p148 = scmp.ne.s32.totalorder %s140, %s142
    %p149 = scmp.eq.s32.totalorder %s19, 3
    %p150 = por %p148, %p149
    %p151 = scmp.ne.s32.totalorder %s142, %s143
    %p152 = scmp.eq.s32.totalorder %s19, 0
    %p153 = por %p151, %p152
    %p154 = scmp.ne.s32.totalorder %s142, %s143
    %p155 = scmp.eq.s32.totalorder %s20, 3
    %p156 = por %p154, %p155
    %p158 = scmp.ne.s32.totalorder %s143, %s157
    %p159 = scmp.eq.s32.totalorder %s20, 0
    %p160 = por %p158, %p159
    %s162 = sadd.s32 %s161, 1
    %p165 = scmp.eq.s32.totalorder %s14, 3
    %p166 = scmp.ne.s32.totalorder %s161, %s163
    %p167 = scmp.eq.s32.totalorder %s14, 0
    %p168 = por %p166, %p167
    %p169 = scmp.ne.s32.totalorder %s161, %s163
    %p170 = scmp.eq.s32.totalorder %s19, 3
    %p171 = por %p169, %p170
    %p172 = scmp.ne.s32.totalorder %s163, %s164
    %p173 = scmp.eq.s32.totalorder %s19, 0
    %p174 = por %p172, %p173
    %p175 = scmp.ne.s32.totalorder %s163, %s164
    %p176 = scmp.eq.s32.totalorder %s20, 3
    %p177 = por %p175, %p176
    %p179 = scmp.ne.s32.totalorder %s164, %s178
    %p180 = scmp.eq.s32.totalorder %s20, 0
    %p181 = por %p179, %p180
    %s183 = sadd.s32 %s182, 1
    %p186 = scmp.eq.s32.totalorder %s14, 3
    %p187 = scmp.ne.s32.totalorder %s182, %s184
    %p188 = scmp.eq.s32.totalorder %s14, 0
    %p189 = por %p187, %p188
    %p190 = scmp.ne.s32.totalorder %s182, %s184
    %p191 = scmp.eq.s32.totalorder %s19, 3
    %p192 = por %p190, %p191
    %p193 = scmp.ne.s32.totalorder %s184, %s185
    %p194 = scmp.eq.s32.totalorder %s19, 0
    %p195 = por %p193, %p194
    %p196 = scmp.ne.s32.totalorder %s184, %s185
    %p197 = scmp.eq.s32.totalorder %s20, 3
    %p198 = por %p196, %p197
    %p200 = scmp.ne.s32.totalorder %s185, %s199
    %p201 = scmp.eq.s32.totalorder %s20, 0
    %p202 = por %p200, %p201
    %s204 = sadd.s32 %s203, 1
    %p207 = scmp.eq.s32.totalorder %s14, 3
    %p208 = scmp.ne.s32.totalorder %s203, %s205
    %p209 = scmp.eq.s32.totalorder %s14, 0
    %p210 = por %p208, %p209
    %p211 = scmp.ne.s32.totalorder %s203, %s205
    %p212 = scmp.eq.s32.totalorder %s19, 3
    %p213 = por %p211, %p212
    %p214 = scmp.ne.s32.totalorder %s205, %s206
    %p215 = scmp.eq.s32.totalorder %s19, 0
    %p216 = por %p214, %p215
    %p217 = scmp.ne.s32.totalorder %s205, %s206
    %p218 = scmp.eq.s32.totalorder %s20, 3
    %p219 = por %p217, %p218
    %p221 = scmp.ne.s32.totalorder %s206, %s220
    %p222 = scmp.eq.s32.totalorder %s20, 0
    %p223 = por %p221, %p222
    %s224 = ssub.s32 %s21, %s33
    %s225 = ssub.s32 %s22, %s29
    %s226 = sor.u32 %s224, %s225
    %p227 = scmp.eq.s32.totalorder %s226, 0
    %s229 = sadd.s32 %s228, 1
    %s230 = scalar_select %p227, %s228, %s229
    %p233 = pneg %p227
    %p234 = scmp.eq.s32.totalorder %s14, 3
    %p235 = por %p233, %p234
    %p236 = scmp.ne.s32.totalorder %s228, %s231
    %p237 = scmp.eq.s32.totalorder %s14, 0
    %p238 = por %p236, %p237
    %p239 = scmp.ne.s32.totalorder %s228, %s231
    %p240 = scmp.eq.s32.totalorder %s19, 3
    %p241 = por %p239, %p240
    %p242 = scmp.ne.s32.totalorder %s231, %s232
    %p243 = scmp.eq.s32.totalorder %s19, 0
    %p244 = por %p242, %p243
    %p245 = scmp.ne.s32.totalorder %s231, %s232
    %p246 = scmp.eq.s32.totalorder %s20, 3
    %p247 = por %p245, %p246
    %p249 = scmp.ne.s32.totalorder %s232, %s248
    %p250 = scmp.eq.s32.totalorder %s20, 0
    %p251 = por %p249, %p250
    %p252 = scmp.le.s32.totalorder 1, %s14
    %p253 = scmp.lt.s32.totalorder %s14, 5
    %p254 = pnand %p252, %p253
    %p255 = pneg %p254
    // Predicated region
    $region9: #{spade_pallas.1} parent=5 // pred_check
      _
    $region10: #{spade_pallas.1} parent=5 // pred_check_branch
      %257 = sbr.rel (%p254) target = $region12
    $region11: #{spade_pallas.1} parent=5 // pred_region
      %s258 = ssub.s32 %s14, 1
      // Predicated region
      $region13: #{spade_pallas.1} parent=11 // pred_check
        %p259 = pneg %p153
      $region14: #{spade_pallas.1} parent=11 // pred_check_branch
        %261 = sbr.rel (%p259) target = $region16
      $region15: #{spade_pallas.1} parent=11 // pred_region
        _
      $region16: #{spade_pallas.1} parent=11 // pred_fallthru
        _
      // Predicated region
      $region17: #{spade_pallas.1} parent=11 // pred_check
        %p262 = pneg %p174
      $region18: #{spade_pallas.1} parent=11 // pred_check_branch
        %264 = sbr.rel (%p262) target = $region20
      $region19: #{spade_pallas.1} parent=11 // pred_region
        _
      $region20: #{spade_pallas.1} parent=11 // pred_fallthru
        _
      // Predicated region
      $region21: #{spade_pallas.1} parent=11 // pred_check
        %p265 = pneg %p195
      $region22: #{spade_pallas.1} parent=11 // pred_check_branch
        %267 = sbr.rel (%p265) target = $region24
      $region23: #{spade_pallas.1} parent=11 // pred_region
        _
      $region24: #{spade_pallas.1} parent=11 // pred_fallthru
        _
      // Predicated region
      $region25: #{spade_pallas.1} parent=11 // pred_check
        %p268 = pneg %p216
      $region26: #{spade_pallas.1} parent=11 // pred_check_branch
        %270 = sbr.rel (%p268) target = $region28
      $region27: #{spade_pallas.1} parent=11 // pred_region
        _
      $region28: #{spade_pallas.1} parent=11 // pred_fallthru
        _
    $region12: #{spade_pallas.1} parent=5 // pred_fallthru
      _
    %p271 = scmp.lt.s32.totalorder %s14, 4
    // Predicated region
    $region29: #{spade_pallas.1} parent=5 // pred_check
      %p272 = pneg %p271
    $region30: #{spade_pallas.1} parent=5 // pred_check_branch
      %274 = sbr.rel (%p272) target = $region32
    $region31: #{spade_pallas.1} parent=5 // pred_region
      // Predicated region
      $region33: #{spade_pallas.1} parent=31 // pred_check
        %p275 = pneg %p46
      $region34: #{spade_pallas.1} parent=31 // pred_check_branch
        %277 = sbr.rel (%p275) target = $region36
      $region35: #{spade_pallas.1} parent=31 // pred_region
        %p278 = scmp.lt.s32.totalorder %s21, 1
        %s279 = scalar_select %p278, %s21, 1
        %s280 = smul.addr %s279, 60
        %s281 = smul.addr %s280, 4
        %s282 = scalar_lea.vmem %s0, %s281
      $region36: #{spade_pallas.1} parent=31 // pred_fallthru
        _
      // Predicated region
      $region37: #{spade_pallas.1} parent=31 // pred_check
        %p283 = pneg %p74
      $region38: #{spade_pallas.1} parent=31 // pred_check_branch
        %285 = sbr.rel (%p283) target = $region40
      $region39: #{spade_pallas.1} parent=31 // pred_region
        %s286 = smul.u32 8, %s22
        %p287 = scmp.lt.s32.totalorder %s21, 1
        %s288 = scalar_select %p287, %s21, 1
        %p289 = scmp.lt.s32.totalorder %s286, 15
        %s290 = scalar_select %p289, %s286, 15
        %s291 = smul.addr %s290, 2
        %s292 = smul.addr %s288, 32
        %s293 = sadd.s32 %s291, %s292
        %s294 = smul.addr %s293, 8
        %s295 = scalar_lea.vmem %s1, %s294
        %s296 = smul.u32 8, %s22
      $region40: #{spade_pallas.1} parent=31 // pred_fallthru
        _
      // Predicated region
      $region41: #{spade_pallas.1} parent=31 // pred_check
        %p297 = pneg %p100
      $region42: #{spade_pallas.1} parent=31 // pred_check_branch
        %299 = sbr.rel (%p297) target = $region44
      $region43: #{spade_pallas.1} parent=31 // pred_region
        %p300 = scmp.lt.s32.totalorder %s21, 1
        %s301 = scalar_select %p300, %s21, 1
        %s302 = scalar_lea.vmem %s2, %s301
      $region44: #{spade_pallas.1} parent=31 // pred_fallthru
        _
      // Predicated region
      $region45: #{spade_pallas.1} parent=31 // pred_check
        %p303 = pneg %p126
      $region46: #{spade_pallas.1} parent=31 // pred_check_branch
        %305 = sbr.rel (%p303) target = $region48
      $region47: #{spade_pallas.1} parent=31 // pred_region
        %p306 = scmp.lt.s32.totalorder %s21, 1
        %s307 = scalar_select %p306, %s21, 1
        %s308 = scalar_lea.vmem %s3, %s307
      $region48: #{spade_pallas.1} parent=31 // pred_fallthru
        _
    $region32: #{spade_pallas.1} parent=5 // pred_fallthru
      _
    %p309 = scmp.le.s32.totalorder 1, %s14
    %p310 = scmp.lt.s32.totalorder %s14, 5
    %p311 = pnand %p309, %p310
    %p312 = pneg %p311
    // Predicated region
    $region49: #{spade_pallas.1} parent=5 // pred_check
      _
    $region50: #{spade_pallas.1} parent=5 // pred_check_branch
      %314 = sbr.rel (%p311) target = $region52
    $region51: #{spade_pallas.1} parent=5 // pred_region
      %s315 = ssub.s32 %s14, 1
      %p316 = scmp.lt.s32.totalorder %s23, 1
      %s317 = scalar_select %p316, %s23, 1
      %s318 = smul.addr %s317, 60
      %s319 = smul.addr %s318, 4
      %s320 = scalar_lea.vmem %s0, %s319
      %p321 = pneg %p52
      %p322 = pneg %p49
      %s323 = smul.u32 8, %s24
      %p324 = scmp.lt.s32.totalorder %s23, 1
      %s325 = scalar_select %p324, %s23, 1
      %p326 = scmp.lt.s32.totalorder %s323, 15
      %s327 = scalar_select %p326, %s323, 15
      %s328 = smul.addr %s327, 2
      %s329 = smul.addr %s325, 32
      %s330 = sadd.s32 %s328, %s329
      %s331 = smul.addr %s330, 8
      %s332 = scalar_lea.vmem %s1, %s331
      %p333 = pneg %p80
      %p334 = pneg %p77
      %p335 = scmp.lt.s32.totalorder %s23, 1
      %s336 = scalar_select %p335, %s23, 1
      %s337 = scalar_lea.vmem %s2, %s336
      %p338 = pneg %p106
      %p339 = pneg %p103
      %p340 = scmp.lt.s32.totalorder %s23, 1
      %s341 = scalar_select %p340, %s23, 1
      %s342 = scalar_lea.vmem %s3, %s341
      %p343 = pneg %p132
      %p344 = pneg %p129
      %p345 = pneg %p153
      %p346 = pneg %p150
      %p347 = pneg %p174
      %p348 = pneg %p171
      %p349 = pneg %p195
      %p350 = pneg %p192
      %p351 = pneg %p216
      %p352 = pneg %p213
      %p353 = pneg %p244
      %p354 = pneg %p241
      %s355 = smul.u32 8, %s24
      %p356 = scmp.lt.s32.totalorder %s23, 1
      %s357 = scalar_select %p356, %s23, 1
      %p358 = scmp.lt.s32.totalorder %s355, 15
      %s359 = scalar_select %p358, %s355, 15
      %s360 = smul.addr %s359, 2
      %s361 = smul.addr %s357, 32
      %s362 = sadd.s32 %s360, %s361
      %s363 = smul.addr %s362, 8
      %s364 = scalar_lea.vmem %s8, %s363
      %p365 = scmp.lt.s32.totalorder %s23, 1
      %s366 = scalar_select %p365, %s23, 1
      %s367 = smul.addr %s366, 60
      %s368 = smul.addr %s367, 4
      %s369 = scalar_lea.vmem %s0, %s368
      %s370 = smul.u32 8, %s24
      %p371 = scmp.lt.s32.totalorder %s23, 1
      %s372 = scalar_select %p371, %s23, 1
      %p373 = scmp.lt.s32.totalorder %s370, 15
      %s374 = scalar_select %p373, %s370, 15
      %s375 = smul.addr %s374, 2
      %s376 = smul.addr %s372, 32
      %s377 = sadd.s32 %s375, %s376
      %s378 = smul.addr %s377, 8
      %s379 = scalar_lea.vmem %s1, %s378
      %s380 = smul.u32 8, %s24
      %p381 = scmp.lt.s32.totalorder %s23, 1
      %s382 = scalar_select %p381, %s23, 1
      %s383 = scalar_lea.vmem %s2, %s382
      %p384 = scmp.lt.s32.totalorder %s23, 1
      %s385 = scalar_select %p384, %s23, 1
      %s386 = scalar_lea.vmem %s3, %s385
      %s387 = smul.u32 8, %s24
      %p388 = scmp.lt.s32.totalorder %s23, 1
      %s389 = scalar_select %p388, %s23, 1
      %p390 = scmp.lt.s32.totalorder %s387, 15
      %s391 = scalar_select %p390, %s387, 15
      %s392 = smul.addr %s391, 2
      %s393 = smul.addr %s389, 32
      %s394 = sadd.s32 %s392, %s393
      %s395 = smul.addr %s394, 8
      %s396 = scalar_lea.vmem %s8, %s395
      %s397 = smul.u32 8, %s24
      %s399 = smul.u32 %s24, 8
      %s400 = smul.u32 %s399, 3
      %s401 = smul.addr %s400, 4
      %s402 = scalar_lea.vmem %s369, %s401
      %v403 = vld [vmem:[%s402] sm:$0xf]
      %v404 = vld [vmem:[%s402 + $0x4] sm:$0xf]
      %v405 = vld [vmem:[%s402 + $0x8] sm:$0x1]
      %v406 = vld [vmem:[%s402 + $0xc] sm:$0xf]
      %v407 = vld [vmem:[%s402 + $0x10] sm:$0xf]
      %v408 = vld [vmem:[%s402 + $0x14] sm:$0x1]
      %v409 = vld [vmem:[%s402 + $0x18] sm:$0xf]
      %v410 = vld [vmem:[%s402 + $0x1c] sm:$0xf]
      %v411 = vld [vmem:[%s402 + $0x20] sm:$0x1]
      %v412 = vld [vmem:[%s402 + $0x24] sm:$0xf]
      %v413 = vld [vmem:[%s402 + $0x28] sm:$0xf]
      %v414 = vld [vmem:[%s402 + $0x2c] sm:$0x1]
      %v415 = vld [vmem:[%s402 + $0x30] sm:$0xf]
      %v416 = vld [vmem:[%s402 + $0x34] sm:$0xf]
      %v417 = vld [vmem:[%s402 + $0x38] sm:$0x1]
      %v418 = vld [vmem:[%s402 + $0x3c] sm:$0xf]
      %v419 = vld [vmem:[%s402 + $0x40] sm:$0xf]
      %v420 = vld [vmem:[%s402 + $0x44] sm:$0x1]
      %v421 = vld [vmem:[%s402 + $0x48] sm:$0xf]
      %v422 = vld [vmem:[%s402 + $0x4c] sm:$0xf]
      %v423 = vld [vmem:[%s402 + $0x50] sm:$0x1]
      %v424 = vld [vmem:[%s402 + $0x54] sm:$0xf]
      %v425 = vld [vmem:[%s402 + $0x58] sm:$0xf]
      %v426 = vld [vmem:[%s402 + $0x5c] sm:$0x1]
      %v427 = vld [vmem:[%s402 + $0x60] sm:$0xf]
      %v428 = vld [vmem:[%s402 + $0x64] sm:$0xf]
      %v429 = vld [vmem:[%s402 + $0x68] sm:$0x1]
      %v430 = vld [vmem:[%s402 + $0x6c] sm:$0xf]
      %v431 = vld [vmem:[%s402 + $0x70] sm:$0xf]
      %v432 = vld [vmem:[%s402 + $0x74] sm:$0x1]
      %v433 = vld [vmem:[%s402 + $0x78] sm:$0xf]
      %v434 = vld [vmem:[%s402 + $0x7c] sm:$0xf]
      %v435 = vld [vmem:[%s402 + $0x80] sm:$0x1]
      %v436 = vld [vmem:[%s402 + $0x84] sm:$0xf]
      %v437 = vld [vmem:[%s402 + $0x88] sm:$0xf]
      %v438 = vld [vmem:[%s402 + $0x8c] sm:$0x1]
      %v439 = vld [vmem:[%s4] sm:$0x3]
      %vm440 = vsmask.f32 3328
      %vm441 = vsmask.f32 7440
      %vm442 = vmor %vm440, %vm441
      %v444 = vshrl.u32 %v403, 16
      %v446 = vrot.slane %v444, 4
      %v447 = vshll.u32 %v403, 16
      %v449 = vrot.slane %v447, 5
      %v450 = vor.u32 %v446, %v449
      %v451 = vrot.slane %v450, 4
      %v453 = vshll.u32 %v404, 16
      %v455 = vrot.slane %v453, 5
      %v456 = vsel %vm442, %v451, %v455
      %v457 = vshrl.u32 %v404, 16
      %v459 = vrot.slane %v457, 4
      %v460 = vor.u32 %v459, %v455
      %v461 = vrot.slane %v460, 4
      %v463 = vshll.u32 %v405, 16
      %v465 = vrot.slane %v463, 5
      %v466 = vsel %vm442, %v461, %v465
      %v468 = vshrl.u32 %v406, 16
      %v470 = vrot.slane %v468, 4
      %v471 = vshll.u32 %v406, 16
      %v473 = vrot.slane %v471, 5
      %v474 = vor.u32 %v470, %v473
      %v475 = vrot.slane %v474, 4
      %v477 = vshll.u32 %v407, 16
      %v479 = vrot.slane %v477, 5
      %v480 = vsel %vm442, %v475, %v479
      %v481 = vshrl.u32 %v407, 16
      %v483 = vrot.slane %v481, 4
      %v484 = vor.u32 %v483, %v479
      %v485 = vrot.slane %v484, 4
      %v487 = vshll.u32 %v408, 16
      %v489 = vrot.slane %v487, 5
      %v490 = vsel %vm442, %v485, %v489
      %v492 = vshrl.u32 %v409, 16
      %v494 = vrot.slane %v492, 4
      %v495 = vshll.u32 %v409, 16
      %v497 = vrot.slane %v495, 5
      %v498 = vor.u32 %v494, %v497
      %v499 = vrot.slane %v498, 4
      %v501 = vshll.u32 %v410, 16
      %v503 = vrot.slane %v501, 5
      %v504 = vsel %vm442, %v499, %v503
      %v505 = vshrl.u32 %v410, 16
      %v507 = vrot.slane %v505, 4
      %v508 = vor.u32 %v507, %v503
      %v509 = vrot.slane %v508, 4
      %v511 = vshll.u32 %v411, 16
      %v513 = vrot.slane %v511, 5
      %v514 = vsel %vm442, %v509, %v513
      %v516 = vshrl.u32 %v412, 16
      %v518 = vrot.slane %v516, 4
      %v519 = vshll.u32 %v412, 16
      %v521 = vrot.slane %v519, 5
      %v522 = vor.u32 %v518, %v521
      %v523 = vrot.slane %v522, 4
      %v525 = vshll.u32 %v413, 16
      %v527 = vrot.slane %v525, 5
      %v528 = vsel %vm442, %v523, %v527
      %v529 = vshrl.u32 %v413, 16
      %v531 = vrot.slane %v529, 4
      %v532 = vor.u32 %v531, %v527
      %v533 = vrot.slane %v532, 4
      %v535 = vshll.u32 %v414, 16
      %v537 = vrot.slane %v535, 5
      %v538 = vsel %vm442, %v533, %v537
      %v540 = vshrl.u32 %v415, 16
      %v542 = vrot.slane %v540, 4
      %v543 = vshll.u32 %v415, 16
      %v545 = vrot.slane %v543, 5
      %v546 = vor.u32 %v542, %v545
      %v547 = vrot.slane %v546, 4
      %v549 = vshll.u32 %v416, 16
      %v551 = vrot.slane %v549, 5
      %v552 = vsel %vm442, %v547, %v551
      %v553 = vshrl.u32 %v416, 16
      %v555 = vrot.slane %v553, 4
      %v556 = vor.u32 %v555, %v551
      %v557 = vrot.slane %v556, 4
      %v559 = vshll.u32 %v417, 16
      %v561 = vrot.slane %v559, 5
      %v562 = vsel %vm442, %v557, %v561
      %v564 = vshrl.u32 %v418, 16
      %v566 = vrot.slane %v564, 4
      %v567 = vshll.u32 %v418, 16
      %v569 = vrot.slane %v567, 5
      %v570 = vor.u32 %v566, %v569
      %v571 = vrot.slane %v570, 4
      %v573 = vshll.u32 %v419, 16
      %v575 = vrot.slane %v573, 5
      %v576 = vsel %vm442, %v571, %v575
      %v577 = vshrl.u32 %v419, 16
      %v579 = vrot.slane %v577, 4
      %v580 = vor.u32 %v579, %v575
      %v581 = vrot.slane %v580, 4
      %v583 = vshll.u32 %v420, 16
      %v585 = vrot.slane %v583, 5
      %v586 = vsel %vm442, %v581, %v585
      %v588 = vshrl.u32 %v421, 16
      %v590 = vrot.slane %v588, 4
      %v591 = vshll.u32 %v421, 16
      %v593 = vrot.slane %v591, 5
      %v594 = vor.u32 %v590, %v593
      %v595 = vrot.slane %v594, 4
      %v597 = vshll.u32 %v422, 16
      %v599 = vrot.slane %v597, 5
      %v600 = vsel %vm442, %v595, %v599
      %v601 = vshrl.u32 %v422, 16
      %v603 = vrot.slane %v601, 4
      %v604 = vor.u32 %v603, %v599
      %v605 = vrot.slane %v604, 4
      %v607 = vshll.u32 %v423, 16
      %v609 = vrot.slane %v607, 5
      %v610 = vsel %vm442, %v605, %v609
      %v612 = vshrl.u32 %v424, 16
      %v614 = vrot.slane %v612, 4
      %v615 = vshll.u32 %v424, 16
      %v617 = vrot.slane %v615, 5
      %v618 = vor.u32 %v614, %v617
      %v619 = vrot.slane %v618, 4
      %v621 = vshll.u32 %v425, 16
      %v623 = vrot.slane %v621, 5
      %v624 = vsel %vm442, %v619, %v623
      %v625 = vshrl.u32 %v425, 16
      %v627 = vrot.slane %v625, 4
      %v628 = vor.u32 %v627, %v623
      %v629 = vrot.slane %v628, 4
      %v631 = vshll.u32 %v426, 16
      %v633 = vrot.slane %v631, 5
      %v634 = vsel %vm442, %v629, %v633
      %v636 = vshrl.u32 %v427, 16
      %v638 = vrot.slane %v636, 4
      %v639 = vshll.u32 %v427, 16
      %v641 = vrot.slane %v639, 5
      %v642 = vor.u32 %v638, %v641
      %v643 = vrot.slane %v642, 4
      %v645 = vshll.u32 %v428, 16
      %v647 = vrot.slane %v645, 5
      %v648 = vsel %vm442, %v643, %v647
      %v649 = vshrl.u32 %v428, 16
      %v651 = vrot.slane %v649, 4
      %v652 = vor.u32 %v651, %v647
      %v653 = vrot.slane %v652, 4
      %v655 = vshll.u32 %v429, 16
      %v657 = vrot.slane %v655, 5
      %v658 = vsel %vm442, %v653, %v657
      %v660 = vshrl.u32 %v430, 16
      %v662 = vrot.slane %v660, 4
      %v663 = vshll.u32 %v430, 16
      %v665 = vrot.slane %v663, 5
      %v666 = vor.u32 %v662, %v665
      %v667 = vrot.slane %v666, 4
      %v669 = vshll.u32 %v431, 16
      %v671 = vrot.slane %v669, 5
      %v672 = vsel %vm442, %v667, %v671
      %v673 = vshrl.u32 %v431, 16
      %v675 = vrot.slane %v673, 4
      %v676 = vor.u32 %v675, %v671
      %v677 = vrot.slane %v676, 4
      %v679 = vshll.u32 %v432, 16
      %v681 = vrot.slane %v679, 5
      %v682 = vsel %vm442, %v677, %v681
      %s683 = scalar_lea.vmem %s4, 2
      %v684 = vld [vmem:[%s683] sm:$0x3]
      %v685 = vunpack.c.l.b16 %v456
      %v686 = vunpack.c.l.b16 %v466
      %v687 = vunpack.c.l.b16 %v480
      %v688 = vunpack.c.l.b16 %v490
      %v689 = vunpack.c.l.b16 %v504
      %v690 = vunpack.c.l.b16 %v514
      %v691 = vunpack.c.l.b16 %v528
      %v692 = vunpack.c.l.b16 %v538
      %v693 = vunpack.c.l.b16 %v552
      %v694 = vunpack.c.l.b16 %v562
      %v695 = vunpack.c.l.b16 %v576
      %v696 = vunpack.c.l.b16 %v586
      %v697 = vunpack.c.l.b16 %v600
      %v698 = vunpack.c.l.b16 %v610
      %v699 = vunpack.c.l.b16 %v624
      %v700 = vunpack.c.l.b16 %v634
      %v701 = vunpack.c.l.b16 %v648
      %v702 = vunpack.c.l.b16 %v658
      %v703 = vunpack.c.l.b16 %v672
      %v704 = vunpack.c.l.b16 %v682
      %v705 = vpack.c.b16 %v686, %v685
      %v706 = vpack.c.b16 %v688, %v687
      %v707 = vpack.c.b16 %v690, %v689
      %v708 = vpack.c.b16 %v692, %v691
      %v709 = vpack.c.b16 %v694, %v693
      %v710 = vpack.c.b16 %v696, %v695
      %v711 = vpack.c.b16 %v698, %v697
      %v712 = vpack.c.b16 %v700, %v699
      %v713 = vpack.c.b16 %v702, %v701
      %v714 = vpack.c.b16 %v704, %v703
      %vm715 = vcmask 31744
      %v717 = vsel %vm715, %v705, 0
      %v720 = vsel %vm715, %v706, 0
      %v723 = vsel %vm715, %v707, 0
      %v726 = vsel %vm715, %v708, 0
      %v729 = vsel %vm715, %v709, 0
      %v732 = vsel %vm715, %v710, 0
      %v735 = vsel %vm715, %v711, 0
      %v738 = vsel %vm715, %v712, 0
      %v741 = vsel %vm715, %v713, 0
      %v744 = vsel %vm715, %v714, 0
      %vm746 = vcmask 1041408
      %v748 = vsel %vm746, %v684, 0
      %750 = vmatprep.subr.bf16.mxu0 0
      %751 = vmatpush1.bf16.msra.mxu0 0
      %752 = vmatprep.subr.bf16.mxu0 0
      %753 = vmatpush1.bf16.msra.mxu0 0
      %754 = vmatprep.subr.bf16.mxu0 0
      %755 = vmatpush1.bf16.msra.mxu0 0
      %756 = vmatprep.subr.bf16.mxu0 0
      %757 = vmatpush1.bf16.msra.mxu0 0
      %758 = vmatprep.subr.bf16.mxu0 0
      %759 = vmatpush1.bf16.msra.mxu0 0
      %760 = vmatprep.subr.bf16.mxu0 0
      %761 = vmatpush1.bf16.msra.mxu0 0
      %762 = vmatprep.subr.bf16.mxu0 0
      %763 = vmatpush1.bf16.msra.mxu0 0
      %764 = vmatprep.subr.bf16.mxu0 0
      %765 = vmatpush1.bf16.msra.mxu0 %v748
      %766 = vmatprep.subr.bf16.mxu0 0
      %767 = vmatpush2.bf16.msra.mxu0 0
      %768 = vmatprep.subr.bf16.mxu0 0
      %769 = vmatpush2.bf16.msra.mxu0 0
      %770 = vmatprep.subr.bf16.mxu0 0
      %771 = vmatpush2.bf16.msra.mxu0 0
      %772 = vmatprep.subr.bf16.mxu0 0
      %773 = vmatpush2.bf16.msra.mxu0 0
      %774 = vmatprep.subr.bf16.mxu0 0
      %775 = vmatpush2.bf16.msra.mxu0 0
      %776 = vmatprep.subr.bf16.mxu0 0
      %777 = vmatpush2.bf16.msra.mxu0 0
      %778 = vmatprep.subr.bf16.mxu0 0
      %779 = vmatpush2.bf16.msra.mxu0 0
      %780 = vmatprep.subr.bf16.mxu0 0
      %781 = vmatpush2.bf16.msra.mxu0 0
      %782 = vmatprep.mubr.bf16.mxu0 0
      %783 = vmatmul.mubr.bf16.gmra.mxu0 %v717
      %v784 = vpop.f32.mrf.mxu0
      %v785 = vadd.f32 0.0, %v784
      %v786 = vpop.f32.mrf.mxu0
      %v787 = vpop.f32.mrf.mxu0
      %v788 = vadd.f32 0.0, %v787
      %v789 = vpop.f32.mrf.mxu0
      %790 = vmatprep.mubr.bf16.mxu0 0
      %791 = vmatmul.mubr.bf16.gmra.mxu0 %v720
      %v792 = vpop.f32.mrf.mxu0
      %v793 = vadd.f32 0.0, %v792
      %v794 = vpop.f32.mrf.mxu0
      %v795 = vpop.f32.mrf.mxu0
      %v796 = vadd.f32 0.0, %v795
      %v797 = vpop.f32.mrf.mxu0
      %798 = vmatprep.mubr.bf16.mxu0 0
      %799 = vmatmul.mubr.bf16.gmra.mxu0 %v723
      %v800 = vpop.f32.mrf.mxu0
      %v801 = vadd.f32 0.0, %v800
      %v802 = vpop.f32.mrf.mxu0
      %v803 = vpop.f32.mrf.mxu0
      %v804 = vadd.f32 0.0, %v803
      %v805 = vpop.f32.mrf.mxu0
      %806 = vmatprep.mubr.bf16.mxu0 0
      %807 = vmatmul.mubr.bf16.gmra.mxu0 %v726
      %v808 = vpop.f32.mrf.mxu0
      %v809 = vadd.f32 0.0, %v808
      %v810 = vpop.f32.mrf.mxu0
      %v811 = vpop.f32.mrf.mxu0
      %v812 = vadd.f32 0.0, %v811
      %v813 = vpop.f32.mrf.mxu0
      %814 = vmatprep.mubr.bf16.mxu0 0
      %815 = vmatmul.mubr.bf16.gmra.mxu0 %v729
      %v816 = vpop.f32.mrf.mxu0
      %v817 = vadd.f32 0.0, %v816
      %v818 = vpop.f32.mrf.mxu0
      %v819 = vpop.f32.mrf.mxu0
      %v820 = vadd.f32 0.0, %v819
      %v821 = vpop.f32.mrf.mxu0
      %822 = vmatprep.mubr.bf16.mxu0 0
      %823 = vmatmul.mubr.bf16.gmra.mxu0 %v732
      %v824 = vpop.f32.mrf.mxu0
      %v825 = vadd.f32 0.0, %v824
      %v826 = vpop.f32.mrf.mxu0
      %v827 = vpop.f32.mrf.mxu0
      %v828 = vadd.f32 0.0, %v827
      %v829 = vpop.f32.mrf.mxu0
      %830 = vmatprep.mubr.bf16.mxu0 0
      %831 = vmatmul.mubr.bf16.gmra.mxu0 %v735
      %v832 = vpop.f32.mrf.mxu0
      %v833 = vadd.f32 0.0, %v832
      %v834 = vpop.f32.mrf.mxu0
      %v835 = vpop.f32.mrf.mxu0
      %v836 = vadd.f32 0.0, %v835
      %v837 = vpop.f32.mrf.mxu0
      %838 = vmatprep.mubr.bf16.mxu0 0
      %839 = vmatmul.mubr.bf16.gmra.mxu0 %v738
      %v840 = vpop.f32.mrf.mxu0
      %v841 = vadd.f32 0.0, %v840
      %v842 = vpop.f32.mrf.mxu0
      %v843 = vpop.f32.mrf.mxu0
      %v844 = vadd.f32 0.0, %v843
      %v845 = vpop.f32.mrf.mxu0
      %846 = vmatprep.mubr.bf16.mxu0 0
      %847 = vmatmul.mubr.bf16.gmra.mxu0 %v741
      %v848 = vpop.f32.mrf.mxu0
      %v849 = vadd.f32 0.0, %v848
      %v850 = vpop.f32.mrf.mxu0
      %v851 = vpop.f32.mrf.mxu0
      %v852 = vadd.f32 0.0, %v851
      %v853 = vpop.f32.mrf.mxu0
      %854 = vmatprep.mubr.bf16.mxu0 0
      %855 = vmatmul.mubr.bf16.gmra.mxu0 %v744
      %v856 = vpop.f32.mrf.mxu0
      %v857 = vadd.f32 0.0, %v856
      %v858 = vpop.f32.mrf.mxu0
      %v859 = vpop.f32.mrf.mxu0
      %v860 = vadd.f32 0.0, %v859
      %v861 = vpop.f32.mrf.mxu0
      %862 = vdwg.mxu0
      %v883 = vunpack.c.l.b16 %v403
      %v884 = vunpack.c.l.b16 %v404
      %v885 = vunpack.c.l.b16 %v406
      %v886 = vunpack.c.l.b16 %v407
      %v887 = vunpack.c.l.b16 %v409
      %v888 = vunpack.c.l.b16 %v410
      %v889 = vunpack.c.l.b16 %v412
      %v890 = vunpack.c.l.b16 %v413
      %v891 = vunpack.c.l.b16 %v415
      %v892 = vunpack.c.l.b16 %v416
      %v893 = vunpack.c.l.b16 %v418
      %v894 = vunpack.c.l.b16 %v419
      %v895 = vunpack.c.l.b16 %v421
      %v896 = vunpack.c.l.b16 %v422
      %v897 = vunpack.c.l.b16 %v424
      %v898 = vunpack.c.l.b16 %v425
      %v899 = vunpack.c.l.b16 %v427
      %v900 = vunpack.c.l.b16 %v428
      %v901 = vunpack.c.l.b16 %v430
      %v902 = vunpack.c.l.b16 %v431
      %v903 = vpack.c.b16 %v884, %v883
      %v904 = vpack.c.b16 %v886, %v885
      %v905 = vpack.c.b16 %v888, %v887
      %v906 = vpack.c.b16 %v890, %v889
      %v907 = vpack.c.b16 %v892, %v891
      %v908 = vpack.c.b16 %v894, %v893
      %v909 = vpack.c.b16 %v896, %v895
      %v910 = vpack.c.b16 %v898, %v897
      %v911 = vpack.c.b16 %v900, %v899
      %v912 = vpack.c.b16 %v902, %v901
      %v914 = vsel %vm715, %v903, 0
      %v917 = vsel %vm715, %v904, 0
      %v920 = vsel %vm715, %v905, 0
      %v923 = vsel %vm715, %v906, 0
      %v926 = vsel %vm715, %v907, 0
      %v929 = vsel %vm715, %v908, 0
      %v932 = vsel %vm715, %v909, 0
      %v935 = vsel %vm715, %v910, 0
      %v938 = vsel %vm715, %v911, 0
      %v941 = vsel %vm715, %v912, 0
      %v944 = vsel %vm746, %v439, 0
      %946 = vmatprep.subr.bf16.mxu0 0
      %947 = vmatpush1.bf16.msra.mxu0 0
      %948 = vmatprep.subr.bf16.mxu0 0
      %949 = vmatpush1.bf16.msra.mxu0 0
      %950 = vmatprep.subr.bf16.mxu0 0
      %951 = vmatpush1.bf16.msra.mxu0 0
      %952 = vmatprep.subr.bf16.mxu0 0
      %953 = vmatpush1.bf16.msra.mxu0 0
      %954 = vmatprep.subr.bf16.mxu0 0
      %955 = vmatpush1.bf16.msra.mxu0 0
      %956 = vmatprep.subr.bf16.mxu0 0
      %957 = vmatpush1.bf16.msra.mxu0 0
      %958 = vmatprep.subr.bf16.mxu0 0
      %959 = vmatpush1.bf16.msra.mxu0 0
      %960 = vmatprep.subr.bf16.mxu0 0
      %961 = vmatpush1.bf16.msra.mxu0 %v944
      %962 = vmatprep.subr.bf16.mxu0 0
      %963 = vmatpush2.bf16.msra.mxu0 0
      %964 = vmatprep.subr.bf16.mxu0 0
      %965 = vmatpush2.bf16.msra.mxu0 0
      %966 = vmatprep.subr.bf16.mxu0 0
      %967 = vmatpush2.bf16.msra.mxu0 0
      %968 = vmatprep.subr.bf16.mxu0 0
      %969 = vmatpush2.bf16.msra.mxu0 0
      %970 = vmatprep.subr.bf16.mxu0 0
      %971 = vmatpush2.bf16.msra.mxu0 0
      %972 = vmatprep.subr.bf16.mxu0 0
      %973 = vmatpush2.bf16.msra.mxu0 0
      %974 = vmatprep.subr.bf16.mxu0 0
      %975 = vmatpush2.bf16.msra.mxu0 0
      %976 = vmatprep.subr.bf16.mxu0 0
      %977 = vmatpush2.bf16.msra.mxu0 0
      %978 = vmatprep.mubr.bf16.mxu0 0
      %979 = vmatmul.mubr.bf16.gmra.mxu0 %v914
      %v980 = vpop.f32.mrf.mxu0
      %v981 = vadd.f32 %v785, %v980
      %v982 = vpop.f32.mrf.mxu0
      %v983 = vpop.f32.mrf.mxu0
      %v984 = vadd.f32 %v788, %v983
      %v985 = vpop.f32.mrf.mxu0
      %986 = vmatprep.mubr.bf16.mxu0 0
      %987 = vmatmul.mubr.bf16.gmra.mxu0 %v917
      %v988 = vpop.f32.mrf.mxu0
      %v989 = vadd.f32 %v793, %v988
      %v990 = vpop.f32.mrf.mxu0
      %v991 = vpop.f32.mrf.mxu0
      %v992 = vadd.f32 %v796, %v991
      %v993 = vpop.f32.mrf.mxu0
      %994 = vmatprep.mubr.bf16.mxu0 0
      %995 = vmatmul.mubr.bf16.gmra.mxu0 %v920
      %v996 = vpop.f32.mrf.mxu0
      %v997 = vadd.f32 %v801, %v996
      %v998 = vpop.f32.mrf.mxu0
      %v999 = vpop.f32.mrf.mxu0
      %v1000 = vadd.f32 %v804, %v999
      %v1001 = vpop.f32.mrf.mxu0
      %1002 = vmatprep.mubr.bf16.mxu0 0
      %1003 = vmatmul.mubr.bf16.gmra.mxu0 %v923
      %v1004 = vpop.f32.mrf.mxu0
      %v1005 = vadd.f32 %v809, %v1004
      %v1006 = vpop.f32.mrf.mxu0
      %v1007 = vpop.f32.mrf.mxu0
      %v1008 = vadd.f32 %v812, %v1007
      %v1009 = vpop.f32.mrf.mxu0
      %1010 = vmatprep.mubr.bf16.mxu0 0
      %1011 = vmatmul.mubr.bf16.gmra.mxu0 %v926
      %v1012 = vpop.f32.mrf.mxu0
      %v1013 = vadd.f32 %v817, %v1012
      %v1014 = vpop.f32.mrf.mxu0
      %v1015 = vpop.f32.mrf.mxu0
      %v1016 = vadd.f32 %v820, %v1015
      %v1017 = vpop.f32.mrf.mxu0
      %1018 = vmatprep.mubr.bf16.mxu0 0
      %1019 = vmatmul.mubr.bf16.gmra.mxu0 %v929
      %v1020 = vpop.f32.mrf.mxu0
      %v1021 = vadd.f32 %v825, %v1020
      %v1022 = vpop.f32.mrf.mxu0
      %v1023 = vpop.f32.mrf.mxu0
      %v1024 = vadd.f32 %v828, %v1023
      %v1025 = vpop.f32.mrf.mxu0
      %1026 = vmatprep.mubr.bf16.mxu0 0
      %1027 = vmatmul.mubr.bf16.gmra.mxu0 %v932
      %v1028 = vpop.f32.mrf.mxu0
      %v1029 = vadd.f32 %v833, %v1028
      %v1030 = vpop.f32.mrf.mxu0
      %v1031 = vpop.f32.mrf.mxu0
      %v1032 = vadd.f32 %v836, %v1031
      %v1033 = vpop.f32.mrf.mxu0
      %1034 = vmatprep.mubr.bf16.mxu0 0
      %1035 = vmatmul.mubr.bf16.gmra.mxu0 %v935
      %v1036 = vpop.f32.mrf.mxu0
      %v1037 = vadd.f32 %v841, %v1036
      %v1038 = vpop.f32.mrf.mxu0
      %v1039 = vpop.f32.mrf.mxu0
      %v1040 = vadd.f32 %v844, %v1039
      %v1041 = vpop.f32.mrf.mxu0
      %1042 = vmatprep.mubr.bf16.mxu0 0
      %1043 = vmatmul.mubr.bf16.gmra.mxu0 %v938
      %v1044 = vpop.f32.mrf.mxu0
      %v1045 = vadd.f32 %v849, %v1044
      %v1046 = vpop.f32.mrf.mxu0
      %v1047 = vpop.f32.mrf.mxu0
      %v1048 = vadd.f32 %v852, %v1047
      %v1049 = vpop.f32.mrf.mxu0
      %1050 = vmatprep.mubr.bf16.mxu0 0
      %1051 = vmatmul.mubr.bf16.gmra.mxu0 %v941
      %v1052 = vpop.f32.mrf.mxu0
      %v1053 = vadd.f32 %v857, %v1052
      %v1054 = vpop.f32.mrf.mxu0
      %v1055 = vpop.f32.mrf.mxu0
      %v1056 = vadd.f32 %v860, %v1055
      %v1057 = vpop.f32.mrf.mxu0
      %1058 = vdwg.mxu0
      %vm1069 = vcmask 1042432
      %vm1070 = vcmask 1046532
      %vm1071 = vmor %vm1069, %vm1070
      %v1072 = vrot.slane %v403, 5
      %v1073 = vrot.slane %v1072, 4
      %v1074 = vrot.slane %v404, 5
      %v1075 = vsel %vm1071, %v1073, %v1074
      %v1076 = vrot.slane %v1074, 4
      %v1077 = vrot.slane %v405, 5
      %v1078 = vsel %vm1071, %v1076, %v1077
      %v1079 = vrot.slane %v406, 5
      %v1080 = vrot.slane %v1079, 4
      %v1081 = vrot.slane %v407, 5
      %v1082 = vsel %vm1071, %v1080, %v1081
      %v1083 = vrot.slane %v1081, 4
      %v1084 = vrot.slane %v408, 5
      %v1085 = vsel %vm1071, %v1083, %v1084
      %v1086 = vrot.slane %v409, 5
      %v1087 = vrot.slane %v1086, 4
      %v1088 = vrot.slane %v410, 5
      %v1089 = vsel %vm1071, %v1087, %v1088
      %v1090 = vrot.slane %v1088, 4
      %v1091 = vrot.slane %v411, 5
      %v1092 = vsel %vm1071, %v1090, %v1091
      %v1093 = vrot.slane %v412, 5
      %v1094 = vrot.slane %v1093, 4
      %v1095 = vrot.slane %v413, 5
      %v1096 = vsel %vm1071, %v1094, %v1095
      %v1097 = vrot.slane %v1095, 4
      %v1098 = vrot.slane %v414, 5
      %v1099 = vsel %vm1071, %v1097, %v1098
      %v1100 = vrot.slane %v415, 5
      %v1101 = vrot.slane %v1100, 4
      %v1102 = vrot.slane %v416, 5
      %v1103 = vsel %vm1071, %v1101, %v1102
      %v1104 = vrot.slane %v1102, 4
      %v1105 = vrot.slane %v417, 5
      %v1106 = vsel %vm1071, %v1104, %v1105
      %v1107 = vrot.slane %v418, 5
      %v1108 = vrot.slane %v1107, 4
      %v1109 = vrot.slane %v419, 5
      %v1110 = vsel %vm1071, %v1108, %v1109
      %v1111 = vrot.slane %v1109, 4
      %v1112 = vrot.slane %v420, 5
      %v1113 = vsel %vm1071, %v1111, %v1112
      %v1114 = vrot.slane %v421, 5
      %v1115 = vrot.slane %v1114, 4
      %v1116 = vrot.slane %v422, 5
      %v1117 = vsel %vm1071, %v1115, %v1116
      %v1118 = vrot.slane %v1116, 4
      %v1119 = vrot.slane %v423, 5
      %v1120 = vsel %vm1071, %v1118, %v1119
      %v1121 = vrot.slane %v424, 5
      %v1122 = vrot.slane %v1121, 4
      %v1123 = vrot.slane %v425, 5
      %v1124 = vsel %vm1071, %v1122, %v1123
      %v1125 = vrot.slane %v1123, 4
      %v1126 = vrot.slane %v426, 5
      %v1127 = vsel %vm1071, %v1125, %v1126
      %v1128 = vrot.slane %v427, 5
      %v1129 = vrot.slane %v1128, 4
      %v1130 = vrot.slane %v428, 5
      %v1131 = vsel %vm1071, %v1129, %v1130
      %v1132 = vrot.slane %v1130, 4
      %v1133 = vrot.slane %v429, 5
      %v1134 = vsel %vm1071, %v1132, %v1133
      %v1135 = vrot.slane %v430, 5
      %v1136 = vrot.slane %v1135, 4
      %v1137 = vrot.slane %v431, 5
      %v1138 = vsel %vm1071, %v1136, %v1137
      %v1139 = vrot.slane %v1137, 4
      %v1140 = vrot.slane %v432, 5
      %v1141 = vsel %vm1071, %v1139, %v1140
      %s1142 = scalar_lea.vmem %s4, 4
      %v1143 = vld [vmem:[%s1142] sm:$0x3]
      %v1144 = vunpack.c.l.b16 %v1075
      %v1145 = vunpack.c.l.b16 %v1078
      %v1146 = vunpack.c.l.b16 %v1082
      %v1147 = vunpack.c.l.b16 %v1085
      %v1148 = vunpack.c.l.b16 %v1089
      %v1149 = vunpack.c.l.b16 %v1092
      %v1150 = vunpack.c.l.b16 %v1096
      %v1151 = vunpack.c.l.b16 %v1099
      %v1152 = vunpack.c.l.b16 %v1103
      %v1153 = vunpack.c.l.b16 %v1106
      %v1154 = vunpack.c.l.b16 %v1110
      %v1155 = vunpack.c.l.b16 %v1113
      %v1156 = vunpack.c.l.b16 %v1117
      %v1157 = vunpack.c.l.b16 %v1120
      %v1158 = vunpack.c.l.b16 %v1124
      %v1159 = vunpack.c.l.b16 %v1127
      %v1160 = vunpack.c.l.b16 %v1131
      %v1161 = vunpack.c.l.b16 %v1134
      %v1162 = vunpack.c.l.b16 %v1138
      %v1163 = vunpack.c.l.b16 %v1141
      %v1164 = vpack.c.b16 %v1145, %v1144
      %v1165 = vpack.c.b16 %v1147, %v1146
      %v1166 = vpack.c.b16 %v1149, %v1148
      %v1167 = vpack.c.b16 %v1151, %v1150
      %v1168 = vpack.c.b16 %v1153, %v1152
      %v1169 = vpack.c.b16 %v1155, %v1154
      %v1170 = vpack.c.b16 %v1157, %v1156
      %v1171 = vpack.c.b16 %v1159, %v1158
      %v1172 = vpack.c.b16 %v1161, %v1160
      %v1173 = vpack.c.b16 %v1163, %v1162
      %v1175 = vsel %vm715, %v1164, 0
      %v1178 = vsel %vm715, %v1165, 0
      %v1181 = vsel %vm715, %v1166, 0
      %v1184 = vsel %vm715, %v1167, 0
      %v1187 = vsel %vm715, %v1168, 0
      %v1190 = vsel %vm715, %v1169, 0
      %v1193 = vsel %vm715, %v1170, 0
      %v1196 = vsel %vm715, %v1171, 0
      %v1199 = vsel %vm715, %v1172, 0
      %v1202 = vsel %vm715, %v1173, 0
      %v1205 = vsel %vm746, %v1143, 0
      %1207 = vmatprep.subr.bf16.mxu0 0
      %1208 = vmatpush1.bf16.msra.mxu0 0
      %1209 = vmatprep.subr.bf16.mxu0 0
      %1210 = vmatpush1.bf16.msra.mxu0 0
      %1211 = vmatprep.subr.bf16.mxu0 0
      %1212 = vmatpush1.bf16.msra.mxu0 0
      %1213 = vmatprep.subr.bf16.mxu0 0
      %1214 = vmatpush1.bf16.msra.mxu0 0
      %1215 = vmatprep.subr.bf16.mxu0 0
      %1216 = vmatpush1.bf16.msra.mxu0 0
      %1217 = vmatprep.subr.bf16.mxu0 0
      %1218 = vmatpush1.bf16.msra.mxu0 0
      %1219 = vmatprep.subr.bf16.mxu0 0
      %1220 = vmatpush1.bf16.msra.mxu0 0
      %1221 = vmatprep.subr.bf16.mxu0 0
      %1222 = vmatpush1.bf16.msra.mxu0 %v1205
      %1223 = vmatprep.subr.bf16.mxu0 0
      %1224 = vmatpush2.bf16.msra.mxu0 0
      %1225 = vmatprep.subr.bf16.mxu0 0
      %1226 = vmatpush2.bf16.msra.mxu0 0
      %1227 = vmatprep.subr.bf16.mxu0 0
      %1228 = vmatpush2.bf16.msra.mxu0 0
      %1229 = vmatprep.subr.bf16.mxu0 0
      %1230 = vmatpush2.bf16.msra.mxu0 0
      %1231 = vmatprep.subr.bf16.mxu0 0
      %1232 = vmatpush2.bf16.msra.mxu0 0
      %1233 = vmatprep.subr.bf16.mxu0 0
      %1234 = vmatpush2.bf16.msra.mxu0 0
      %1235 = vmatprep.subr.bf16.mxu0 0
      %1236 = vmatpush2.bf16.msra.mxu0 0
      %1237 = vmatprep.subr.bf16.mxu0 0
      %1238 = vmatpush2.bf16.msra.mxu0 0
      %1239 = vmatprep.mubr.bf16.mxu0 0
      %1240 = vmatmul.mubr.bf16.gmra.mxu0 %v1175
      %v1241 = vpop.f32.mrf.mxu0
      %v1242 = vadd.f32 0.0, %v1241
      %v1243 = vpop.f32.mrf.mxu0
      %v1244 = vpop.f32.mrf.mxu0
      %v1245 = vadd.f32 0.0, %v1244
      %v1246 = vpop.f32.mrf.mxu0
      %1247 = vmatprep.mubr.bf16.mxu0 0
      %1248 = vmatmul.mubr.bf16.gmra.mxu0 %v1178
      %v1249 = vpop.f32.mrf.mxu0
      %v1250 = vadd.f32 0.0, %v1249
      %v1251 = vpop.f32.mrf.mxu0
      %v1252 = vpop.f32.mrf.mxu0
      %v1253 = vadd.f32 0.0, %v1252
      %v1254 = vpop.f32.mrf.mxu0
      %1255 = vmatprep.mubr.bf16.mxu0 0
      %1256 = vmatmul.mubr.bf16.gmra.mxu0 %v1181
      %v1257 = vpop.f32.mrf.mxu0
      %v1258 = vadd.f32 0.0, %v1257
      %v1259 = vpop.f32.mrf.mxu0
      %v1260 = vpop.f32.mrf.mxu0
      %v1261 = vadd.f32 0.0, %v1260
      %v1262 = vpop.f32.mrf.mxu0
      %1263 = vmatprep.mubr.bf16.mxu0 0
      %1264 = vmatmul.mubr.bf16.gmra.mxu0 %v1184
      %v1265 = vpop.f32.mrf.mxu0
      %v1266 = vadd.f32 0.0, %v1265
      %v1267 = vpop.f32.mrf.mxu0
      %v1268 = vpop.f32.mrf.mxu0
      %v1269 = vadd.f32 0.0, %v1268
      %v1270 = vpop.f32.mrf.mxu0
      %1271 = vmatprep.mubr.bf16.mxu0 0
      %1272 = vmatmul.mubr.bf16.gmra.mxu0 %v1187
      %v1273 = vpop.f32.mrf.mxu0
      %v1274 = vadd.f32 0.0, %v1273
      %v1275 = vpop.f32.mrf.mxu0
      %v1276 = vpop.f32.mrf.mxu0
      %v1277 = vadd.f32 0.0, %v1276
      %v1278 = vpop.f32.mrf.mxu0
      %1279 = vmatprep.mubr.bf16.mxu0 0
      %1280 = vmatmul.mubr.bf16.gmra.mxu0 %v1190
      %v1281 = vpop.f32.mrf.mxu0
      %v1282 = vadd.f32 0.0, %v1281
      %v1283 = vpop.f32.mrf.mxu0
      %v1284 = vpop.f32.mrf.mxu0
      %v1285 = vadd.f32 0.0, %v1284
      %v1286 = vpop.f32.mrf.mxu0
      %1287 = vmatprep.mubr.bf16.mxu0 0
      %1288 = vmatmul.mubr.bf16.gmra.mxu0 %v1193
      %v1289 = vpop.f32.mrf.mxu0
      %v1290 = vadd.f32 0.0, %v1289
      %v1291 = vpop.f32.mrf.mxu0
      %v1292 = vpop.f32.mrf.mxu0
      %v1293 = vadd.f32 0.0, %v1292
      %v1294 = vpop.f32.mrf.mxu0
      %1295 = vmatprep.mubr.bf16.mxu0 0
      %1296 = vmatmul.mubr.bf16.gmra.mxu0 %v1196
      %v1297 = vpop.f32.mrf.mxu0
      %v1298 = vadd.f32 0.0, %v1297
      %v1299 = vpop.f32.mrf.mxu0
      %v1300 = vpop.f32.mrf.mxu0
      %v1301 = vadd.f32 0.0, %v1300
      %v1302 = vpop.f32.mrf.mxu0
      %1303 = vmatprep.mubr.bf16.mxu0 0
      %1304 = vmatmul.mubr.bf16.gmra.mxu0 %v1199
      %v1305 = vpop.f32.mrf.mxu0
      %v1306 = vadd.f32 0.0, %v1305
      %v1307 = vpop.f32.mrf.mxu0
      %v1308 = vpop.f32.mrf.mxu0
      %v1309 = vadd.f32 0.0, %v1308
      %v1310 = vpop.f32.mrf.mxu0
      %1311 = vmatprep.mubr.bf16.mxu0 0
      %1312 = vmatmul.mubr.bf16.gmra.mxu0 %v1202
      %v1313 = vpop.f32.mrf.mxu0
      %v1314 = vadd.f32 0.0, %v1313
      %v1315 = vpop.f32.mrf.mxu0
      %v1316 = vpop.f32.mrf.mxu0
      %v1317 = vadd.f32 0.0, %v1316
      %v1318 = vpop.f32.mrf.mxu0
      %1319 = vdwg.mxu0
      %v1320 = vadd.f32 %v981, %v1242
      %v1321 = vadd.f32 %v984, %v1245
      %v1322 = vadd.f32 %v989, %v1250
      %v1323 = vadd.f32 %v992, %v1253
      %v1324 = vadd.f32 %v997, %v1258
      %v1325 = vadd.f32 %v1000, %v1261
      %v1326 = vadd.f32 %v1005, %v1266
      %v1327 = vadd.f32 %v1008, %v1269
      %v1328 = vadd.f32 %v1013, %v1274
      %v1329 = vadd.f32 %v1016, %v1277
      %v1330 = vadd.f32 %v1021, %v1282
      %v1331 = vadd.f32 %v1024, %v1285
      %v1332 = vadd.f32 %v1029, %v1290
      %v1333 = vadd.f32 %v1032, %v1293
      %v1334 = vadd.f32 %v1037, %v1298
      %v1335 = vadd.f32 %v1040, %v1301
      %v1336 = vadd.f32 %v1045, %v1306
      %v1337 = vadd.f32 %v1048, %v1309
      %v1338 = vadd.f32 %v1053, %v1314
      %v1339 = vadd.f32 %v1056, %v1317
      %s1340 = scalar_lea.vmem %s4, 6
      %v1341 = vld [vmem:[%s1340] sm:$0x3]
      %v1344 = vunpack.c.l.b16 %v433
      %v1345 = vunpack.c.l.b16 %v434
      %v1346 = vpack.c.b16 %v1345, %v1344
      %v1348 = vsel %vm715, %v1346, 0
      %v1351 = vsel %vm746, %v1341, 0
      %1353 = vmatprep.subr.bf16.mxu0 0
      %1354 = vmatpush1.bf16.msra.mxu0 0
      %1355 = vmatprep.subr.bf16.mxu0 0
      %1356 = vmatpush1.bf16.msra.mxu0 0
      %1357 = vmatprep.subr.bf16.mxu0 0
      %1358 = vmatpush1.bf16.msra.mxu0 0
      %1359 = vmatprep.subr.bf16.mxu0 0
      %1360 = vmatpush1.bf16.msra.mxu0 0
      %1361 = vmatprep.subr.bf16.mxu0 0
      %1362 = vmatpush1.bf16.msra.mxu0 0
      %1363 = vmatprep.subr.bf16.mxu0 0
      %1364 = vmatpush1.bf16.msra.mxu0 0
      %1365 = vmatprep.subr.bf16.mxu0 0
      %1366 = vmatpush1.bf16.msra.mxu0 0
      %1367 = vmatprep.subr.bf16.mxu0 0
      %1368 = vmatpush1.bf16.msra.mxu0 %v1351
      %1369 = vmatprep.subr.bf16.mxu0 0
      %1370 = vmatpush2.bf16.msra.mxu0 0
      %1371 = vmatprep.subr.bf16.mxu0 0
      %1372 = vmatpush2.bf16.msra.mxu0 0
      %1373 = vmatprep.subr.bf16.mxu0 0
      %1374 = vmatpush2.bf16.msra.mxu0 0
      %1375 = vmatprep.subr.bf16.mxu0 0
      %1376 = vmatpush2.bf16.msra.mxu0 0
      %1377 = vmatprep.subr.bf16.mxu0 0
      %1378 = vmatpush2.bf16.msra.mxu0 0
      %1379 = vmatprep.subr.bf16.mxu0 0
      %1380 = vmatpush2.bf16.msra.mxu0 0
      %1381 = vmatprep.subr.bf16.mxu0 0
      %1382 = vmatpush2.bf16.msra.mxu0 0
      %1383 = vmatprep.subr.bf16.mxu0 0
      %1384 = vmatpush2.bf16.msra.mxu0 0
      %1385 = vmatprep.mubr.bf16.mxu0 0
      %1386 = vmatmul.mubr.bf16.gmra.mxu0 %v917
      %v1387 = vpop.f32.mrf.mxu0
      %v1388 = vadd.f32 0.0, %v1387
      %v1389 = vpop.f32.mrf.mxu0
      %v1390 = vpop.f32.mrf.mxu0
      %v1391 = vadd.f32 0.0, %v1390
      %v1392 = vpop.f32.mrf.mxu0
      %1393 = vmatprep.mubr.bf16.mxu0 0
      %1394 = vmatmul.mubr.bf16.gmra.mxu0 %v920
      %v1395 = vpop.f32.mrf.mxu0
      %v1396 = vadd.f32 0.0, %v1395
      %v1397 = vpop.f32.mrf.mxu0
      %v1398 = vpop.f32.mrf.mxu0
      %v1399 = vadd.f32 0.0, %v1398
      %v1400 = vpop.f32.mrf.mxu0
      %1401 = vmatprep.mubr.bf16.mxu0 0
      %1402 = vmatmul.mubr.bf16.gmra.mxu0 %v923
      %v1403 = vpop.f32.mrf.mxu0
      %v1404 = vadd.f32 0.0, %v1403
      %v1405 = vpop.f32.mrf.mxu0
      %v1406 = vpop.f32.mrf.mxu0
      %v1407 = vadd.f32 0.0, %v1406
      %v1408 = vpop.f32.mrf.mxu0
      %1409 = vmatprep.mubr.bf16.mxu0 0
      %1410 = vmatmul.mubr.bf16.gmra.mxu0 %v926
      %v1411 = vpop.f32.mrf.mxu0
      %v1412 = vadd.f32 0.0, %v1411
      %v1413 = vpop.f32.mrf.mxu0
      %v1414 = vpop.f32.mrf.mxu0
      %v1415 = vadd.f32 0.0, %v1414
      %v1416 = vpop.f32.mrf.mxu0
      %1417 = vmatprep.mubr.bf16.mxu0 0
      %1418 = vmatmul.mubr.bf16.gmra.mxu0 %v929
      %v1419 = vpop.f32.mrf.mxu0
      %v1420 = vadd.f32 0.0, %v1419
      %v1421 = vpop.f32.mrf.mxu0
      %v1422 = vpop.f32.mrf.mxu0
      %v1423 = vadd.f32 0.0, %v1422
      %v1424 = vpop.f32.mrf.mxu0
      %1425 = vmatprep.mubr.bf16.mxu0 0
      %1426 = vmatmul.mubr.bf16.gmra.mxu0 %v932
      %v1427 = vpop.f32.mrf.mxu0
      %v1428 = vadd.f32 0.0, %v1427
      %v1429 = vpop.f32.mrf.mxu0
      %v1430 = vpop.f32.mrf.mxu0
      %v1431 = vadd.f32 0.0, %v1430
      %v1432 = vpop.f32.mrf.mxu0
      %1433 = vmatprep.mubr.bf16.mxu0 0
      %1434 = vmatmul.mubr.bf16.gmra.mxu0 %v935
      %v1435 = vpop.f32.mrf.mxu0
      %v1436 = vadd.f32 0.0, %v1435
      %v1437 = vpop.f32.mrf.mxu0
      %v1438 = vpop.f32.mrf.mxu0
      %v1439 = vadd.f32 0.0, %v1438
      %v1440 = vpop.f32.mrf.mxu0
      %1441 = vmatprep.mubr.bf16.mxu0 0
      %1442 = vmatmul.mubr.bf16.gmra.mxu0 %v938
      %v1443 = vpop.f32.mrf.mxu0
      %v1444 = vadd.f32 0.0, %v1443
      %v1445 = vpop.f32.mrf.mxu0
      %v1446 = vpop.f32.mrf.mxu0
      %v1447 = vadd.f32 0.0, %v1446
      %v1448 = vpop.f32.mrf.mxu0
      %1449 = vmatprep.mubr.bf16.mxu0 0
      %1450 = vmatmul.mubr.bf16.gmra.mxu0 %v941
      %v1451 = vpop.f32.mrf.mxu0
      %v1452 = vadd.f32 0.0, %v1451
      %v1453 = vpop.f32.mrf.mxu0
      %v1454 = vpop.f32.mrf.mxu0
      %v1455 = vadd.f32 0.0, %v1454
      %v1456 = vpop.f32.mrf.mxu0
      %1457 = vmatprep.mubr.bf16.mxu0 0
      %1458 = vmatmul.mubr.bf16.gmra.mxu0 %v1348
      %v1459 = vpop.f32.mrf.mxu0
      %v1460 = vadd.f32 0.0, %v1459
      %v1461 = vpop.f32.mrf.mxu0
      %v1462 = vpop.f32.mrf.mxu0
      %v1463 = vadd.f32 0.0, %v1462
      %v1464 = vpop.f32.mrf.mxu0
      %1465 = vdwg.mxu0
      %v1466 = vadd.f32 %v1320, %v1388
      %v1467 = vadd.f32 %v1321, %v1391
      %v1468 = vadd.f32 %v1322, %v1396
      %v1469 = vadd.f32 %v1323, %v1399
      %v1470 = vadd.f32 %v1324, %v1404
      %v1471 = vadd.f32 %v1325, %v1407
      %v1472 = vadd.f32 %v1326, %v1412
      %v1473 = vadd.f32 %v1327, %v1415
      %v1474 = vadd.f32 %v1328, %v1420
      %v1475 = vadd.f32 %v1329, %v1423
      %v1476 = vadd.f32 %v1330, %v1428
      %v1477 = vadd.f32 %v1331, %v1431
      %v1478 = vadd.f32 %v1332, %v1436
      %v1479 = vadd.f32 %v1333, %v1439
      %v1480 = vadd.f32 %v1334, %v1444
      %v1481 = vadd.f32 %v1335, %v1447
      %v1482 = vadd.f32 %v1336, %v1452
      %v1483 = vadd.f32 %v1337, %v1455
      %v1484 = vadd.f32 %v1338, %v1460
      %v1485 = vadd.f32 %v1339, %v1463
      %v1487 = vshrl.u32 %v433, 16
      %v1489 = vrot.slane %v1487, 4
      %v1490 = vshll.u32 %v433, 16
      %v1492 = vrot.slane %v1490, 5
      %v1493 = vor.u32 %v1489, %v1492
      %v1494 = vrot.slane %v1493, 4
      %v1496 = vshll.u32 %v434, 16
      %v1498 = vrot.slane %v1496, 5
      %v1499 = vsel %vm442, %v1494, %v1498
      %v1500 = vshrl.u32 %v434, 16
      %v1502 = vrot.slane %v1500, 4
      %v1503 = vor.u32 %v1502, %v1498
      %v1504 = vrot.slane %v1503, 4
      %v1506 = vshll.u32 %v435, 16
      %v1508 = vrot.slane %v1506, 5
      %v1509 = vsel %vm442, %v1504, %v1508
      %s1510 = scalar_lea.vmem %s4, 8
      %v1511 = vld [vmem:[%s1510] sm:$0x3]
      %v1512 = vunpack.c.l.b16 %v1499
      %v1513 = vunpack.c.l.b16 %v1509
      %v1514 = vpack.c.b16 %v1513, %v1512
      %v1516 = vsel %vm715, %v1514, 0
      %v1519 = vsel %vm746, %v1511, 0
      %1521 = vmatprep.subr.bf16.mxu0 0
      %1522 = vmatpush1.bf16.msra.mxu0 0
      %1523 = vmatprep.subr.bf16.mxu0 0
      %1524 = vmatpush1.bf16.msra.mxu0 0
      %1525 = vmatprep.subr.bf16.mxu0 0
      %1526 = vmatpush1.bf16.msra.mxu0 0
      %1527 = vmatprep.subr.bf16.mxu0 0
      %1528 = vmatpush1.bf16.msra.mxu0 0
      %1529 = vmatprep.subr.bf16.mxu0 0
      %1530 = vmatpush1.bf16.msra.mxu0 0
      %1531 = vmatprep.subr.bf16.mxu0 0
      %1532 = vmatpush1.bf16.msra.mxu0 0
      %1533 = vmatprep.subr.bf16.mxu0 0
      %1534 = vmatpush1.bf16.msra.mxu0 0
      %1535 = vmatprep.subr.bf16.mxu0 0
      %1536 = vmatpush1.bf16.msra.mxu0 %v1519
      %1537 = vmatprep.subr.bf16.mxu0 0
      %1538 = vmatpush2.bf16.msra.mxu0 0
      %1539 = vmatprep.subr.bf16.mxu0 0
      %1540 = vmatpush2.bf16.msra.mxu0 0
      %1541 = vmatprep.subr.bf16.mxu0 0
      %1542 = vmatpush2.bf16.msra.mxu0 0
      %1543 = vmatprep.subr.bf16.mxu0 0
      %1544 = vmatpush2.bf16.msra.mxu0 0
      %1545 = vmatprep.subr.bf16.mxu0 0
      %1546 = vmatpush2.bf16.msra.mxu0 0
      %1547 = vmatprep.subr.bf16.mxu0 0
      %1548 = vmatpush2.bf16.msra.mxu0 0
      %1549 = vmatprep.subr.bf16.mxu0 0
      %1550 = vmatpush2.bf16.msra.mxu0 0
      %1551 = vmatprep.subr.bf16.mxu0 0
      %1552 = vmatpush2.bf16.msra.mxu0 0
      %1553 = vmatprep.mubr.bf16.mxu0 0
      %1554 = vmatmul.mubr.bf16.gmra.mxu0 %v720
      %v1555 = vpop.f32.mrf.mxu0
      %v1556 = vadd.f32 0.0, %v1555
      %v1557 = vpop.f32.mrf.mxu0
      %v1558 = vpop.f32.mrf.mxu0
      %v1559 = vadd.f32 0.0, %v1558
      %v1560 = vpop.f32.mrf.mxu0
      %1561 = vmatprep.mubr.bf16.mxu0 0
      %1562 = vmatmul.mubr.bf16.gmra.mxu0 %v723
      %v1563 = vpop.f32.mrf.mxu0
      %v1564 = vadd.f32 0.0, %v1563
      %v1565 = vpop.f32.mrf.mxu0
      %v1566 = vpop.f32.mrf.mxu0
      %v1567 = vadd.f32 0.0, %v1566
      %v1568 = vpop.f32.mrf.mxu0
      %1569 = vmatprep.mubr.bf16.mxu0 0
      %1570 = vmatmul.mubr.bf16.gmra.mxu0 %v726
      %v1571 = vpop.f32.mrf.mxu0
      %v1572 = vadd.f32 0.0, %v1571
      %v1573 = vpop.f32.mrf.mxu0
      %v1574 = vpop.f32.mrf.mxu0
      %v1575 = vadd.f32 0.0, %v1574
      %v1576 = vpop.f32.mrf.mxu0
      %1577 = vmatprep.mubr.bf16.mxu0 0
      %1578 = vmatmul.mubr.bf16.gmra.mxu0 %v729
      %v1579 = vpop.f32.mrf.mxu0
      %v1580 = vadd.f32 0.0, %v1579
      %v1581 = vpop.f32.mrf.mxu0
      %v1582 = vpop.f32.mrf.mxu0
      %v1583 = vadd.f32 0.0, %v1582
      %v1584 = vpop.f32.mrf.mxu0
      %1585 = vmatprep.mubr.bf16.mxu0 0
      %1586 = vmatmul.mubr.bf16.gmra.mxu0 %v732
      %v1587 = vpop.f32.mrf.mxu0
      %v1588 = vadd.f32 0.0, %v1587
      %v1589 = vpop.f32.mrf.mxu0
      %v1590 = vpop.f32.mrf.mxu0
      %v1591 = vadd.f32 0.0, %v1590
      %v1592 = vpop.f32.mrf.mxu0
      %1593 = vmatprep.mubr.bf16.mxu0 0
      %1594 = vmatmul.mubr.bf16.gmra.mxu0 %v735
      %v1595 = vpop.f32.mrf.mxu0
      %v1596 = vadd.f32 0.0, %v1595
      %v1597 = vpop.f32.mrf.mxu0
      %v1598 = vpop.f32.mrf.mxu0
      %v1599 = vadd.f32 0.0, %v1598
      %v1600 = vpop.f32.mrf.mxu0
      %1601 = vmatprep.mubr.bf16.mxu0 0
      %1602 = vmatmul.mubr.bf16.gmra.mxu0 %v738
      %v1603 = vpop.f32.mrf.mxu0
      %v1604 = vadd.f32 0.0, %v1603
      %v1605 = vpop.f32.mrf.mxu0
      %v1606 = vpop.f32.mrf.mxu0
      %v1607 = vadd.f32 0.0, %v1606
      %v1608 = vpop.f32.mrf.mxu0
      %1609 = vmatprep.mubr.bf16.mxu0 0
      %1610 = vmatmul.mubr.bf16.gmra.mxu0 %v741
      %v1611 = vpop.f32.mrf.mxu0
      %v1612 = vadd.f32 0.0, %v1611
      %v1613 = vpop.f32.mrf.mxu0
      %v1614 = vpop.f32.mrf.mxu0
      %v1615 = vadd.f32 0.0, %v1614
      %v1616 = vpop.f32.mrf.mxu0
      %1617 = vmatprep.mubr.bf16.mxu0 0
      %1618 = vmatmul.mubr.bf16.gmra.mxu0 %v744
      %v1619 = vpop.f32.mrf.mxu0
      %v1620 = vadd.f32 0.0, %v1619
      %v1621 = vpop.f32.mrf.mxu0
      %v1622 = vpop.f32.mrf.mxu0
      %v1623 = vadd.f32 0.0, %v1622
      %v1624 = vpop.f32.mrf.mxu0
      %1625 = vmatprep.mubr.bf16.mxu0 0
      %1626 = vmatmul.mubr.bf16.gmra.mxu0 %v1516
      %v1627 = vpop.f32.mrf.mxu0
      %v1628 = vadd.f32 0.0, %v1627
      %v1629 = vpop.f32.mrf.mxu0
      %v1630 = vpop.f32.mrf.mxu0
      %v1631 = vadd.f32 0.0, %v1630
      %v1632 = vpop.f32.mrf.mxu0
      %1633 = vdwg.mxu0
      %v1634 = vadd.f32 %v1466, %v1556
      %v1635 = vadd.f32 %v1467, %v1559
      %v1636 = vadd.f32 %v1468, %v1564
      %v1637 = vadd.f32 %v1469, %v1567
      %v1638 = vadd.f32 %v1470, %v1572
      %v1639 = vadd.f32 %v1471, %v1575
      %v1640 = vadd.f32 %v1472, %v1580
      %v1641 = vadd.f32 %v1473, %v1583
      %v1642 = vadd.f32 %v1474, %v1588
      %v1643 = vadd.f32 %v1475, %v1591
      %v1644 = vadd.f32 %v1476, %v1596
      %v1645 = vadd.f32 %v1477, %v1599
      %v1646 = vadd.f32 %v1478, %v1604
      %v1647 = vadd.f32 %v1479, %v1607
      %v1648 = vadd.f32 %v1480, %v1612
      %v1649 = vadd.f32 %v1481, %v1615
      %v1650 = vadd.f32 %v1482, %v1620
      %v1651 = vadd.f32 %v1483, %v1623
      %v1652 = vadd.f32 %v1484, %v1628
      %v1653 = vadd.f32 %v1485, %v1631
      %v1655 = vrot.slane %v433, 5
      %v1656 = vrot.slane %v1655, 4
      %v1657 = vrot.slane %v434, 5
      %v1658 = vsel %vm1071, %v1656, %v1657
      %v1659 = vrot.slane %v1657, 4
      %v1660 = vrot.slane %v435, 5
      %v1661 = vsel %vm1071, %v1659, %v1660
      %s1662 = scalar_lea.vmem %s4, 10
      %v1663 = vld [vmem:[%s1662] sm:$0x3]
      %v1664 = vunpack.c.l.b16 %v1658
      %v1665 = vunpack.c.l.b16 %v1661
      %v1666 = vpack.c.b16 %v1665, %v1664
      %v1668 = vsel %vm715, %v1666, 0
      %v1671 = vsel %vm746, %v1663, 0
      %1673 = vmatprep.subr.bf16.mxu0 0
      %1674 = vmatpush1.bf16.msra.mxu0 0
      %1675 = vmatprep.subr.bf16.mxu0 0
      %1676 = vmatpush1.bf16.msra.mxu0 0
      %1677 = vmatprep.subr.bf16.mxu0 0
      %1678 = vmatpush1.bf16.msra.mxu0 0
      %1679 = vmatprep.subr.bf16.mxu0 0
      %1680 = vmatpush1.bf16.msra.mxu0 0
      %1681 = vmatprep.subr.bf16.mxu0 0
      %1682 = vmatpush1.bf16.msra.mxu0 0
      %1683 = vmatprep.subr.bf16.mxu0 0
      %1684 = vmatpush1.bf16.msra.mxu0 0
      %1685 = vmatprep.subr.bf16.mxu0 0
      %1686 = vmatpush1.bf16.msra.mxu0 0
      %1687 = vmatprep.subr.bf16.mxu0 0
      %1688 = vmatpush1.bf16.msra.mxu0 %v1671
      %1689 = vmatprep.subr.bf16.mxu0 0
      %1690 = vmatpush2.bf16.msra.mxu0 0
      %1691 = vmatprep.subr.bf16.mxu0 0
      %1692 = vmatpush2.bf16.msra.mxu0 0
      %1693 = vmatprep.subr.bf16.mxu0 0
      %1694 = vmatpush2.bf16.msra.mxu0 0
      %1695 = vmatprep.subr.bf16.mxu0 0
      %1696 = vmatpush2.bf16.msra.mxu0 0
      %1697 = vmatprep.subr.bf16.mxu0 0
      %1698 = vmatpush2.bf16.msra.mxu0 0
      %1699 = vmatprep.subr.bf16.mxu0 0
      %1700 = vmatpush2.bf16.msra.mxu0 0
      %1701 = vmatprep.subr.bf16.mxu0 0
      %1702 = vmatpush2.bf16.msra.mxu0 0
      %1703 = vmatprep.subr.bf16.mxu0 0
      %1704 = vmatpush2.bf16.msra.mxu0 0
      %1705 = vmatprep.mubr.bf16.mxu0 0
      %1706 = vmatmul.mubr.bf16.gmra.mxu0 %v1178
      %v1707 = vpop.f32.mrf.mxu0
      %v1708 = vadd.f32 0.0, %v1707
      %v1709 = vpop.f32.mrf.mxu0
      %v1710 = vpop.f32.mrf.mxu0
      %v1711 = vadd.f32 0.0, %v1710
      %v1712 = vpop.f32.mrf.mxu0
      %1713 = vmatprep.mubr.bf16.mxu0 0
      %1714 = vmatmul.mubr.bf16.gmra.mxu0 %v1181
      %v1715 = vpop.f32.mrf.mxu0
      %v1716 = vadd.f32 0.0, %v1715
      %v1717 = vpop.f32.mrf.mxu0
      %v1718 = vpop.f32.mrf.mxu0
      %v1719 = vadd.f32 0.0, %v1718
      %v1720 = vpop.f32.mrf.mxu0
      %1721 = vmatprep.mubr.bf16.mxu0 0
      %1722 = vmatmul.mubr.bf16.gmra.mxu0 %v1184
      %v1723 = vpop.f32.mrf.mxu0
      %v1724 = vadd.f32 0.0, %v1723
      %v1725 = vpop.f32.mrf.mxu0
      %v1726 = vpop.f32.mrf.mxu0
      %v1727 = vadd.f32 0.0, %v1726
      %v1728 = vpop.f32.mrf.mxu0
      %1729 = vmatprep.mubr.bf16.mxu0 0
      %1730 = vmatmul.mubr.bf16.gmra.mxu0 %v1187
      %v1731 = vpop.f32.mrf.mxu0
      %v1732 = vadd.f32 0.0, %v1731
      %v1733 = vpop.f32.mrf.mxu0
      %v1734 = vpop.f32.mrf.mxu0
      %v1735 = vadd.f32 0.0, %v1734
      %v1736 = vpop.f32.mrf.mxu0
      %1737 = vmatprep.mubr.bf16.mxu0 0
      %1738 = vmatmul.mubr.bf16.gmra.mxu0 %v1190
      %v1739 = vpop.f32.mrf.mxu0
      %v1740 = vadd.f32 0.0, %v1739
      %v1741 = vpop.f32.mrf.mxu0
      %v1742 = vpop.f32.mrf.mxu0
      %v1743 = vadd.f32 0.0, %v1742
      %v1744 = vpop.f32.mrf.mxu0
      %1745 = vmatprep.mubr.bf16.mxu0 0
      %1746 = vmatmul.mubr.bf16.gmra.mxu0 %v1193
      %v1747 = vpop.f32.mrf.mxu0
      %v1748 = vadd.f32 0.0, %v1747
      %v1749 = vpop.f32.mrf.mxu0
      %v1750 = vpop.f32.mrf.mxu0
      %v1751 = vadd.f32 0.0, %v1750
      %v1752 = vpop.f32.mrf.mxu0
      %1753 = vmatprep.mubr.bf16.mxu0 0
      %1754 = vmatmul.mubr.bf16.gmra.mxu0 %v1196
      %v1755 = vpop.f32.mrf.mxu0
      %v1756 = vadd.f32 0.0, %v1755
      %v1757 = vpop.f32.mrf.mxu0
      %v1758 = vpop.f32.mrf.mxu0
      %v1759 = vadd.f32 0.0, %v1758
      %v1760 = vpop.f32.mrf.mxu0
      %1761 = vmatprep.mubr.bf16.mxu0 0
      %1762 = vmatmul.mubr.bf16.gmra.mxu0 %v1199
      %v1763 = vpop.f32.mrf.mxu0
      %v1764 = vadd.f32 0.0, %v1763
      %v1765 = vpop.f32.mrf.mxu0
      %v1766 = vpop.f32.mrf.mxu0
      %v1767 = vadd.f32 0.0, %v1766
      %v1768 = vpop.f32.mrf.mxu0
      %1769 = vmatprep.mubr.bf16.mxu0 0
      %1770 = vmatmul.mubr.bf16.gmra.mxu0 %v1202
      %v1771 = vpop.f32.mrf.mxu0
      %v1772 = vadd.f32 0.0, %v1771
      %v1773 = vpop.f32.mrf.mxu0
      %v1774 = vpop.f32.mrf.mxu0
      %v1775 = vadd.f32 0.0, %v1774
      %v1776 = vpop.f32.mrf.mxu0
      %1777 = vmatprep.mubr.bf16.mxu0 0
      %1778 = vmatmul.mubr.bf16.gmra.mxu0 %v1668
      %v1779 = vpop.f32.mrf.mxu0
      %v1780 = vadd.f32 0.0, %v1779
      %v1781 = vpop.f32.mrf.mxu0
      %v1782 = vpop.f32.mrf.mxu0
      %v1783 = vadd.f32 0.0, %v1782
      %v1784 = vpop.f32.mrf.mxu0
      %1785 = vdwg.mxu0
      %v1786 = vadd.f32 %v1634, %v1708
      %v1787 = vadd.f32 %v1635, %v1711
      %v1788 = vadd.f32 %v1636, %v1716
      %v1789 = vadd.f32 %v1637, %v1719
      %v1790 = vadd.f32 %v1638, %v1724
      %v1791 = vadd.f32 %v1639, %v1727
      %v1792 = vadd.f32 %v1640, %v1732
      %v1793 = vadd.f32 %v1641, %v1735
      %v1794 = vadd.f32 %v1642, %v1740
      %v1795 = vadd.f32 %v1643, %v1743
      %v1796 = vadd.f32 %v1644, %v1748
      %v1797 = vadd.f32 %v1645, %v1751
      %v1798 = vadd.f32 %v1646, %v1756
      %v1799 = vadd.f32 %v1647, %v1759
      %v1800 = vadd.f32 %v1648, %v1764
      %v1801 = vadd.f32 %v1649, %v1767
      %v1802 = vadd.f32 %v1650, %v1772
      %v1803 = vadd.f32 %v1651, %v1775
      %v1804 = vadd.f32 %v1652, %v1780
      %v1805 = vadd.f32 %v1653, %v1783
      %s1806 = scalar_lea.vmem %s4, 12
      %v1807 = vld [vmem:[%s1806] sm:$0x3]
      %v1810 = vunpack.c.l.b16 %v436
      %v1811 = vunpack.c.l.b16 %v437
      %v1812 = vpack.c.b16 %v1811, %v1810
      %v1814 = vsel %vm715, %v1812, 0
      %v1817 = vsel %vm746, %v1807, 0
      %1819 = vmatprep.subr.bf16.mxu0 0
      %1820 = vmatpush1.bf16.msra.mxu0 0
      %1821 = vmatprep.subr.bf16.mxu0 0
      %1822 = vmatpush1.bf16.msra.mxu0 0
      %1823 = vmatprep.subr.bf16.mxu0 0
      %1824 = vmatpush1.bf16.msra.mxu0 0
      %1825 = vmatprep.subr.bf16.mxu0 0
      %1826 = vmatpush1.bf16.msra.mxu0 0
      %1827 = vmatprep.subr.bf16.mxu0 0
      %1828 = vmatpush1.bf16.msra.mxu0 0
      %1829 = vmatprep.subr.bf16.mxu0 0
      %1830 = vmatpush1.bf16.msra.mxu0 0
      %1831 = vmatprep.subr.bf16.mxu0 0
      %1832 = vmatpush1.bf16.msra.mxu0 0
      %1833 = vmatprep.subr.bf16.mxu0 0
      %1834 = vmatpush1.bf16.msra.mxu0 %v1817
      %1835 = vmatprep.subr.bf16.mxu0 0
      %1836 = vmatpush2.bf16.msra.mxu0 0
      %1837 = vmatprep.subr.bf16.mxu0 0
      %1838 = vmatpush2.bf16.msra.mxu0 0
      %1839 = vmatprep.subr.bf16.mxu0 0
      %1840 = vmatpush2.bf16.msra.mxu0 0
      %1841 = vmatprep.subr.bf16.mxu0 0
      %1842 = vmatpush2.bf16.msra.mxu0 0
      %1843 = vmatprep.subr.bf16.mxu0 0
      %1844 = vmatpush2.bf16.msra.mxu0 0
      %1845 = vmatprep.subr.bf16.mxu0 0
      %1846 = vmatpush2.bf16.msra.mxu0 0
      %1847 = vmatprep.subr.bf16.mxu0 0
      %1848 = vmatpush2.bf16.msra.mxu0 0
      %1849 = vmatprep.subr.bf16.mxu0 0
      %1850 = vmatpush2.bf16.msra.mxu0 0
      %1851 = vmatprep.mubr.bf16.mxu0 0
      %1852 = vmatmul.mubr.bf16.gmra.mxu0 %v920
      %v1853 = vpop.f32.mrf.mxu0
      %v1854 = vadd.f32 0.0, %v1853
      %v1855 = vpop.f32.mrf.mxu0
      %v1856 = vpop.f32.mrf.mxu0
      %v1857 = vadd.f32 0.0, %v1856
      %v1858 = vpop.f32.mrf.mxu0
      %1859 = vmatprep.mubr.bf16.mxu0 0
      %1860 = vmatmul.mubr.bf16.gmra.mxu0 %v923
      %v1861 = vpop.f32.mrf.mxu0
      %v1862 = vadd.f32 0.0, %v1861
      %v1863 = vpop.f32.mrf.mxu0
      %v1864 = vpop.f32.mrf.mxu0
      %v1865 = vadd.f32 0.0, %v1864
      %v1866 = vpop.f32.mrf.mxu0
      %1867 = vmatprep.mubr.bf16.mxu0 0
      %1868 = vmatmul.mubr.bf16.gmra.mxu0 %v926
      %v1869 = vpop.f32.mrf.mxu0
      %v1870 = vadd.f32 0.0, %v1869
      %v1871 = vpop.f32.mrf.mxu0
      %v1872 = vpop.f32.mrf.mxu0
      %v1873 = vadd.f32 0.0, %v1872
      %v1874 = vpop.f32.mrf.mxu0
      %1875 = vmatprep.mubr.bf16.mxu0 0
      %1876 = vmatmul.mubr.bf16.gmra.mxu0 %v929
      %v1877 = vpop.f32.mrf.mxu0
      %v1878 = vadd.f32 0.0, %v1877
      %v1879 = vpop.f32.mrf.mxu0
      %v1880 = vpop.f32.mrf.mxu0
      %v1881 = vadd.f32 0.0, %v1880
      %v1882 = vpop.f32.mrf.mxu0
      %1883 = vmatprep.mubr.bf16.mxu0 0
      %1884 = vmatmul.mubr.bf16.gmra.mxu0 %v932
      %v1885 = vpop.f32.mrf.mxu0
      %v1886 = vadd.f32 0.0, %v1885
      %v1887 = vpop.f32.mrf.mxu0
      %v1888 = vpop.f32.mrf.mxu0
      %v1889 = vadd.f32 0.0, %v1888
      %v1890 = vpop.f32.mrf.mxu0
      %1891 = vmatprep.mubr.bf16.mxu0 0
      %1892 = vmatmul.mubr.bf16.gmra.mxu0 %v935
      %v1893 = vpop.f32.mrf.mxu0
      %v1894 = vadd.f32 0.0, %v1893
      %v1895 = vpop.f32.mrf.mxu0
      %v1896 = vpop.f32.mrf.mxu0
      %v1897 = vadd.f32 0.0, %v1896
      %v1898 = vpop.f32.mrf.mxu0
      %1899 = vmatprep.mubr.bf16.mxu0 0
      %1900 = vmatmul.mubr.bf16.gmra.mxu0 %v938
      %v1901 = vpop.f32.mrf.mxu0
      %v1902 = vadd.f32 0.0, %v1901
      %v1903 = vpop.f32.mrf.mxu0
      %v1904 = vpop.f32.mrf.mxu0
      %v1905 = vadd.f32 0.0, %v1904
      %v1906 = vpop.f32.mrf.mxu0
      %1907 = vmatprep.mubr.bf16.mxu0 0
      %1908 = vmatmul.mubr.bf16.gmra.mxu0 %v941
      %v1909 = vpop.f32.mrf.mxu0
      %v1910 = vadd.f32 0.0, %v1909
      %v1911 = vpop.f32.mrf.mxu0
      %v1912 = vpop.f32.mrf.mxu0
      %v1913 = vadd.f32 0.0, %v1912
      %v1914 = vpop.f32.mrf.mxu0
      %1915 = vmatprep.mubr.bf16.mxu0 0
      %1916 = vmatmul.mubr.bf16.gmra.mxu0 %v1348
      %v1917 = vpop.f32.mrf.mxu0
      %v1918 = vadd.f32 0.0, %v1917
      %v1919 = vpop.f32.mrf.mxu0
      %v1920 = vpop.f32.mrf.mxu0
      %v1921 = vadd.f32 0.0, %v1920
      %v1922 = vpop.f32.mrf.mxu0
      %1923 = vmatprep.mubr.bf16.mxu0 0
      %1924 = vmatmul.mubr.bf16.gmra.mxu0 %v1814
      %v1925 = vpop.f32.mrf.mxu0
      %v1926 = vadd.f32 0.0, %v1925
      %v1927 = vpop.f32.mrf.mxu0
      %v1928 = vpop.f32.mrf.mxu0
      %v1929 = vadd.f32 0.0, %v1928
      %v1930 = vpop.f32.mrf.mxu0
      %1931 = vdwg.mxu0
      %v1932 = vadd.f32 %v1786, %v1854
      %v1933 = vadd.f32 %v1787, %v1857
      %v1934 = vadd.f32 %v1788, %v1862
      %v1935 = vadd.f32 %v1789, %v1865
      %v1936 = vadd.f32 %v1790, %v1870
      %v1937 = vadd.f32 %v1791, %v1873
      %v1938 = vadd.f32 %v1792, %v1878
      %v1939 = vadd.f32 %v1793, %v1881
      %v1940 = vadd.f32 %v1794, %v1886
      %v1941 = vadd.f32 %v1795, %v1889
      %v1942 = vadd.f32 %v1796, %v1894
      %v1943 = vadd.f32 %v1797, %v1897
      %v1944 = vadd.f32 %v1798, %v1902
      %v1945 = vadd.f32 %v1799, %v1905
      %v1946 = vadd.f32 %v1800, %v1910
      %v1947 = vadd.f32 %v1801, %v1913
      %v1948 = vadd.f32 %v1802, %v1918
      %v1949 = vadd.f32 %v1803, %v1921
      %v1950 = vadd.f32 %v1804, %v1926
      %v1951 = vadd.f32 %v1805, %v1929
      %v1953 = vshrl.u32 %v436, 16
      %v1955 = vrot.slane %v1953, 4
      %v1956 = vshll.u32 %v436, 16
      %v1958 = vrot.slane %v1956, 5
      %v1959 = vor.u32 %v1955, %v1958
      %v1960 = vrot.slane %v1959, 4
      %v1962 = vshll.u32 %v437, 16
      %v1964 = vrot.slane %v1962, 5
      %v1965 = vsel %vm442, %v1960, %v1964
      %v1966 = vshrl.u32 %v437, 16
      %v1968 = vrot.slane %v1966, 4
      %v1969 = vor.u32 %v1968, %v1964
      %v1970 = vrot.slane %v1969, 4
      %v1972 = vshll.u32 %v438, 16
      %v1974 = vrot.slane %v1972, 5
      %v1975 = vsel %vm442, %v1970, %v1974
      %s1976 = scalar_lea.vmem %s4, 14
      %v1977 = vld [vmem:[%s1976] sm:$0x3]
      %v1978 = vunpack.c.l.b16 %v1965
      %v1979 = vunpack.c.l.b16 %v1975
      %v1980 = vpack.c.b16 %v1979, %v1978
      %v1982 = vsel %vm715, %v1980, 0
      %v1985 = vsel %vm746, %v1977, 0
      %1987 = vmatprep.subr.bf16.mxu0 0
      %1988 = vmatpush1.bf16.msra.mxu0 0
      %1989 = vmatprep.subr.bf16.mxu0 0
      %1990 = vmatpush1.bf16.msra.mxu0 0
      %1991 = vmatprep.subr.bf16.mxu0 0
      %1992 = vmatpush1.bf16.msra.mxu0 0
      %1993 = vmatprep.subr.bf16.mxu0 0
      %1994 = vmatpush1.bf16.msra.mxu0 0
      %1995 = vmatprep.subr.bf16.mxu0 0
      %1996 = vmatpush1.bf16.msra.mxu0 0
      %1997 = vmatprep.subr.bf16.mxu0 0
      %1998 = vmatpush1.bf16.msra.mxu0 0
      %1999 = vmatprep.subr.bf16.mxu0 0
      %2000 = vmatpush1.bf16.msra.mxu0 0
      %2001 = vmatprep.subr.bf16.mxu0 0
      %2002 = vmatpush1.bf16.msra.mxu0 %v1985
      %2003 = vmatprep.subr.bf16.mxu0 0
      %2004 = vmatpush2.bf16.msra.mxu0 0
      %2005 = vmatprep.subr.bf16.mxu0 0
      %2006 = vmatpush2.bf16.msra.mxu0 0
      %2007 = vmatprep.subr.bf16.mxu0 0
      %2008 = vmatpush2.bf16.msra.mxu0 0
      %2009 = vmatprep.subr.bf16.mxu0 0
      %2010 = vmatpush2.bf16.msra.mxu0 0
      %2011 = vmatprep.subr.bf16.mxu0 0
      %2012 = vmatpush2.bf16.msra.mxu0 0
      %2013 = vmatprep.subr.bf16.mxu0 0
      %2014 = vmatpush2.bf16.msra.mxu0 0
      %2015 = vmatprep.subr.bf16.mxu0 0
      %2016 = vmatpush2.bf16.msra.mxu0 0
      %2017 = vmatprep.subr.bf16.mxu0 0
      %2018 = vmatpush2.bf16.msra.mxu0 0
      %2019 = vmatprep.mubr.bf16.mxu0 0
      %2020 = vmatmul.mubr.bf16.gmra.mxu0 %v723
      %v2021 = vpop.f32.mrf.mxu0
      %v2022 = vadd.f32 0.0, %v2021
      %v2023 = vpop.f32.mrf.mxu0
      %v2024 = vpop.f32.mrf.mxu0
      %v2025 = vadd.f32 0.0, %v2024
      %v2026 = vpop.f32.mrf.mxu0
      %2027 = vmatprep.mubr.bf16.mxu0 0
      %2028 = vmatmul.mubr.bf16.gmra.mxu0 %v726
      %v2029 = vpop.f32.mrf.mxu0
      %v2030 = vadd.f32 0.0, %v2029
      %v2031 = vpop.f32.mrf.mxu0
      %v2032 = vpop.f32.mrf.mxu0
      %v2033 = vadd.f32 0.0, %v2032
      %v2034 = vpop.f32.mrf.mxu0
      %2035 = vmatprep.mubr.bf16.mxu0 0
      %2036 = vmatmul.mubr.bf16.gmra.mxu0 %v729
      %v2037 = vpop.f32.mrf.mxu0
      %v2038 = vadd.f32 0.0, %v2037
      %v2039 = vpop.f32.mrf.mxu0
      %v2040 = vpop.f32.mrf.mxu0
      %v2041 = vadd.f32 0.0, %v2040
      %v2042 = vpop.f32.mrf.mxu0
      %2043 = vmatprep.mubr.bf16.mxu0 0
      %2044 = vmatmul.mubr.bf16.gmra.mxu0 %v732
      %v2045 = vpop.f32.mrf.mxu0
      %v2046 = vadd.f32 0.0, %v2045
      %v2047 = vpop.f32.mrf.mxu0
      %v2048 = vpop.f32.mrf.mxu0
      %v2049 = vadd.f32 0.0, %v2048
      %v2050 = vpop.f32.mrf.mxu0
      %2051 = vmatprep.mubr.bf16.mxu0 0
      %2052 = vmatmul.mubr.bf16.gmra.mxu0 %v735
      %v2053 = vpop.f32.mrf.mxu0
      %v2054 = vadd.f32 0.0, %v2053
      %v2055 = vpop.f32.mrf.mxu0
      %v2056 = vpop.f32.mrf.mxu0
      %v2057 = vadd.f32 0.0, %v2056
      %v2058 = vpop.f32.mrf.mxu0
      %2059 = vmatprep.mubr.bf16.mxu0 0
      %2060 = vmatmul.mubr.bf16.gmra.mxu0 %v738
      %v2061 = vpop.f32.mrf.mxu0
      %v2062 = vadd.f32 0.0, %v2061
      %v2063 = vpop.f32.mrf.mxu0
      %v2064 = vpop.f32.mrf.mxu0
      %v2065 = vadd.f32 0.0, %v2064
      %v2066 = vpop.f32.mrf.mxu0
      %2067 = vmatprep.mubr.bf16.mxu0 0
      %2068 = vmatmul.mubr.bf16.gmra.mxu0 %v741
      %v2069 = vpop.f32.mrf.mxu0
      %v2070 = vadd.f32 0.0, %v2069
      %v2071 = vpop.f32.mrf.mxu0
      %v2072 = vpop.f32.mrf.mxu0
      %v2073 = vadd.f32 0.0, %v2072
      %v2074 = vpop.f32.mrf.mxu0
      %2075 = vmatprep.mubr.bf16.mxu0 0
      %2076 = vmatmul.mubr.bf16.gmra.mxu0 %v744
      %v2077 = vpop.f32.mrf.mxu0
      %v2078 = vadd.f32 0.0, %v2077
      %v2079 = vpop.f32.mrf.mxu0
      %v2080 = vpop.f32.mrf.mxu0
      %v2081 = vadd.f32 0.0, %v2080
      %v2082 = vpop.f32.mrf.mxu0
      %2083 = vmatprep.mubr.bf16.mxu0 0
      %2084 = vmatmul.mubr.bf16.gmra.mxu0 %v1516
      %v2085 = vpop.f32.mrf.mxu0
      %v2086 = vadd.f32 0.0, %v2085
      %v2087 = vpop.f32.mrf.mxu0
      %v2088 = vpop.f32.mrf.mxu0
      %v2089 = vadd.f32 0.0, %v2088
      %v2090 = vpop.f32.mrf.mxu0
      %2091 = vmatprep.mubr.bf16.mxu0 0
      %2092 = vmatmul.mubr.bf16.gmra.mxu0 %v1982
      %v2093 = vpop.f32.mrf.mxu0
      %v2094 = vadd.f32 0.0, %v2093
      %v2095 = vpop.f32.mrf.mxu0
      %v2096 = vpop.f32.mrf.mxu0
      %v2097 = vadd.f32 0.0, %v2096
      %v2098 = vpop.f32.mrf.mxu0
      %2099 = vdwg.mxu0
      %v2100 = vadd.f32 %v1932, %v2022
      %v2101 = vadd.f32 %v1933, %v2025
      %v2102 = vadd.f32 %v1934, %v2030
      %v2103 = vadd.f32 %v1935, %v2033
      %v2104 = vadd.f32 %v1936, %v2038
      %v2105 = vadd.f32 %v1937, %v2041
      %v2106 = vadd.f32 %v1938, %v2046
      %v2107 = vadd.f32 %v1939, %v2049
      %v2108 = vadd.f32 %v1940, %v2054
      %v2109 = vadd.f32 %v1941, %v2057
      %v2110 = vadd.f32 %v1942, %v2062
      %v2111 = vadd.f32 %v1943, %v2065
      %v2112 = vadd.f32 %v1944, %v2070
      %v2113 = vadd.f32 %v1945, %v2073
      %v2114 = vadd.f32 %v1946, %v2078
      %v2115 = vadd.f32 %v1947, %v2081
      %v2116 = vadd.f32 %v1948, %v2086
      %v2117 = vadd.f32 %v1949, %v2089
      %v2118 = vadd.f32 %v1950, %v2094
      %v2119 = vadd.f32 %v1951, %v2097
      %v2121 = vrot.slane %v436, 5
      %v2122 = vrot.slane %v2121, 4
      %v2123 = vrot.slane %v437, 5
      %v2124 = vsel %vm1071, %v2122, %v2123
      %v2125 = vrot.slane %v2123, 4
      %v2126 = vrot.slane %v438, 5
      %v2127 = vsel %vm1071, %v2125, %v2126
      %s2128 = scalar_lea.vmem %s4, 16
      %v2129 = vld [vmem:[%s2128] sm:$0x3]
      %v2130 = vunpack.c.l.b16 %v2124
      %v2131 = vunpack.c.l.b16 %v2127
      %v2132 = vpack.c.b16 %v2131, %v2130
      %v2134 = vsel %vm715, %v2132, 0
      %v2137 = vsel %vm746, %v2129, 0
      %2139 = vmatprep.subr.bf16.mxu0 0
      %2140 = vmatpush1.bf16.msra.mxu0 0
      %2141 = vmatprep.subr.bf16.mxu0 0
      %2142 = vmatpush1.bf16.msra.mxu0 0
      %2143 = vmatprep.subr.bf16.mxu0 0
      %2144 = vmatpush1.bf16.msra.mxu0 0
      %2145 = vmatprep.subr.bf16.mxu0 0
      %2146 = vmatpush1.bf16.msra.mxu0 0
      %2147 = vmatprep.subr.bf16.mxu0 0
      %2148 = vmatpush1.bf16.msra.mxu0 0
      %2149 = vmatprep.subr.bf16.mxu0 0
      %2150 = vmatpush1.bf16.msra.mxu0 0
      %2151 = vmatprep.subr.bf16.mxu0 0
      %2152 = vmatpush1.bf16.msra.mxu0 0
      %2153 = vmatprep.subr.bf16.mxu0 0
      %2154 = vmatpush1.bf16.msra.mxu0 %v2137
      %2155 = vmatprep.subr.bf16.mxu0 0
      %2156 = vmatpush2.bf16.msra.mxu0 0
      %2157 = vmatprep.subr.bf16.mxu0 0
      %2158 = vmatpush2.bf16.msra.mxu0 0
      %2159 = vmatprep.subr.bf16.mxu0 0
      %2160 = vmatpush2.bf16.msra.mxu0 0
      %2161 = vmatprep.subr.bf16.mxu0 0
      %2162 = vmatpush2.bf16.msra.mxu0 0
      %2163 = vmatprep.subr.bf16.mxu0 0
      %2164 = vmatpush2.bf16.msra.mxu0 0
      %2165 = vmatprep.subr.bf16.mxu0 0
      %2166 = vmatpush2.bf16.msra.mxu0 0
      %2167 = vmatprep.subr.bf16.mxu0 0
      %2168 = vmatpush2.bf16.msra.mxu0 0
      %2169 = vmatprep.subr.bf16.mxu0 0
      %2170 = vmatpush2.bf16.msra.mxu0 0
      %2171 = vmatprep.mubr.bf16.mxu0 0
      %2172 = vmatmul.mubr.bf16.gmra.mxu0 %v1181
      %v2173 = vpop.f32.mrf.mxu0
      %v2174 = vadd.f32 0.0, %v2173
      %v2175 = vpop.f32.mrf.mxu0
      %v2176 = vpop.f32.mrf.mxu0
      %v2177 = vadd.f32 0.0, %v2176
      %v2178 = vpop.f32.mrf.mxu0
      %2179 = vmatprep.mubr.bf16.mxu0 0
      %2180 = vmatmul.mubr.bf16.gmra.mxu0 %v1184
      %v2181 = vpop.f32.mrf.mxu0
      %v2182 = vadd.f32 0.0, %v2181
      %v2183 = vpop.f32.mrf.mxu0
      %v2184 = vpop.f32.mrf.mxu0
      %v2185 = vadd.f32 0.0, %v2184
      %v2186 = vpop.f32.mrf.mxu0
      %2187 = vmatprep.mubr.bf16.mxu0 0
      %2188 = vmatmul.mubr.bf16.gmra.mxu0 %v1187
      %v2189 = vpop.f32.mrf.mxu0
      %v2190 = vadd.f32 0.0, %v2189
      %v2191 = vpop.f32.mrf.mxu0
      %v2192 = vpop.f32.mrf.mxu0
      %v2193 = vadd.f32 0.0, %v2192
      %v2194 = vpop.f32.mrf.mxu0
      %2195 = vmatprep.mubr.bf16.mxu0 0
      %2196 = vmatmul.mubr.bf16.gmra.mxu0 %v1190
      %v2197 = vpop.f32.mrf.mxu0
      %v2198 = vadd.f32 0.0, %v2197
      %v2199 = vpop.f32.mrf.mxu0
      %v2200 = vpop.f32.mrf.mxu0
      %v2201 = vadd.f32 0.0, %v2200
      %v2202 = vpop.f32.mrf.mxu0
      %2203 = vmatprep.mubr.bf16.mxu0 0
      %2204 = vmatmul.mubr.bf16.gmra.mxu0 %v1193
      %v2205 = vpop.f32.mrf.mxu0
      %v2206 = vadd.f32 0.0, %v2205
      %v2207 = vpop.f32.mrf.mxu0
      %v2208 = vpop.f32.mrf.mxu0
      %v2209 = vadd.f32 0.0, %v2208
      %v2210 = vpop.f32.mrf.mxu0
      %2211 = vmatprep.mubr.bf16.mxu0 0
      %2212 = vmatmul.mubr.bf16.gmra.mxu0 %v1196
      %v2213 = vpop.f32.mrf.mxu0
      %v2214 = vadd.f32 0.0, %v2213
      %v2215 = vpop.f32.mrf.mxu0
      %v2216 = vpop.f32.mrf.mxu0
      %v2217 = vadd.f32 0.0, %v2216
      %v2218 = vpop.f32.mrf.mxu0
      %2219 = vmatprep.mubr.bf16.mxu0 0
      %2220 = vmatmul.mubr.bf16.gmra.mxu0 %v1199
      %v2221 = vpop.f32.mrf.mxu0
      %v2222 = vadd.f32 0.0, %v2221
      %v2223 = vpop.f32.mrf.mxu0
      %v2224 = vpop.f32.mrf.mxu0
      %v2225 = vadd.f32 0.0, %v2224
      %v2226 = vpop.f32.mrf.mxu0
      %2227 = vmatprep.mubr.bf16.mxu0 0
      %2228 = vmatmul.mubr.bf16.gmra.mxu0 %v1202
      %v2229 = vpop.f32.mrf.mxu0
      %v2230 = vadd.f32 0.0, %v2229
      %v2231 = vpop.f32.mrf.mxu0
      %v2232 = vpop.f32.mrf.mxu0
      %v2233 = vadd.f32 0.0, %v2232
      %v2234 = vpop.f32.mrf.mxu0
      %2235 = vmatprep.mubr.bf16.mxu0 0
      %2236 = vmatmul.mubr.bf16.gmra.mxu0 %v1668
      %v2237 = vpop.f32.mrf.mxu0
      %v2238 = vadd.f32 0.0, %v2237
      %v2239 = vpop.f32.mrf.mxu0
      %v2240 = vpop.f32.mrf.mxu0
      %v2241 = vadd.f32 0.0, %v2240
      %v2242 = vpop.f32.mrf.mxu0
      %2243 = vmatprep.mubr.bf16.mxu0 0
      %2244 = vmatmul.mubr.bf16.gmra.mxu0 %v2134
      %v2245 = vpop.f32.mrf.mxu0
      %v2246 = vadd.f32 0.0, %v2245
      %v2247 = vpop.f32.mrf.mxu0
      %v2248 = vpop.f32.mrf.mxu0
      %v2249 = vadd.f32 0.0, %v2248
      %v2250 = vpop.f32.mrf.mxu0
      %2251 = vdwg.mxu0
      %v2252 = vadd.f32 %v2100, %v2174
      %v2253 = vadd.f32 %v2101, %v2177
      %v2254 = vadd.f32 %v2102, %v2182
      %v2255 = vadd.f32 %v2103, %v2185
      %v2256 = vadd.f32 %v2104, %v2190
      %v2257 = vadd.f32 %v2105, %v2193
      %v2258 = vadd.f32 %v2106, %v2198
      %v2259 = vadd.f32 %v2107, %v2201
      %v2260 = vadd.f32 %v2108, %v2206
      %v2261 = vadd.f32 %v2109, %v2209
      %v2262 = vadd.f32 %v2110, %v2214
      %v2263 = vadd.f32 %v2111, %v2217
      %v2264 = vadd.f32 %v2112, %v2222
      %v2265 = vadd.f32 %v2113, %v2225
      %v2266 = vadd.f32 %v2114, %v2230
      %v2267 = vadd.f32 %v2115, %v2233
      %v2268 = vadd.f32 %v2116, %v2238
      %v2269 = vadd.f32 %v2117, %v2241
      %v2270 = vadd.f32 %v2118, %v2246
      %v2271 = vadd.f32 %v2119, %v2249
      %v2272 = vld [vmem:[%s5] sm:$0x1]
      %v2274 = vlaneseq
      %v2275 = vshrl.u32 %v2274, 7
      %v2276 = vsub.s32 0, %v2275
      %v2277 = vrot.slane %v2272, %v2276
      %v2279 = vadd.f32 %v2252, %v2277
      %v2280 = vadd.f32 %v2253, %v2277
      %v2281 = vadd.f32 %v2254, %v2277
      %v2282 = vadd.f32 %v2255, %v2277
      %v2283 = vadd.f32 %v2256, %v2277
      %v2284 = vadd.f32 %v2257, %v2277
      %v2285 = vadd.f32 %v2258, %v2277
      %v2286 = vadd.f32 %v2259, %v2277
      %v2287 = vadd.f32 %v2260, %v2277
      %v2288 = vadd.f32 %v2261, %v2277
      %v2289 = vadd.f32 %v2262, %v2277
      %v2290 = vadd.f32 %v2263, %v2277
      %v2291 = vadd.f32 %v2264, %v2277
      %v2292 = vadd.f32 %v2265, %v2277
      %v2293 = vadd.f32 %v2266, %v2277
      %v2294 = vadd.f32 %v2267, %v2277
      %v2295 = vadd.f32 %v2268, %v2277
      %v2296 = vadd.f32 %v2269, %v2277
      %v2297 = vadd.f32 %v2270, %v2277
      %v2298 = vadd.f32 %v2271, %v2277
      %v2299 = vmax.f32 %v2279, 0.0
      %v2300 = vmax.f32 %v2280, 0.0
      %v2301 = vmax.f32 %v2281, 0.0
      %v2302 = vmax.f32 %v2282, 0.0
      %v2303 = vmax.f32 %v2283, 0.0
      %v2304 = vmax.f32 %v2284, 0.0
      %v2305 = vmax.f32 %v2285, 0.0
      %v2306 = vmax.f32 %v2286, 0.0
      %v2307 = vmax.f32 %v2287, 0.0
      %v2308 = vmax.f32 %v2288, 0.0
      %v2309 = vmax.f32 %v2289, 0.0
      %v2310 = vmax.f32 %v2290, 0.0
      %v2311 = vmax.f32 %v2291, 0.0
      %v2312 = vmax.f32 %v2292, 0.0
      %v2313 = vmax.f32 %v2293, 0.0
      %v2314 = vmax.f32 %v2294, 0.0
      %v2315 = vmax.f32 %v2295, 0.0
      %v2316 = vmax.f32 %v2296, 0.0
      %v2317 = vmax.f32 %v2297, 0.0
      %v2318 = vmax.f32 %v2298, 0.0
      %v2319 = vpack.c.bf16 %v2300, %v2299
      %v2320 = vpack.c.bf16 %v2302, %v2301
      %v2321 = vpack.c.bf16 %v2304, %v2303
      %v2322 = vpack.c.bf16 %v2306, %v2305
      %v2323 = vpack.c.bf16 %v2308, %v2307
      %v2324 = vpack.c.bf16 %v2310, %v2309
      %v2325 = vpack.c.bf16 %v2312, %v2311
      %v2326 = vpack.c.bf16 %v2314, %v2313
      %v2327 = vpack.c.bf16 %v2316, %v2315
      %v2328 = vpack.c.bf16 %v2318, %v2317
      %s2329 = ssub.s32 %s399, 1
      %v2330 = vstv %s2329
      %v2331 = vadd.s32 %v2330, 1
      %v2332 = vadd.s32 %v2330, 2
      %v2333 = vadd.s32 %v2330, 3
      %v2334 = vadd.s32 %v2330, 4
      %v2335 = vadd.s32 %v2330, 5
      %v2336 = vadd.s32 %v2330, 6
      %v2337 = vadd.s32 %v2330, 7
      %v2338 = vadd.s32 %v2330, 8
      %v2339 = vadd.s32 %v2330, 9
      %vm2340 = vcmp.ge.s32.totalorder %v2330, 0
      %vm2341 = vcmp.ge.s32.totalorder %v2331, 0
      %vm2342 = vcmp.ge.s32.totalorder %v2332, 0
      %vm2343 = vcmp.ge.s32.totalorder %v2333, 0
      %vm2344 = vcmp.ge.s32.totalorder %v2334, 0
      %vm2345 = vcmp.ge.s32.totalorder %v2335, 0
      %vm2346 = vcmp.ge.s32.totalorder %v2336, 0
      %vm2347 = vcmp.ge.s32.totalorder %v2337, 0
      %vm2348 = vcmp.ge.s32.totalorder %v2338, 0
      %vm2349 = vcmp.ge.s32.totalorder %v2339, 0
      %vm2350 = vcmp.lt.s32.totalorder %v2330, 16
      %vm2351 = vcmp.lt.s32.totalorder %v2331, 16
      %vm2352 = vcmp.lt.s32.totalorder %v2332, 16
      %vm2353 = vcmp.lt.s32.totalorder %v2333, 16
      %vm2354 = vcmp.lt.s32.totalorder %v2334, 16
      %vm2355 = vcmp.lt.s32.totalorder %v2335, 16
      %vm2356 = vcmp.lt.s32.totalorder %v2336, 16
      %vm2357 = vcmp.lt.s32.totalorder %v2337, 16
      %vm2358 = vcmp.lt.s32.totalorder %v2338, 16
      %vm2359 = vcmp.lt.s32.totalorder %v2339, 16
      %vm2360 = vmand %vm2340, %vm2350
      %vm2361 = vmand %vm2341, %vm2351
      %vm2362 = vmand %vm2342, %vm2352
      %vm2363 = vmand %vm2343, %vm2353
      %vm2364 = vmand %vm2344, %vm2354
      %vm2365 = vmand %vm2345, %vm2355
      %vm2366 = vmand %vm2346, %vm2356
      %vm2367 = vmand %vm2347, %vm2357
      %vm2368 = vmand %vm2348, %vm2358
      %vm2369 = vmand %vm2349, %vm2359
      %v2370 = vsel %vm2360, %v2319, 0
      %v2371 = vsel %vm2361, %v2320, 0
      %v2372 = vsel %vm2362, %v2321, 0
      %v2373 = vsel %vm2363, %v2322, 0
      %v2374 = vsel %vm2364, %v2323, 0
      %v2375 = vsel %vm2365, %v2324, 0
      %v2376 = vsel %vm2366, %v2325, 0
      %v2377 = vsel %vm2367, %v2326, 0
      %v2378 = vsel %vm2368, %v2327, 0
      %v2379 = vsel %vm2369, %v2328, 0
      %vm2380 = vcmask 1040384
      %vm2381 = vsmask.f32 256
      %vm2382 = vmand %vm2380, %vm2381
      %v2383 = vld [vmem:[#allocation2] sm:$0x1]
      %v2384 = vsel %vm2382, 0, %v2383
      %2385 = vst [vmem:[#allocation2] sm:$0x1] %v2384
      %v2386 = vld [vmem:[#allocation2 + $0xc] sm:$0x1]
      %v2387 = vsel %vm2382, 0, %v2386
      %2388 = vst [vmem:[#allocation2 + $0xc] sm:$0x1] %v2387
      %v2389 = vld [vmem:[#allocation2 + $0x18] sm:$0x1]
      %v2390 = vsel %vm2382, 0, %v2389
      %2391 = vst [vmem:[#allocation2 + $0x18] sm:$0x1] %v2390
      %v2392 = vld [vmem:[#allocation2 + $0x24] sm:$0x1]
      %v2393 = vsel %vm2382, 0, %v2392
      %2394 = vst [vmem:[#allocation2 + $0x24] sm:$0x1] %v2393
      %v2395 = vld [vmem:[#allocation2 + $0x30] sm:$0x1]
      %v2396 = vsel %vm2382, 0, %v2395
      %2397 = vst [vmem:[#allocation2 + $0x30] sm:$0x1] %v2396
      %v2398 = vld [vmem:[#allocation2 + $0x3c] sm:$0x1]
      %v2399 = vsel %vm2382, 0, %v2398
      %2400 = vst [vmem:[#allocation2 + $0x3c] sm:$0x1] %v2399
      %v2401 = vld [vmem:[#allocation2 + $0x48] sm:$0x1]
      %v2402 = vsel %vm2382, 0, %v2401
      %2403 = vst [vmem:[#allocation2 + $0x48] sm:$0x1] %v2402
      %v2404 = vld [vmem:[#allocation2 + $0x54] sm:$0x1]
      %v2405 = vsel %vm2382, 0, %v2404
      %2406 = vst [vmem:[#allocation2 + $0x54] sm:$0x1] %v2405
      %v2407 = vld [vmem:[#allocation2 + $0x60] sm:$0x1]
      %v2408 = vsel %vm2382, 0, %v2407
      %2409 = vst [vmem:[#allocation2 + $0x60] sm:$0x1] %v2408
      %v2410 = vld [vmem:[#allocation2 + $0x6c] sm:$0x1]
      %v2411 = vsel %vm2382, 0, %v2410
      %2412 = vst [vmem:[#allocation2 + $0x6c] sm:$0x1] %v2411
      %vm2413 = vsmask.f32 7938
      %vm2414 = vmand %vm2380, %vm2413
      %v2415 = vld [vmem:[#allocation2 + $0x8] sm:$0x1]
      %v2416 = vsel %vm2414, 0, %v2415
      %2417 = vst [vmem:[#allocation2 + $0x8] sm:$0x1] %v2416
      %v2418 = vld [vmem:[#allocation2 + $0x14] sm:$0x1]
      %v2419 = vsel %vm2414, 0, %v2418
      %2420 = vst [vmem:[#allocation2 + $0x14] sm:$0x1] %v2419
      %v2421 = vld [vmem:[#allocation2 + $0x20] sm:$0x1]
      %v2422 = vsel %vm2414, 0, %v2421
      %2423 = vst [vmem:[#allocation2 + $0x20] sm:$0x1] %v2422
      %v2424 = vld [vmem:[#allocation2 + $0x2c] sm:$0x1]
      %v2425 = vsel %vm2414, 0, %v2424
      %2426 = vst [vmem:[#allocation2 + $0x2c] sm:$0x1] %v2425
      %v2427 = vld [vmem:[#allocation2 + $0x38] sm:$0x1]
      %v2428 = vsel %vm2414, 0, %v2427
      %2429 = vst [vmem:[#allocation2 + $0x38] sm:$0x1] %v2428
      %v2430 = vld [vmem:[#allocation2 + $0x44] sm:$0x1]
      %v2431 = vsel %vm2414, 0, %v2430
      %2432 = vst [vmem:[#allocation2 + $0x44] sm:$0x1] %v2431
      %v2433 = vld [vmem:[#allocation2 + $0x50] sm:$0x1]
      %v2434 = vsel %vm2414, 0, %v2433
      %2435 = vst [vmem:[#allocation2 + $0x50] sm:$0x1] %v2434
      %v2436 = vld [vmem:[#allocation2 + $0x5c] sm:$0x1]
      %v2437 = vsel %vm2414, 0, %v2436
      %2438 = vst [vmem:[#allocation2 + $0x5c] sm:$0x1] %v2437
      %v2439 = vld [vmem:[#allocation2 + $0x68] sm:$0x1]
      %v2440 = vsel %vm2414, 0, %v2439
      %2441 = vst [vmem:[#allocation2 + $0x68] sm:$0x1] %v2440
      %v2442 = vld [vmem:[#allocation2 + $0x74] sm:$0x1]
      %v2443 = vsel %vm2414, 0, %v2442
      %2444 = vst [vmem:[#allocation2 + $0x74] sm:$0x1] %v2443
      %v2455 = vunpack.c.l.b16 %v2370
      %v2456 = vunpack.c.h.b16 %v2370
      %v2457 = vunpack.c.l.b16 %v2371
      %v2458 = vunpack.c.h.b16 %v2371
      %v2459 = vunpack.c.l.b16 %v2372
      %v2460 = vunpack.c.h.b16 %v2372
      %v2461 = vunpack.c.l.b16 %v2373
      %v2462 = vunpack.c.h.b16 %v2373
      %v2463 = vunpack.c.l.b16 %v2374
      %v2464 = vunpack.c.h.b16 %v2374
      %v2465 = vunpack.c.l.b16 %v2375
      %v2466 = vunpack.c.h.b16 %v2375
      %v2467 = vunpack.c.l.b16 %v2376
      %v2468 = vunpack.c.h.b16 %v2376
      %v2469 = vunpack.c.l.b16 %v2377
      %v2470 = vunpack.c.h.b16 %v2377
      %v2471 = vunpack.c.l.b16 %v2378
      %v2472 = vunpack.c.h.b16 %v2378
      %v2473 = vunpack.c.l.b16 %v2379
      %v2474 = vunpack.c.h.b16 %v2379
      %v2475 = vpack.c.b16 %v2455, %v2455
      %v2476 = vpack.c.b16 %v2456, %v2456
      %v2477 = vpack.c.b16 %v2457, %v2457
      %v2478 = vpack.c.b16 %v2458, %v2458
      %v2479 = vpack.c.b16 %v2459, %v2459
      %v2480 = vpack.c.b16 %v2460, %v2460
      %v2481 = vpack.c.b16 %v2461, %v2461
      %v2482 = vpack.c.b16 %v2462, %v2462
      %v2483 = vpack.c.b16 %v2463, %v2463
      %v2484 = vpack.c.b16 %v2464, %v2464
      %v2485 = vpack.c.b16 %v2465, %v2465
      %v2486 = vpack.c.b16 %v2466, %v2466
      %v2487 = vpack.c.b16 %v2467, %v2467
      %v2488 = vpack.c.b16 %v2468, %v2468
      %v2489 = vpack.c.b16 %v2469, %v2469
      %v2490 = vpack.c.b16 %v2470, %v2470
      %v2491 = vpack.c.b16 %v2471, %v2471
      %v2492 = vpack.c.b16 %v2472, %v2472
      %v2493 = vpack.c.b16 %v2473, %v2473
      %v2494 = vpack.c.b16 %v2474, %v2474
      %vm2495 = vsmask.f32 4368
      %vm2496 = vmor %vm2381, %vm2495
      %v2498 = vshrl.u32 %v2475, 16
      %v2500 = vrot.slane %v2498, 7
      %v2501 = vshll.u32 %v2475, 16
      %v2503 = vor.u32 %v2500, %v2501
      %v2504 = vrot.slane %v2500, 4
      %v2506 = vshrl.u32 %v2476, 16
      %v2508 = vrot.slane %v2506, 7
      %v2509 = vshll.u32 %v2476, 16
      %v2511 = vor.u32 %v2508, %v2509
      %v2512 = vsel %vm2496, %v2504, %v2511
      %v2513 = vrot.slane %v2508, 4
      %v2515 = vshrl.u32 %v2477, 16
      %v2517 = vrot.slane %v2515, 7
      %v2518 = vshll.u32 %v2477, 16
      %v2520 = vor.u32 %v2517, %v2518
      %v2521 = vrot.slane %v2517, 4
      %v2523 = vshrl.u32 %v2478, 16
      %v2525 = vrot.slane %v2523, 7
      %v2526 = vshll.u32 %v2478, 16
      %v2528 = vor.u32 %v2525, %v2526
      %v2529 = vsel %vm2496, %v2521, %v2528
      %v2530 = vrot.slane %v2525, 4
      %v2532 = vshrl.u32 %v2479, 16
      %v2534 = vrot.slane %v2532, 7
      %v2535 = vshll.u32 %v2479, 16
      %v2537 = vor.u32 %v2534, %v2535
      %v2538 = vrot.slane %v2534, 4
      %v2540 = vshrl.u32 %v2480, 16
      %v2542 = vrot.slane %v2540, 7
      %v2543 = vshll.u32 %v2480, 16
      %v2545 = vor.u32 %v2542, %v2543
      %v2546 = vsel %vm2496, %v2538, %v2545
      %v2547 = vrot.slane %v2542, 4
      %v2549 = vshrl.u32 %v2481, 16
      %v2551 = vrot.slane %v2549, 7
      %v2552 = vshll.u32 %v2481, 16
      %v2554 = vor.u32 %v2551, %v2552
      %v2555 = vrot.slane %v2551, 4
      %v2557 = vshrl.u32 %v2482, 16
      %v2559 = vrot.slane %v2557, 7
      %v2560 = vshll.u32 %v2482, 16
      %v2562 = vor.u32 %v2559, %v2560
      %v2563 = vsel %vm2496, %v2555, %v2562
      %v2564 = vrot.slane %v2559, 4
      %v2566 = vshrl.u32 %v2483, 16
      %v2568 = vrot.slane %v2566, 7
      %v2569 = vshll.u32 %v2483, 16
      %v2571 = vor.u32 %v2568, %v2569
      %v2572 = vrot.slane %v2568, 4
      %v2574 = vshrl.u32 %v2484, 16
      %v2576 = vrot.slane %v2574, 7
      %v2577 = vshll.u32 %v2484, 16
      %v2579 = vor.u32 %v2576, %v2577
      %v2580 = vsel %vm2496, %v2572, %v2579
      %v2581 = vrot.slane %v2576, 4
      %v2583 = vshrl.u32 %v2485, 16
      %v2585 = vrot.slane %v2583, 7
      %v2586 = vshll.u32 %v2485, 16
      %v2588 = vor.u32 %v2585, %v2586
      %v2589 = vrot.slane %v2585, 4
      %v2591 = vshrl.u32 %v2486, 16
      %v2593 = vrot.slane %v2591, 7
      %v2594 = vshll.u32 %v2486, 16
      %v2596 = vor.u32 %v2593, %v2594
      %v2597 = vsel %vm2496, %v2589, %v2596
      %v2598 = vrot.slane %v2593, 4
      %v2600 = vshrl.u32 %v2487, 16
      %v2602 = vrot.slane %v2600, 7
      %v2603 = vshll.u32 %v2487, 16
      %v2605 = vor.u32 %v2602, %v2603
      %v2606 = vrot.slane %v2602, 4
      %v2608 = vshrl.u32 %v2488, 16
      %v2610 = vrot.slane %v2608, 7
      %v2611 = vshll.u32 %v2488, 16
      %v2613 = vor.u32 %v2610, %v2611
      %v2614 = vsel %vm2496, %v2606, %v2613
      %v2615 = vrot.slane %v2610, 4
      %v2617 = vshrl.u32 %v2489, 16
      %v2619 = vrot.slane %v2617, 7
      %v2620 = vshll.u32 %v2489, 16
      %v2622 = vor.u32 %v2619, %v2620
      %v2623 = vrot.slane %v2619, 4
      %v2625 = vshrl.u32 %v2490, 16
      %v2627 = vrot.slane %v2625, 7
      %v2628 = vshll.u32 %v2490, 16
      %v2630 = vor.u32 %v2627, %v2628
      %v2631 = vsel %vm2496, %v2623, %v2630
      %v2632 = vrot.slane %v2627, 4
      %v2634 = vshrl.u32 %v2491, 16
      %v2636 = vrot.slane %v2634, 7
      %v2637 = vshll.u32 %v2491, 16
      %v2639 = vor.u32 %v2636, %v2637
      %v2640 = vrot.slane %v2636, 4
      %v2642 = vshrl.u32 %v2492, 16
      %v2644 = vrot.slane %v2642, 7
      %v2645 = vshll.u32 %v2492, 16
      %v2647 = vor.u32 %v2644, %v2645
      %v2648 = vsel %vm2496, %v2640, %v2647
      %v2649 = vrot.slane %v2644, 4
      %v2651 = vshrl.u32 %v2493, 16
      %v2653 = vrot.slane %v2651, 7
      %v2654 = vshll.u32 %v2493, 16
      %v2656 = vor.u32 %v2653, %v2654
      %v2657 = vrot.slane %v2653, 4
      %v2659 = vshrl.u32 %v2494, 16
      %v2661 = vrot.slane %v2659, 7
      %v2662 = vshll.u32 %v2494, 16
      %v2664 = vor.u32 %v2661, %v2662
      %v2665 = vsel %vm2496, %v2657, %v2664
      %v2666 = vrot.slane %v2661, 4
      %vm2697 = vcmask 1043456
      %vm2698 = vmand %vm2697, %vm2413
      %v2699 = vld [vmem:[#allocation2] sm:$0xf]
      %v2700 = vsel %vm2698, %v2503, %v2699
      %2701 = vst [vmem:[#allocation2] sm:$0xf] %v2700
      %2702 = vst [vmem:[#allocation2 + $0x4] sm:$0xf] %v2512
      %v2703 = vld [vmem:[#allocation2 + $0x8] sm:$0x1]
      %v2704 = vsel %vm2382, %v2513, %v2703
      %2705 = vst [vmem:[#allocation2 + $0x8] sm:$0x1] %v2704
      %v2706 = vld [vmem:[#allocation2 + $0xc] sm:$0xf]
      %v2707 = vsel %vm2698, %v2520, %v2706
      %2708 = vst [vmem:[#allocation2 + $0xc] sm:$0xf] %v2707
      %2709 = vst [vmem:[#allocation2 + $0x10] sm:$0xf] %v2529
      %v2710 = vld [vmem:[#allocation2 + $0x14] sm:$0x1]
      %v2711 = vsel %vm2382, %v2530, %v2710
      %2712 = vst [vmem:[#allocation2 + $0x14] sm:$0x1] %v2711
      %v2713 = vld [vmem:[#allocation2 + $0x18] sm:$0xf]
      %v2714 = vsel %vm2698, %v2537, %v2713
      %2715 = vst [vmem:[#allocation2 + $0x18] sm:$0xf] %v2714
      %2716 = vst [vmem:[#allocation2 + $0x1c] sm:$0xf] %v2546
      %v2717 = vld [vmem:[#allocation2 + $0x20] sm:$0x1]
      %v2718 = vsel %vm2382, %v2547, %v2717
      %2719 = vst [vmem:[#allocation2 + $0x20] sm:$0x1] %v2718
      %v2720 = vld [vmem:[#allocation2 + $0x24] sm:$0xf]
      %v2721 = vsel %vm2698, %v2554, %v2720
      %2722 = vst [vmem:[#allocation2 + $0x24] sm:$0xf] %v2721
      %2723 = vst [vmem:[#allocation2 + $0x28] sm:$0xf] %v2563
      %v2724 = vld [vmem:[#allocation2 + $0x2c] sm:$0x1]
      %v2725 = vsel %vm2382, %v2564, %v2724
      %2726 = vst [vmem:[#allocation2 + $0x2c] sm:$0x1] %v2725
      %v2727 = vld [vmem:[#allocation2 + $0x30] sm:$0xf]
      %v2728 = vsel %vm2698, %v2571, %v2727
      %2729 = vst [vmem:[#allocation2 + $0x30] sm:$0xf] %v2728
      %2730 = vst [vmem:[#allocation2 + $0x34] sm:$0xf] %v2580
      %v2731 = vld [vmem:[#allocation2 + $0x38] sm:$0x1]
      %v2732 = vsel %vm2382, %v2581, %v2731
      %2733 = vst [vmem:[#allocation2 + $0x38] sm:$0x1] %v2732
      %v2734 = vld [vmem:[#allocation2 + $0x3c] sm:$0xf]
      %v2735 = vsel %vm2698, %v2588, %v2734
      %2736 = vst [vmem:[#allocation2 + $0x3c] sm:$0xf] %v2735
      %2737 = vst [vmem:[#allocation2 + $0x40] sm:$0xf] %v2597
      %v2738 = vld [vmem:[#allocation2 + $0x44] sm:$0x1]
      %v2739 = vsel %vm2382, %v2598, %v2738
      %2740 = vst [vmem:[#allocation2 + $0x44] sm:$0x1] %v2739
      %v2741 = vld [vmem:[#allocation2 + $0x48] sm:$0xf]
      %v2742 = vsel %vm2698, %v2605, %v2741
      %2743 = vst [vmem:[#allocation2 + $0x48] sm:$0xf] %v2742
      %2744 = vst [vmem:[#allocation2 + $0x4c] sm:$0xf] %v2614
      %v2745 = vld [vmem:[#allocation2 + $0x50] sm:$0x1]
      %v2746 = vsel %vm2382, %v2615, %v2745
      %2747 = vst [vmem:[#allocation2 + $0x50] sm:$0x1] %v2746
      %v2748 = vld [vmem:[#allocation2 + $0x54] sm:$0xf]
      %v2749 = vsel %vm2698, %v2622, %v2748
      %2750 = vst [vmem:[#allocation2 + $0x54] sm:$0xf] %v2749
      %2751 = vst [vmem:[#allocation2 + $0x58] sm:$0xf] %v2631
      %v2752 = vld [vmem:[#allocation2 + $0x5c] sm:$0x1]
      %v2753 = vsel %vm2382, %v2632, %v2752
      %2754 = vst [vmem:[#allocation2 + $0x5c] sm:$0x1] %v2753
      %v2755 = vld [vmem:[#allocation2 + $0x60] sm:$0xf]
      %v2756 = vsel %vm2698, %v2639, %v2755
      %2757 = vst [vmem:[#allocation2 + $0x60] sm:$0xf] %v2756
      %2758 = vst [vmem:[#allocation2 + $0x64] sm:$0xf] %v2648
      %v2759 = vld [vmem:[#allocation2 + $0x68] sm:$0x1]
      %v2760 = vsel %vm2382, %v2649, %v2759
      %2761 = vst [vmem:[#allocation2 + $0x68] sm:$0x1] %v2760
      %v2762 = vld [vmem:[#allocation2 + $0x6c] sm:$0xf]
      %v2763 = vsel %vm2698, %v2656, %v2762
      %2764 = vst [vmem:[#allocation2 + $0x6c] sm:$0xf] %v2763
      %2765 = vst [vmem:[#allocation2 + $0x70] sm:$0xf] %v2665
      %v2766 = vld [vmem:[#allocation2 + $0x74] sm:$0x1]
      %v2767 = vsel %vm2382, %v2666, %v2766
      %2768 = vst [vmem:[#allocation2 + $0x74] sm:$0x1] %v2767
      %v2769 = vld [vmem:[#allocation2] sm:$0xf]
      %v2770 = vld [vmem:[#allocation2 + $0x4] sm:$0xf]
      %v2771 = vld [vmem:[#allocation2 + $0xc] sm:$0xf]
      %v2772 = vld [vmem:[#allocation2 + $0x10] sm:$0xf]
      %v2773 = vld [vmem:[#allocation2 + $0x18] sm:$0xf]
      %v2774 = vld [vmem:[#allocation2 + $0x1c] sm:$0xf]
      %v2775 = vld [vmem:[#allocation2 + $0x24] sm:$0xf]
      %v2776 = vld [vmem:[#allocation2 + $0x28] sm:$0xf]
      %v2777 = vld [vmem:[#allocation2 + $0x30] sm:$0xf]
      %v2778 = vld [vmem:[#allocation2 + $0x34] sm:$0xf]
      %v2779 = vld [vmem:[#allocation2 + $0x3c] sm:$0xf]
      %v2780 = vld [vmem:[#allocation2 + $0x40] sm:$0xf]
      %v2781 = vld [vmem:[#allocation2 + $0x48] sm:$0xf]
      %v2782 = vld [vmem:[#allocation2 + $0x4c] sm:$0xf]
      %v2783 = vld [vmem:[#allocation2 + $0x54] sm:$0xf]
      %v2784 = vld [vmem:[#allocation2 + $0x58] sm:$0xf]
      %v2785 = vld [vmem:[%s6] sm:$0xff]
      %v2786 = vld [vmem:[%s6 + $0x8] sm:$0xff]
      %v2787 = vld [vmem:[%s6 + $0x10] sm:$0xff]
      %v2788 = vld [vmem:[%s6 + $0x18] sm:$0xff]
      %v2789 = vld [vmem:[%s6 + $0x20] sm:$0xff]
      %v2790 = vld [vmem:[%s6 + $0x28] sm:$0xff]
      %v2791 = vld [vmem:[%s6 + $0x30] sm:$0xff]
      %v2792 = vld [vmem:[%s6 + $0x38] sm:$0xff]
      %v2793 = vld [vmem:[%s6 + $0x40] sm:$0xff]
      %v2794 = vld [vmem:[%s6 + $0x48] sm:$0xff]
      %v2795 = vld [vmem:[%s6 + $0x50] sm:$0xff]
      %v2796 = vld [vmem:[%s6 + $0x58] sm:$0xff]
      %v2797 = vld [vmem:[%s6 + $0x60] sm:$0xff]
      %v2798 = vld [vmem:[%s6 + $0x68] sm:$0xff]
      %v2799 = vld [vmem:[%s6 + $0x70] sm:$0xff]
      %v2800 = vld [vmem:[%s6 + $0x78] sm:$0xff]
      %v2801 = vld [vmem:[#allocation2 + $0x8] sm:$0x1]
      %v2802 = vld [vmem:[#allocation2 + $0x14] sm:$0x1]
      %v2803 = vld [vmem:[#allocation2 + $0x20] sm:$0x1]
      %v2804 = vld [vmem:[#allocation2 + $0x2c] sm:$0x1]
      %v2805 = vld [vmem:[#allocation2 + $0x38] sm:$0x1]
      %v2806 = vld [vmem:[#allocation2 + $0x44] sm:$0x1]
      %v2807 = vld [vmem:[#allocation2 + $0x50] sm:$0x1]
      %v2808 = vld [vmem:[#allocation2 + $0x5c] sm:$0x1]
      %v2810 = vshrl.u32 %v2769, 16
      %v2812 = vrot.slane %v2810, 4
      %v2813 = vshll.u32 %v2769, 16
      %v2815 = vrot.slane %v2813, 5
      %v2816 = vor.u32 %v2812, %v2815
      %v2817 = vrot.slane %v2816, 4
      %v2819 = vshll.u32 %v2770, 16
      %v2821 = vrot.slane %v2819, 5
      %v2822 = vsel %vm442, %v2817, %v2821
      %v2823 = vshrl.u32 %v2770, 16
      %v2825 = vrot.slane %v2823, 4
      %v2826 = vor.u32 %v2825, %v2821
      %v2827 = vrot.slane %v2826, 4
      %v2829 = vshll.u32 %v2801, 16
      %v2831 = vrot.slane %v2829, 5
      %v2832 = vsel %vm442, %v2827, %v2831
      %v2834 = vshrl.u32 %v2771, 16
      %v2836 = vrot.slane %v2834, 4
      %v2837 = vshll.u32 %v2771, 16
      %v2839 = vrot.slane %v2837, 5
      %v2840 = vor.u32 %v2836, %v2839
      %v2841 = vrot.slane %v2840, 4
      %v2843 = vshll.u32 %v2772, 16
      %v2845 = vrot.slane %v2843, 5
      %v2846 = vsel %vm442, %v2841, %v2845
      %v2847 = vshrl.u32 %v2772, 16
      %v2849 = vrot.slane %v2847, 4
      %v2850 = vor.u32 %v2849, %v2845
      %v2851 = vrot.slane %v2850, 4
      %v2853 = vshll.u32 %v2802, 16
      %v2855 = vrot.slane %v2853, 5
      %v2856 = vsel %vm442, %v2851, %v2855
      %v2858 = vshrl.u32 %v2773, 16
      %v2860 = vrot.slane %v2858, 4
      %v2861 = vshll.u32 %v2773, 16
      %v2863 = vrot.slane %v2861, 5
      %v2864 = vor.u32 %v2860, %v2863
      %v2865 = vrot.slane %v2864, 4
      %v2867 = vshll.u32 %v2774, 16
      %v2869 = vrot.slane %v2867, 5
      %v2870 = vsel %vm442, %v2865, %v2869
      %v2871 = vshrl.u32 %v2774, 16
      %v2873 = vrot.slane %v2871, 4
      %v2874 = vor.u32 %v2873, %v2869
      %v2875 = vrot.slane %v2874, 4
      %v2877 = vshll.u32 %v2803, 16
      %v2879 = vrot.slane %v2877, 5
      %v2880 = vsel %vm442, %v2875, %v2879
      %v2882 = vshrl.u32 %v2775, 16
      %v2884 = vrot.slane %v2882, 4
      %v2885 = vshll.u32 %v2775, 16
      %v2887 = vrot.slane %v2885, 5
      %v2888 = vor.u32 %v2884, %v2887
      %v2889 = vrot.slane %v2888, 4
      %v2891 = vshll.u32 %v2776, 16
      %v2893 = vrot.slane %v2891, 5
      %v2894 = vsel %vm442, %v2889, %v2893
      %v2895 = vshrl.u32 %v2776, 16
      %v2897 = vrot.slane %v2895, 4
      %v2898 = vor.u32 %v2897, %v2893
      %v2899 = vrot.slane %v2898, 4
      %v2901 = vshll.u32 %v2804, 16
      %v2903 = vrot.slane %v2901, 5
      %v2904 = vsel %vm442, %v2899, %v2903
      %v2906 = vshrl.u32 %v2777, 16
      %v2908 = vrot.slane %v2906, 4
      %v2909 = vshll.u32 %v2777, 16
      %v2911 = vrot.slane %v2909, 5
      %v2912 = vor.u32 %v2908, %v2911
      %v2913 = vrot.slane %v2912, 4
      %v2915 = vshll.u32 %v2778, 16
      %v2917 = vrot.slane %v2915, 5
      %v2918 = vsel %vm442, %v2913, %v2917
      %v2919 = vshrl.u32 %v2778, 16
      %v2921 = vrot.slane %v2919, 4
      %v2922 = vor.u32 %v2921, %v2917
      %v2923 = vrot.slane %v2922, 4
      %v2925 = vshll.u32 %v2805, 16
      %v2927 = vrot.slane %v2925, 5
      %v2928 = vsel %vm442, %v2923, %v2927
      %v2930 = vshrl.u32 %v2779, 16
      %v2932 = vrot.slane %v2930, 4
      %v2933 = vshll.u32 %v2779, 16
      %v2935 = vrot.slane %v2933, 5
      %v2936 = vor.u32 %v2932, %v2935
      %v2937 = vrot.slane %v2936, 4
      %v2939 = vshll.u32 %v2780, 16
      %v2941 = vrot.slane %v2939, 5
      %v2942 = vsel %vm442, %v2937, %v2941
      %v2943 = vshrl.u32 %v2780, 16
      %v2945 = vrot.slane %v2943, 4
      %v2946 = vor.u32 %v2945, %v2941
      %v2947 = vrot.slane %v2946, 4
      %v2949 = vshll.u32 %v2806, 16
      %v2951 = vrot.slane %v2949, 5
      %v2952 = vsel %vm442, %v2947, %v2951
      %v2954 = vshrl.u32 %v2781, 16
      %v2956 = vrot.slane %v2954, 4
      %v2957 = vshll.u32 %v2781, 16
      %v2959 = vrot.slane %v2957, 5
      %v2960 = vor.u32 %v2956, %v2959
      %v2961 = vrot.slane %v2960, 4
      %v2963 = vshll.u32 %v2782, 16
      %v2965 = vrot.slane %v2963, 5
      %v2966 = vsel %vm442, %v2961, %v2965
      %v2967 = vshrl.u32 %v2782, 16
      %v2969 = vrot.slane %v2967, 4
      %v2970 = vor.u32 %v2969, %v2965
      %v2971 = vrot.slane %v2970, 4
      %v2973 = vshll.u32 %v2807, 16
      %v2975 = vrot.slane %v2973, 5
      %v2976 = vsel %vm442, %v2971, %v2975
      %v2978 = vshrl.u32 %v2783, 16
      %v2980 = vrot.slane %v2978, 4
      %v2981 = vshll.u32 %v2783, 16
      %v2983 = vrot.slane %v2981, 5
      %v2984 = vor.u32 %v2980, %v2983
      %v2985 = vrot.slane %v2984, 4
      %v2987 = vshll.u32 %v2784, 16
      %v2989 = vrot.slane %v2987, 5
      %v2990 = vsel %vm442, %v2985, %v2989
      %v2991 = vshrl.u32 %v2784, 16
      %v2993 = vrot.slane %v2991, 4
      %v2994 = vor.u32 %v2993, %v2989
      %v2995 = vrot.slane %v2994, 4
      %v2997 = vshll.u32 %v2808, 16
      %v2999 = vrot.slane %v2997, 5
      %v3000 = vsel %vm442, %v2995, %v2999
      %s3001 = scalar_lea.vmem %s6, 128
      %v3002 = vld [vmem:[%s3001] sm:$0xff]
      %v3003 = vld [vmem:[%s3001 + $0x8] sm:$0xff]
      %v3004 = vld [vmem:[%s3001 + $0x10] sm:$0xff]
      %v3005 = vld [vmem:[%s3001 + $0x18] sm:$0xff]
      %v3006 = vld [vmem:[%s3001 + $0x20] sm:$0xff]
      %v3007 = vld [vmem:[%s3001 + $0x28] sm:$0xff]
      %v3008 = vld [vmem:[%s3001 + $0x30] sm:$0xff]
      %v3009 = vld [vmem:[%s3001 + $0x38] sm:$0xff]
      %v3010 = vld [vmem:[%s3001 + $0x40] sm:$0xff]
      %v3011 = vld [vmem:[%s3001 + $0x48] sm:$0xff]
      %v3012 = vld [vmem:[%s3001 + $0x50] sm:$0xff]
      %v3013 = vld [vmem:[%s3001 + $0x58] sm:$0xff]
      %v3014 = vld [vmem:[%s3001 + $0x60] sm:$0xff]
      %v3015 = vld [vmem:[%s3001 + $0x68] sm:$0xff]
      %v3016 = vld [vmem:[%s3001 + $0x70] sm:$0xff]
      %v3017 = vld [vmem:[%s3001 + $0x78] sm:$0xff]
      %v3018 = vunpack.c.l.b16 %v2822
      %v3019 = vunpack.c.l.b16 %v2832
      %v3020 = vunpack.c.l.b16 %v2846
      %v3021 = vunpack.c.l.b16 %v2856
      %v3022 = vunpack.c.l.b16 %v2870
      %v3023 = vunpack.c.l.b16 %v2880
      %v3024 = vunpack.c.l.b16 %v2894
      %v3025 = vunpack.c.l.b16 %v2904
      %v3026 = vunpack.c.l.b16 %v2918
      %v3027 = vunpack.c.l.b16 %v2928
      %v3028 = vunpack.c.l.b16 %v2942
      %v3029 = vunpack.c.l.b16 %v2952
      %v3030 = vunpack.c.l.b16 %v2966
      %v3031 = vunpack.c.l.b16 %v2976
      %v3032 = vunpack.c.l.b16 %v2990
      %v3033 = vunpack.c.l.b16 %v3000
      %v3034 = vpack.c.b16 %v3019, %v3018
      %v3035 = vpack.c.b16 %v3021, %v3020
      %v3036 = vpack.c.b16 %v3023, %v3022
      %v3037 = vpack.c.b16 %v3025, %v3024
      %v3038 = vpack.c.b16 %v3027, %v3026
      %v3039 = vpack.c.b16 %v3029, %v3028
      %v3040 = vpack.c.b16 %v3031, %v3030
      %v3041 = vpack.c.b16 %v3033, %v3032
      %v3066 = vunpack.c.l.b16 %v3002
      %v3067 = vunpack.c.h.b16 %v3002
      %v3068 = vunpack.c.l.b16 %v3003
      %v3069 = vunpack.c.h.b16 %v3003
      %v3070 = vunpack.c.l.b16 %v3004
      %v3071 = vunpack.c.h.b16 %v3004
      %v3072 = vunpack.c.l.b16 %v3005
      %v3073 = vunpack.c.h.b16 %v3005
      %v3074 = vunpack.c.l.b16 %v3006
      %v3075 = vunpack.c.h.b16 %v3006
      %v3076 = vunpack.c.l.b16 %v3007
      %v3077 = vunpack.c.h.b16 %v3007
      %v3078 = vunpack.c.l.b16 %v3008
      %v3079 = vunpack.c.h.b16 %v3008
      %v3080 = vunpack.c.l.b16 %v3009
      %v3081 = vunpack.c.h.b16 %v3009
      %v3082 = vunpack.c.l.b16 %v3010
      %v3083 = vunpack.c.h.b16 %v3010
      %v3084 = vunpack.c.l.b16 %v3011
      %v3085 = vunpack.c.h.b16 %v3011
      %v3086 = vunpack.c.l.b16 %v3012
      %v3087 = vunpack.c.h.b16 %v3012
      %v3088 = vunpack.c.l.b16 %v3013
      %v3089 = vunpack.c.h.b16 %v3013
      %v3090 = vunpack.c.l.b16 %v3014
      %v3091 = vunpack.c.h.b16 %v3014
      %v3092 = vunpack.c.l.b16 %v3015
      %v3093 = vunpack.c.h.b16 %v3015
      %v3094 = vunpack.c.l.b16 %v3016
      %v3095 = vunpack.c.h.b16 %v3016
      %v3096 = vunpack.c.l.b16 %v3017
      %v3097 = vunpack.c.h.b16 %v3017
      %v3098 = vpack.c.b16 %v3068, %v3066
      %v3099 = vpack.c.b16 %v3069, %v3067
      %v3100 = vpack.c.b16 %v3072, %v3070
      %v3101 = vpack.c.b16 %v3073, %v3071
      %v3102 = vpack.c.b16 %v3076, %v3074
      %v3103 = vpack.c.b16 %v3077, %v3075
      %v3104 = vpack.c.b16 %v3080, %v3078
      %v3105 = vpack.c.b16 %v3081, %v3079
      %v3106 = vpack.c.b16 %v3084, %v3082
      %v3107 = vpack.c.b16 %v3085, %v3083
      %v3108 = vpack.c.b16 %v3088, %v3086
      %v3109 = vpack.c.b16 %v3089, %v3087
      %v3110 = vpack.c.b16 %v3092, %v3090
      %v3111 = vpack.c.b16 %v3093, %v3091
      %v3112 = vpack.c.b16 %v3096, %v3094
      %v3113 = vpack.c.b16 %v3097, %v3095
      %3130 = vmatprep.subr.bf16.mxu0 %v3113
      %3131 = vmatpush1.bf16.msra.mxu0 %v3112
      %3132 = vmatprep.subr.bf16.mxu0 %v3111
      %3133 = vmatpush1.bf16.msra.mxu0 %v3110
      %3134 = vmatprep.subr.bf16.mxu0 %v3109
      %3135 = vmatpush1.bf16.msra.mxu0 %v3108
      %3136 = vmatprep.subr.bf16.mxu0 %v3107
      %3137 = vmatpush1.bf16.msra.mxu0 %v3106
      %3138 = vmatprep.subr.bf16.mxu0 %v3105
      %3139 = vmatpush1.bf16.msra.mxu0 %v3104
      %3140 = vmatprep.subr.bf16.mxu0 %v3103
      %3141 = vmatpush1.bf16.msra.mxu0 %v3102
      %3142 = vmatprep.subr.bf16.mxu0 %v3101
      %3143 = vmatpush1.bf16.msra.mxu0 %v3100
      %3144 = vmatprep.subr.bf16.mxu0 %v3099
      %3145 = vmatpush1.bf16.msra.mxu0 %v3098
      %3146 = vmatprep.subr.bf16.mxu0 0
      %3147 = vmatpush2.bf16.msra.mxu0 0
      %3148 = vmatprep.subr.bf16.mxu0 0
      %3149 = vmatpush2.bf16.msra.mxu0 0
      %3150 = vmatprep.subr.bf16.mxu0 0
      %3151 = vmatpush2.bf16.msra.mxu0 0
      %3152 = vmatprep.subr.bf16.mxu0 0
      %3153 = vmatpush2.bf16.msra.mxu0 0
      %3154 = vmatprep.subr.bf16.mxu0 0
      %3155 = vmatpush2.bf16.msra.mxu0 0
      %3156 = vmatprep.subr.bf16.mxu0 0
      %3157 = vmatpush2.bf16.msra.mxu0 0
      %3158 = vmatprep.subr.bf16.mxu0 0
      %3159 = vmatpush2.bf16.msra.mxu0 0
      %3160 = vmatprep.subr.bf16.mxu0 0
      %3161 = vmatpush2.bf16.msra.mxu0 0
      %3162 = vmatprep.mubr.bf16.mxu0 0
      %3163 = vmatmul.mubr.bf16.gmra.mxu0 %v3034
      %v3164 = vpop.f32.mrf.mxu0
      %v3165 = vadd.f32 0.0, %v3164
      %v3166 = vpop.f32.mrf.mxu0
      %v3167 = vadd.f32 0.0, %v3166
      %v3168 = vpop.f32.mrf.mxu0
      %v3169 = vadd.f32 0.0, %v3168
      %v3170 = vpop.f32.mrf.mxu0
      %v3171 = vadd.f32 0.0, %v3170
      %3172 = vmatprep.mubr.bf16.mxu0 0
      %3173 = vmatmul.mubr.bf16.gmra.mxu0 %v3035
      %v3174 = vpop.f32.mrf.mxu0
      %v3175 = vadd.f32 0.0, %v3174
      %v3176 = vpop.f32.mrf.mxu0
      %v3177 = vadd.f32 0.0, %v3176
      %v3178 = vpop.f32.mrf.mxu0
      %v3179 = vadd.f32 0.0, %v3178
      %v3180 = vpop.f32.mrf.mxu0
      %v3181 = vadd.f32 0.0, %v3180
      %3182 = vmatprep.mubr.bf16.mxu0 0
      %3183 = vmatmul.mubr.bf16.gmra.mxu0 %v3036
      %v3184 = vpop.f32.mrf.mxu0
      %v3185 = vadd.f32 0.0, %v3184
      %v3186 = vpop.f32.mrf.mxu0
      %v3187 = vadd.f32 0.0, %v3186
      %v3188 = vpop.f32.mrf.mxu0
      %v3189 = vadd.f32 0.0, %v3188
      %v3190 = vpop.f32.mrf.mxu0
      %v3191 = vadd.f32 0.0, %v3190
      %3192 = vmatprep.mubr.bf16.mxu0 0
      %3193 = vmatmul.mubr.bf16.gmra.mxu0 %v3037
      %v3194 = vpop.f32.mrf.mxu0
      %v3195 = vadd.f32 0.0, %v3194
      %v3196 = vpop.f32.mrf.mxu0
      %v3197 = vadd.f32 0.0, %v3196
      %v3198 = vpop.f32.mrf.mxu0
      %v3199 = vadd.f32 0.0, %v3198
      %v3200 = vpop.f32.mrf.mxu0
      %v3201 = vadd.f32 0.0, %v3200
      %3202 = vmatprep.mubr.bf16.mxu0 0
      %3203 = vmatmul.mubr.bf16.gmra.mxu0 %v3038
      %v3204 = vpop.f32.mrf.mxu0
      %v3205 = vadd.f32 0.0, %v3204
      %v3206 = vpop.f32.mrf.mxu0
      %v3207 = vadd.f32 0.0, %v3206
      %v3208 = vpop.f32.mrf.mxu0
      %v3209 = vadd.f32 0.0, %v3208
      %v3210 = vpop.f32.mrf.mxu0
      %v3211 = vadd.f32 0.0, %v3210
      %3212 = vmatprep.mubr.bf16.mxu0 0
      %3213 = vmatmul.mubr.bf16.gmra.mxu0 %v3039
      %v3214 = vpop.f32.mrf.mxu0
      %v3215 = vadd.f32 0.0, %v3214
      %v3216 = vpop.f32.mrf.mxu0
      %v3217 = vadd.f32 0.0, %v3216
      %v3218 = vpop.f32.mrf.mxu0
      %v3219 = vadd.f32 0.0, %v3218
      %v3220 = vpop.f32.mrf.mxu0
      %v3221 = vadd.f32 0.0, %v3220
      %3222 = vmatprep.mubr.bf16.mxu0 0
      %3223 = vmatmul.mubr.bf16.gmra.mxu0 %v3040
      %v3224 = vpop.f32.mrf.mxu0
      %v3225 = vadd.f32 0.0, %v3224
      %v3226 = vpop.f32.mrf.mxu0
      %v3227 = vadd.f32 0.0, %v3226
      %v3228 = vpop.f32.mrf.mxu0
      %v3229 = vadd.f32 0.0, %v3228
      %v3230 = vpop.f32.mrf.mxu0
      %v3231 = vadd.f32 0.0, %v3230
      %3232 = vmatprep.mubr.bf16.mxu0 0
      %3233 = vmatmul.mubr.bf16.gmra.mxu0 %v3041
      %v3234 = vpop.f32.mrf.mxu0
      %v3235 = vadd.f32 0.0, %v3234
      %v3236 = vpop.f32.mrf.mxu0
      %v3237 = vadd.f32 0.0, %v3236
      %v3238 = vpop.f32.mrf.mxu0
      %v3239 = vadd.f32 0.0, %v3238
      %v3240 = vpop.f32.mrf.mxu0
      %v3241 = vadd.f32 0.0, %v3240
      %3242 = vdwg.mxu0
      %v3259 = vunpack.c.l.b16 %v2769
      %v3260 = vunpack.c.l.b16 %v2770
      %v3261 = vunpack.c.l.b16 %v2771
      %v3262 = vunpack.c.l.b16 %v2772
      %v3263 = vunpack.c.l.b16 %v2773
      %v3264 = vunpack.c.l.b16 %v2774
      %v3265 = vunpack.c.l.b16 %v2775
      %v3266 = vunpack.c.l.b16 %v2776
      %v3267 = vunpack.c.l.b16 %v2777
      %v3268 = vunpack.c.l.b16 %v2778
      %v3269 = vunpack.c.l.b16 %v2779
      %v3270 = vunpack.c.l.b16 %v2780
      %v3271 = vunpack.c.l.b16 %v2781
      %v3272 = vunpack.c.l.b16 %v2782
      %v3273 = vunpack.c.l.b16 %v2783
      %v3274 = vunpack.c.l.b16 %v2784
      %v3275 = vpack.c.b16 %v3260, %v3259
      %v3276 = vpack.c.b16 %v3262, %v3261
      %v3277 = vpack.c.b16 %v3264, %v3263
      %v3278 = vpack.c.b16 %v3266, %v3265
      %v3279 = vpack.c.b16 %v3268, %v3267
      %v3280 = vpack.c.b16 %v3270, %v3269
      %v3281 = vpack.c.b16 %v3272, %v3271
      %v3282 = vpack.c.b16 %v3274, %v3273
      %v3307 = vunpack.c.l.b16 %v2785
      %v3308 = vunpack.c.h.b16 %v2785
      %v3309 = vunpack.c.l.b16 %v2786
      %v3310 = vunpack.c.h.b16 %v2786
      %v3311 = vunpack.c.l.b16 %v2787
      %v3312 = vunpack.c.h.b16 %v2787
      %v3313 = vunpack.c.l.b16 %v2788
      %v3314 = vunpack.c.h.b16 %v2788
      %v3315 = vunpack.c.l.b16 %v2789
      %v3316 = vunpack.c.h.b16 %v2789
      %v3317 = vunpack.c.l.b16 %v2790
      %v3318 = vunpack.c.h.b16 %v2790
      %v3319 = vunpack.c.l.b16 %v2791
      %v3320 = vunpack.c.h.b16 %v2791
      %v3321 = vunpack.c.l.b16 %v2792
      %v3322 = vunpack.c.h.b16 %v2792
      %v3323 = vunpack.c.l.b16 %v2793
      %v3324 = vunpack.c.h.b16 %v2793
      %v3325 = vunpack.c.l.b16 %v2794
      %v3326 = vunpack.c.h.b16 %v2794
      %v3327 = vunpack.c.l.b16 %v2795
      %v3328 = vunpack.c.h.b16 %v2795
      %v3329 = vunpack.c.l.b16 %v2796
      %v3330 = vunpack.c.h.b16 %v2796
      %v3331 = vunpack.c.l.b16 %v2797
      %v3332 = vunpack.c.h.b16 %v2797
      %v3333 = vunpack.c.l.b16 %v2798
      %v3334 = vunpack.c.h.b16 %v2798
      %v3335 = vunpack.c.l.b16 %v2799
      %v3336 = vunpack.c.h.b16 %v2799
      %v3337 = vunpack.c.l.b16 %v2800
      %v3338 = vunpack.c.h.b16 %v2800
      %v3339 = vpack.c.b16 %v3309, %v3307
      %v3340 = vpack.c.b16 %v3310, %v3308
      %v3341 = vpack.c.b16 %v3313, %v3311
      %v3342 = vpack.c.b16 %v3314, %v3312
      %v3343 = vpack.c.b16 %v3317, %v3315
      %v3344 = vpack.c.b16 %v3318, %v3316
      %v3345 = vpack.c.b16 %v3321, %v3319
      %v3346 = vpack.c.b16 %v3322, %v3320
      %v3347 = vpack.c.b16 %v3325, %v3323
      %v3348 = vpack.c.b16 %v3326, %v3324
      %v3349 = vpack.c.b16 %v3329, %v3327
      %v3350 = vpack.c.b16 %v3330, %v3328
      %v3351 = vpack.c.b16 %v3333, %v3331
      %v3352 = vpack.c.b16 %v3334, %v3332
      %v3353 = vpack.c.b16 %v3337, %v3335
      %v3354 = vpack.c.b16 %v3338, %v3336
      %3371 = vmatprep.subr.bf16.mxu0 %v3354
      %3372 = vmatpush1.bf16.msra.mxu0 %v3353
      %3373 = vmatprep.subr.bf16.mxu0 %v3352
      %3374 = vmatpush1.bf16.msra.mxu0 %v3351
      %3375 = vmatprep.subr.bf16.mxu0 %v3350
      %3376 = vmatpush1.bf16.msra.mxu0 %v3349
      %3377 = vmatprep.subr.bf16.mxu0 %v3348
      %3378 = vmatpush1.bf16.msra.mxu0 %v3347
      %3379 = vmatprep.subr.bf16.mxu0 %v3346
      %3380 = vmatpush1.bf16.msra.mxu0 %v3345
      %3381 = vmatprep.subr.bf16.mxu0 %v3344
      %3382 = vmatpush1.bf16.msra.mxu0 %v3343
      %3383 = vmatprep.subr.bf16.mxu0 %v3342
      %3384 = vmatpush1.bf16.msra.mxu0 %v3341
      %3385 = vmatprep.subr.bf16.mxu0 %v3340
      %3386 = vmatpush1.bf16.msra.mxu0 %v3339
      %3387 = vmatprep.subr.bf16.mxu0 0
      %3388 = vmatpush2.bf16.msra.mxu0 0
      %3389 = vmatprep.subr.bf16.mxu0 0
      %3390 = vmatpush2.bf16.msra.mxu0 0
      %3391 = vmatprep.subr.bf16.mxu0 0
      %3392 = vmatpush2.bf16.msra.mxu0 0
      %3393 = vmatprep.subr.bf16.mxu0 0
      %3394 = vmatpush2.bf16.msra.mxu0 0
      %3395 = vmatprep.subr.bf16.mxu0 0
      %3396 = vmatpush2.bf16.msra.mxu0 0
      %3397 = vmatprep.subr.bf16.mxu0 0
      %3398 = vmatpush2.bf16.msra.mxu0 0
      %3399 = vmatprep.subr.bf16.mxu0 0
      %3400 = vmatpush2.bf16.msra.mxu0 0
      %3401 = vmatprep.subr.bf16.mxu0 0
      %3402 = vmatpush2.bf16.msra.mxu0 0
      %3403 = vmatprep.mubr.bf16.mxu0 0
      %3404 = vmatmul.mubr.bf16.gmra.mxu0 %v3275
      %v3405 = vpop.f32.mrf.mxu0
      %v3406 = vadd.f32 %v3165, %v3405
      %v3407 = vpop.f32.mrf.mxu0
      %v3408 = vadd.f32 %v3167, %v3407
      %v3409 = vpop.f32.mrf.mxu0
      %v3410 = vadd.f32 %v3169, %v3409
      %v3411 = vpop.f32.mrf.mxu0
      %v3412 = vadd.f32 %v3171, %v3411
      %3413 = vmatprep.mubr.bf16.mxu0 0
      %3414 = vmatmul.mubr.bf16.gmra.mxu0 %v3276
      %v3415 = vpop.f32.mrf.mxu0
      %v3416 = vadd.f32 %v3175, %v3415
      %v3417 = vpop.f32.mrf.mxu0
      %v3418 = vadd.f32 %v3177, %v3417
      %v3419 = vpop.f32.mrf.mxu0
      %v3420 = vadd.f32 %v3179, %v3419
      %v3421 = vpop.f32.mrf.mxu0
      %v3422 = vadd.f32 %v3181, %v3421
      %3423 = vmatprep.mubr.bf16.mxu0 0
      %3424 = vmatmul.mubr.bf16.gmra.mxu0 %v3277
      %v3425 = vpop.f32.mrf.mxu0
      %v3426 = vadd.f32 %v3185, %v3425
      %v3427 = vpop.f32.mrf.mxu0
      %v3428 = vadd.f32 %v3187, %v3427
      %v3429 = vpop.f32.mrf.mxu0
      %v3430 = vadd.f32 %v3189, %v3429
      %v3431 = vpop.f32.mrf.mxu0
      %v3432 = vadd.f32 %v3191, %v3431
      %3433 = vmatprep.mubr.bf16.mxu0 0
      %3434 = vmatmul.mubr.bf16.gmra.mxu0 %v3278
      %v3435 = vpop.f32.mrf.mxu0
      %v3436 = vadd.f32 %v3195, %v3435
      %v3437 = vpop.f32.mrf.mxu0
      %v3438 = vadd.f32 %v3197, %v3437
      %v3439 = vpop.f32.mrf.mxu0
      %v3440 = vadd.f32 %v3199, %v3439
      %v3441 = vpop.f32.mrf.mxu0
      %v3442 = vadd.f32 %v3201, %v3441
      %3443 = vmatprep.mubr.bf16.mxu0 0
      %3444 = vmatmul.mubr.bf16.gmra.mxu0 %v3279
      %v3445 = vpop.f32.mrf.mxu0
      %v3446 = vadd.f32 %v3205, %v3445
      %v3447 = vpop.f32.mrf.mxu0
      %v3448 = vadd.f32 %v3207, %v3447
      %v3449 = vpop.f32.mrf.mxu0
      %v3450 = vadd.f32 %v3209, %v3449
      %v3451 = vpop.f32.mrf.mxu0
      %v3452 = vadd.f32 %v3211, %v3451
      %3453 = vmatprep.mubr.bf16.mxu0 0
      %3454 = vmatmul.mubr.bf16.gmra.mxu0 %v3280
      %v3455 = vpop.f32.mrf.mxu0
      %v3456 = vadd.f32 %v3215, %v3455
      %v3457 = vpop.f32.mrf.mxu0
      %v3458 = vadd.f32 %v3217, %v3457
      %v3459 = vpop.f32.mrf.mxu0
      %v3460 = vadd.f32 %v3219, %v3459
      %v3461 = vpop.f32.mrf.mxu0
      %v3462 = vadd.f32 %v3221, %v3461
      %3463 = vmatprep.mubr.bf16.mxu0 0
      %3464 = vmatmul.mubr.bf16.gmra.mxu0 %v3281
      %v3465 = vpop.f32.mrf.mxu0
      %v3466 = vadd.f32 %v3225, %v3465
      %v3467 = vpop.f32.mrf.mxu0
      %v3468 = vadd.f32 %v3227, %v3467
      %v3469 = vpop.f32.mrf.mxu0
      %v3470 = vadd.f32 %v3229, %v3469
      %v3471 = vpop.f32.mrf.mxu0
      %v3472 = vadd.f32 %v3231, %v3471
      %3473 = vmatprep.mubr.bf16.mxu0 0
      %3474 = vmatmul.mubr.bf16.gmra.mxu0 %v3282
      %v3475 = vpop.f32.mrf.mxu0
      %v3476 = vadd.f32 %v3235, %v3475
      %v3477 = vpop.f32.mrf.mxu0
      %v3478 = vadd.f32 %v3237, %v3477
      %v3479 = vpop.f32.mrf.mxu0
      %v3480 = vadd.f32 %v3239, %v3479
      %v3481 = vpop.f32.mrf.mxu0
      %v3482 = vadd.f32 %v3241, %v3481
      %3483 = vdwg.mxu0
      %v3484 = vld [vmem:[#allocation2] sm:$0xe]
      %v3485 = vld [vmem:[#allocation2 + $0xc] sm:$0xe]
      %v3486 = vld [vmem:[#allocation2 + $0x18] sm:$0xe]
      %v3487 = vld [vmem:[#allocation2 + $0x24] sm:$0xe]
      %v3488 = vld [vmem:[#allocation2 + $0x30] sm:$0xe]
      %v3489 = vld [vmem:[#allocation2 + $0x3c] sm:$0xe]
      %v3490 = vld [vmem:[#allocation2 + $0x48] sm:$0xe]
      %v3491 = vld [vmem:[#allocation2 + $0x54] sm:$0xe]
      %v3508 = vrot.slane %v3484, 5
      %v3509 = vrot.slane %v3508, 4
      %v3510 = vrot.slane %v2770, 5
      %v3511 = vsel %vm1071, %v3509, %v3510
      %v3512 = vrot.slane %v3510, 4
      %v3513 = vrot.slane %v2801, 5
      %v3514 = vsel %vm1071, %v3512, %v3513
      %v3515 = vrot.slane %v3485, 5
      %v3516 = vrot.slane %v3515, 4
      %v3517 = vrot.slane %v2772, 5
      %v3518 = vsel %vm1071, %v3516, %v3517
      %v3519 = vrot.slane %v3517, 4
      %v3520 = vrot.slane %v2802, 5
      %v3521 = vsel %vm1071, %v3519, %v3520
      %v3522 = vrot.slane %v3486, 5
      %v3523 = vrot.slane %v3522, 4
      %v3524 = vrot.slane %v2774, 5
      %v3525 = vsel %vm1071, %v3523, %v3524
      %v3526 = vrot.slane %v3524, 4
      %v3527 = vrot.slane %v2803, 5
      %v3528 = vsel %vm1071, %v3526, %v3527
      %v3529 = vrot.slane %v3487, 5
      %v3530 = vrot.slane %v3529, 4
      %v3531 = vrot.slane %v2776, 5
      %v3532 = vsel %vm1071, %v3530, %v3531
      %v3533 = vrot.slane %v3531, 4
      %v3534 = vrot.slane %v2804, 5
      %v3535 = vsel %vm1071, %v3533, %v3534
      %v3536 = vrot.slane %v3488, 5
      %v3537 = vrot.slane %v3536, 4
      %v3538 = vrot.slane %v2778, 5
      %v3539 = vsel %vm1071, %v3537, %v3538
      %v3540 = vrot.slane %v3538, 4
      %v3541 = vrot.slane %v2805, 5
      %v3542 = vsel %vm1071, %v3540, %v3541
      %v3543 = vrot.slane %v3489, 5
      %v3544 = vrot.slane %v3543, 4
      %v3545 = vrot.slane %v2780, 5
      %v3546 = vsel %vm1071, %v3544, %v3545
      %v3547 = vrot.slane %v3545, 4
      %v3548 = vrot.slane %v2806, 5
      %v3549 = vsel %vm1071, %v3547, %v3548
      %v3550 = vrot.slane %v3490, 5
      %v3551 = vrot.slane %v3550, 4
      %v3552 = vrot.slane %v2782, 5
      %v3553 = vsel %vm1071, %v3551, %v3552
      %v3554 = vrot.slane %v3552, 4
      %v3555 = vrot.slane %v2807, 5
      %v3556 = vsel %vm1071, %v3554, %v3555
      %v3557 = vrot.slane %v3491, 5
      %v3558 = vrot.slane %v3557, 4
      %v3559 = vrot.slane %v2784, 5
      %v3560 = vsel %vm1071, %v3558, %v3559
      %v3561 = vrot.slane %v3559, 4
      %v3562 = vrot.slane %v2808, 5
      %v3563 = vsel %vm1071, %v3561, %v3562
      %s3564 = scalar_lea.vmem %s6, 256
      %v3565 = vld [vmem:[%s3564] sm:$0xff]
      %v3566 = vld [vmem:[%s3564 + $0x8] sm:$0xff]
      %v3567 = vld [vmem:[%s3564 + $0x10] sm:$0xff]
      %v3568 = vld [vmem:[%s3564 + $0x18] sm:$0xff]
      %v3569 = vld [vmem:[%s3564 + $0x20] sm:$0xff]
      %v3570 = vld [vmem:[%s3564 + $0x28] sm:$0xff]
      %v3571 = vld [vmem:[%s3564 + $0x30] sm:$0xff]
      %v3572 = vld [vmem:[%s3564 + $0x38] sm:$0xff]
      %v3573 = vld [vmem:[%s3564 + $0x40] sm:$0xff]
      %v3574 = vld [vmem:[%s3564 + $0x48] sm:$0xff]
      %v3575 = vld [vmem:[%s3564 + $0x50] sm:$0xff]
      %v3576 = vld [vmem:[%s3564 + $0x58] sm:$0xff]
      %v3577 = vld [vmem:[%s3564 + $0x60] sm:$0xff]
      %v3578 = vld [vmem:[%s3564 + $0x68] sm:$0xff]
      %v3579 = vld [vmem:[%s3564 + $0x70] sm:$0xff]
      %v3580 = vld [vmem:[%s3564 + $0x78] sm:$0xff]
      %v3581 = vunpack.c.l.b16 %v3511
      %v3582 = vunpack.c.l.b16 %v3514
      %v3583 = vunpack.c.l.b16 %v3518
      %v3584 = vunpack.c.l.b16 %v3521
      %v3585 = vunpack.c.l.b16 %v3525
      %v3586 = vunpack.c.l.b16 %v3528
      %v3587 = vunpack.c.l.b16 %v3532
      %v3588 = vunpack.c.l.b16 %v3535
      %v3589 = vunpack.c.l.b16 %v3539
      %v3590 = vunpack.c.l.b16 %v3542
      %v3591 = vunpack.c.l.b16 %v3546
      %v3592 = vunpack.c.l.b16 %v3549
      %v3593 = vunpack.c.l.b16 %v3553
      %v3594 = vunpack.c.l.b16 %v3556
      %v3595 = vunpack.c.l.b16 %v3560
      %v3596 = vunpack.c.l.b16 %v3563
      %v3597 = vpack.c.b16 %v3582, %v3581
      %v3598 = vpack.c.b16 %v3584, %v3583
      %v3599 = vpack.c.b16 %v3586, %v3585
      %v3600 = vpack.c.b16 %v3588, %v3587
      %v3601 = vpack.c.b16 %v3590, %v3589
      %v3602 = vpack.c.b16 %v3592, %v3591
      %v3603 = vpack.c.b16 %v3594, %v3593
      %v3604 = vpack.c.b16 %v3596, %v3595
      %v3629 = vunpack.c.l.b16 %v3565
      %v3630 = vunpack.c.h.b16 %v3565
      %v3631 = vunpack.c.l.b16 %v3566
      %v3632 = vunpack.c.h.b16 %v3566
      %v3633 = vunpack.c.l.b16 %v3567
      %v3634 = vunpack.c.h.b16 %v3567
      %v3635 = vunpack.c.l.b16 %v3568
      %v3636 = vunpack.c.h.b16 %v3568
      %v3637 = vunpack.c.l.b16 %v3569
      %v3638 = vunpack.c.h.b16 %v3569
      %v3639 = vunpack.c.l.b16 %v3570
      %v3640 = vunpack.c.h.b16 %v3570
      %v3641 = vunpack.c.l.b16 %v3571
      %v3642 = vunpack.c.h.b16 %v3571
      %v3643 = vunpack.c.l.b16 %v3572
      %v3644 = vunpack.c.h.b16 %v3572
      %v3645 = vunpack.c.l.b16 %v3573
      %v3646 = vunpack.c.h.b16 %v3573
      %v3647 = vunpack.c.l.b16 %v3574
      %v3648 = vunpack.c.h.b16 %v3574
      %v3649 = vunpack.c.l.b16 %v3575
      %v3650 = vunpack.c.h.b16 %v3575
      %v3651 = vunpack.c.l.b16 %v3576
      %v3652 = vunpack.c.h.b16 %v3576
      %v3653 = vunpack.c.l.b16 %v3577
      %v3654 = vunpack.c.h.b16 %v3577
      %v3655 = vunpack.c.l.b16 %v3578
      %v3656 = vunpack.c.h.b16 %v3578
      %v3657 = vunpack.c.l.b16 %v3579
      %v3658 = vunpack.c.h.b16 %v3579
      %v3659 = vunpack.c.l.b16 %v3580
      %v3660 = vunpack.c.h.b16 %v3580
      %v3661 = vpack.c.b16 %v3631, %v3629
      %v3662 = vpack.c.b16 %v3632, %v3630
      %v3663 = vpack.c.b16 %v3635, %v3633
      %v3664 = vpack.c.b16 %v3636, %v3634
      %v3665 = vpack.c.b16 %v3639, %v3637
      %v3666 = vpack.c.b16 %v3640, %v3638
      %v3667 = vpack.c.b16 %v3643, %v3641
      %v3668 = vpack.c.b16 %v3644, %v3642
      %v3669 = vpack.c.b16 %v3647, %v3645
      %v3670 = vpack.c.b16 %v3648, %v3646
      %v3671 = vpack.c.b16 %v3651, %v3649
      %v3672 = vpack.c.b16 %v3652, %v3650
      %v3673 = vpack.c.b16 %v3655, %v3653
      %v3674 = vpack.c.b16 %v3656, %v3654
      %v3675 = vpack.c.b16 %v3659, %v3657
      %v3676 = vpack.c.b16 %v3660, %v3658
      %3693 = vmatprep.subr.bf16.mxu0 %v3676
      %3694 = vmatpush1.bf16.msra.mxu0 %v3675
      %3695 = vmatprep.subr.bf16.mxu0 %v3674
      %3696 = vmatpush1.bf16.msra.mxu0 %v3673
      %3697 = vmatprep.subr.bf16.mxu0 %v3672
      %3698 = vmatpush1.bf16.msra.mxu0 %v3671
      %3699 = vmatprep.subr.bf16.mxu0 %v3670
      %3700 = vmatpush1.bf16.msra.mxu0 %v3669
      %3701 = vmatprep.subr.bf16.mxu0 %v3668
      %3702 = vmatpush1.bf16.msra.mxu0 %v3667
      %3703 = vmatprep.subr.bf16.mxu0 %v3666
      %3704 = vmatpush1.bf16.msra.mxu0 %v3665
      %3705 = vmatprep.subr.bf16.mxu0 %v3664
      %3706 = vmatpush1.bf16.msra.mxu0 %v3663
      %3707 = vmatprep.subr.bf16.mxu0 %v3662
      %3708 = vmatpush1.bf16.msra.mxu0 %v3661
      %3709 = vmatprep.subr.bf16.mxu0 0
      %3710 = vmatpush2.bf16.msra.mxu0 0
      %3711 = vmatprep.subr.bf16.mxu0 0
      %3712 = vmatpush2.bf16.msra.mxu0 0
      %3713 = vmatprep.subr.bf16.mxu0 0
      %3714 = vmatpush2.bf16.msra.mxu0 0
      %3715 = vmatprep.subr.bf16.mxu0 0
      %3716 = vmatpush2.bf16.msra.mxu0 0
      %3717 = vmatprep.subr.bf16.mxu0 0
      %3718 = vmatpush2.bf16.msra.mxu0 0
      %3719 = vmatprep.subr.bf16.mxu0 0
      %3720 = vmatpush2.bf16.msra.mxu0 0
      %3721 = vmatprep.subr.bf16.mxu0 0
      %3722 = vmatpush2.bf16.msra.mxu0 0
      %3723 = vmatprep.subr.bf16.mxu0 0
      %3724 = vmatpush2.bf16.msra.mxu0 0
      %3725 = vmatprep.mubr.bf16.mxu0 0
      %3726 = vmatmul.mubr.bf16.gmra.mxu0 %v3597
      %v3727 = vpop.f32.mrf.mxu0
      %v3728 = vadd.f32 0.0, %v3727
      %v3729 = vpop.f32.mrf.mxu0
      %v3730 = vadd.f32 0.0, %v3729
      %v3731 = vpop.f32.mrf.mxu0
      %v3732 = vadd.f32 0.0, %v3731
      %v3733 = vpop.f32.mrf.mxu0
      %v3734 = vadd.f32 0.0, %v3733
      %3735 = vmatprep.mubr.bf16.mxu0 0
      %3736 = vmatmul.mubr.bf16.gmra.mxu0 %v3598
      %v3737 = vpop.f32.mrf.mxu0
      %v3738 = vadd.f32 0.0, %v3737
      %v3739 = vpop.f32.mrf.mxu0
      %v3740 = vadd.f32 0.0, %v3739
      %v3741 = vpop.f32.mrf.mxu0
      %v3742 = vadd.f32 0.0, %v3741
      %v3743 = vpop.f32.mrf.mxu0
      %v3744 = vadd.f32 0.0, %v3743
      %3745 = vmatprep.mubr.bf16.mxu0 0
      %3746 = vmatmul.mubr.bf16.gmra.mxu0 %v3599
      %v3747 = vpop.f32.mrf.mxu0
      %v3748 = vadd.f32 0.0, %v3747
      %v3749 = vpop.f32.mrf.mxu0
      %v3750 = vadd.f32 0.0, %v3749
      %v3751 = vpop.f32.mrf.mxu0
      %v3752 = vadd.f32 0.0, %v3751
      %v3753 = vpop.f32.mrf.mxu0
      %v3754 = vadd.f32 0.0, %v3753
      %3755 = vmatprep.mubr.bf16.mxu0 0
      %3756 = vmatmul.mubr.bf16.gmra.mxu0 %v3600
      %v3757 = vpop.f32.mrf.mxu0
      %v3758 = vadd.f32 0.0, %v3757
      %v3759 = vpop.f32.mrf.mxu0
      %v3760 = vadd.f32 0.0, %v3759
      %v3761 = vpop.f32.mrf.mxu0
      %v3762 = vadd.f32 0.0, %v3761
      %v3763 = vpop.f32.mrf.mxu0
      %v3764 = vadd.f32 0.0, %v3763
      %3765 = vmatprep.mubr.bf16.mxu0 0
      %3766 = vmatmul.mubr.bf16.gmra.mxu0 %v3601
      %v3767 = vpop.f32.mrf.mxu0
      %v3768 = vadd.f32 0.0, %v3767
      %v3769 = vpop.f32.mrf.mxu0
      %v3770 = vadd.f32 0.0, %v3769
      %v3771 = vpop.f32.mrf.mxu0
      %v3772 = vadd.f32 0.0, %v3771
      %v3773 = vpop.f32.mrf.mxu0
      %v3774 = vadd.f32 0.0, %v3773
      %3775 = vmatprep.mubr.bf16.mxu0 0
      %3776 = vmatmul.mubr.bf16.gmra.mxu0 %v3602
      %v3777 = vpop.f32.mrf.mxu0
      %v3778 = vadd.f32 0.0, %v3777
      %v3779 = vpop.f32.mrf.mxu0
      %v3780 = vadd.f32 0.0, %v3779
      %v3781 = vpop.f32.mrf.mxu0
      %v3782 = vadd.f32 0.0, %v3781
      %v3783 = vpop.f32.mrf.mxu0
      %v3784 = vadd.f32 0.0, %v3783
      %3785 = vmatprep.mubr.bf16.mxu0 0
      %3786 = vmatmul.mubr.bf16.gmra.mxu0 %v3603
      %v3787 = vpop.f32.mrf.mxu0
      %v3788 = vadd.f32 0.0, %v3787
      %v3789 = vpop.f32.mrf.mxu0
      %v3790 = vadd.f32 0.0, %v3789
      %v3791 = vpop.f32.mrf.mxu0
      %v3792 = vadd.f32 0.0, %v3791
      %v3793 = vpop.f32.mrf.mxu0
      %v3794 = vadd.f32 0.0, %v3793
      %3795 = vmatprep.mubr.bf16.mxu0 0
      %3796 = vmatmul.mubr.bf16.gmra.mxu0 %v3604
      %v3797 = vpop.f32.mrf.mxu0
      %v3798 = vadd.f32 0.0, %v3797
      %v3799 = vpop.f32.mrf.mxu0
      %v3800 = vadd.f32 0.0, %v3799
      %v3801 = vpop.f32.mrf.mxu0
      %v3802 = vadd.f32 0.0, %v3801
      %v3803 = vpop.f32.mrf.mxu0
      %v3804 = vadd.f32 0.0, %v3803
      %3805 = vdwg.mxu0
      %v3806 = vadd.f32 %v3406, %v3728
      %v3807 = vadd.f32 %v3408, %v3730
      %v3808 = vadd.f32 %v3410, %v3732
      %v3809 = vadd.f32 %v3412, %v3734
      %v3810 = vadd.f32 %v3416, %v3738
      %v3811 = vadd.f32 %v3418, %v3740
      %v3812 = vadd.f32 %v3420, %v3742
      %v3813 = vadd.f32 %v3422, %v3744
      %v3814 = vadd.f32 %v3426, %v3748
      %v3815 = vadd.f32 %v3428, %v3750
      %v3816 = vadd.f32 %v3430, %v3752
      %v3817 = vadd.f32 %v3432, %v3754
      %v3818 = vadd.f32 %v3436, %v3758
      %v3819 = vadd.f32 %v3438, %v3760
      %v3820 = vadd.f32 %v3440, %v3762
      %v3821 = vadd.f32 %v3442, %v3764
      %v3822 = vadd.f32 %v3446, %v3768
      %v3823 = vadd.f32 %v3448, %v3770
      %v3824 = vadd.f32 %v3450, %v3772
      %v3825 = vadd.f32 %v3452, %v3774
      %v3826 = vadd.f32 %v3456, %v3778
      %v3827 = vadd.f32 %v3458, %v3780
      %v3828 = vadd.f32 %v3460, %v3782
      %v3829 = vadd.f32 %v3462, %v3784
      %v3830 = vadd.f32 %v3466, %v3788
      %v3831 = vadd.f32 %v3468, %v3790
      %v3832 = vadd.f32 %v3470, %v3792
      %v3833 = vadd.f32 %v3472, %v3794
      %v3834 = vadd.f32 %v3476, %v3798
      %v3835 = vadd.f32 %v3478, %v3800
      %v3836 = vadd.f32 %v3480, %v3802
      %v3837 = vadd.f32 %v3482, %v3804
      %s3838 = scalar_lea.vmem [#allocation2], 12
      %v3839 = vld [vmem:[%s3838] sm:$0xf]
      %v3840 = vld [vmem:[%s3838 + $0x4] sm:$0xf]
      %v3841 = vld [vmem:[%s3838 + $0xc] sm:$0xf]
      %v3842 = vld [vmem:[%s3838 + $0x10] sm:$0xf]
      %v3843 = vld [vmem:[%s3838 + $0x18] sm:$0xf]
      %v3844 = vld [vmem:[%s3838 + $0x1c] sm:$0xf]
      %v3845 = vld [vmem:[%s3838 + $0x24] sm:$0xf]
      %v3846 = vld [vmem:[%s3838 + $0x28] sm:$0xf]
      %v3847 = vld [vmem:[%s3838 + $0x30] sm:$0xf]
      %v3848 = vld [vmem:[%s3838 + $0x34] sm:$0xf]
      %v3849 = vld [vmem:[%s3838 + $0x3c] sm:$0xf]
      %v3850 = vld [vmem:[%s3838 + $0x40] sm:$0xf]
      %v3851 = vld [vmem:[%s3838 + $0x48] sm:$0xf]
      %v3852 = vld [vmem:[%s3838 + $0x4c] sm:$0xf]
      %v3853 = vld [vmem:[%s3838 + $0x54] sm:$0xf]
      %v3854 = vld [vmem:[%s3838 + $0x58] sm:$0xf]
      %s3855 = scalar_lea.vmem %s6, 384
      %v3856 = vld [vmem:[%s3855] sm:$0xff]
      %v3857 = vld [vmem:[%s3855 + $0x8] sm:$0xff]
      %v3858 = vld [vmem:[%s3855 + $0x10] sm:$0xff]
      %v3859 = vld [vmem:[%s3855 + $0x18] sm:$0xff]
      %v3860 = vld [vmem:[%s3855 + $0x20] sm:$0xff]
      %v3861 = vld [vmem:[%s3855 + $0x28] sm:$0xff]
      %v3862 = vld [vmem:[%s3855 + $0x30] sm:$0xff]
      %v3863 = vld [vmem:[%s3855 + $0x38] sm:$0xff]
      %v3864 = vld [vmem:[%s3855 + $0x40] sm:$0xff]
      %v3865 = vld [vmem:[%s3855 + $0x48] sm:$0xff]
      %v3866 = vld [vmem:[%s3855 + $0x50] sm:$0xff]
      %v3867 = vld [vmem:[%s3855 + $0x58] sm:$0xff]
      %v3868 = vld [vmem:[%s3855 + $0x60] sm:$0xff]
      %v3869 = vld [vmem:[%s3855 + $0x68] sm:$0xff]
      %v3870 = vld [vmem:[%s3855 + $0x70] sm:$0xff]
      %v3871 = vld [vmem:[%s3855 + $0x78] sm:$0xff]
      %v3888 = vunpack.c.l.b16 %v3839
      %v3889 = vunpack.c.l.b16 %v3840
      %v3890 = vunpack.c.l.b16 %v3841
      %v3891 = vunpack.c.l.b16 %v3842
      %v3892 = vunpack.c.l.b16 %v3843
      %v3893 = vunpack.c.l.b16 %v3844
      %v3894 = vunpack.c.l.b16 %v3845
      %v3895 = vunpack.c.l.b16 %v3846
      %v3896 = vunpack.c.l.b16 %v3847
      %v3897 = vunpack.c.l.b16 %v3848
      %v3898 = vunpack.c.l.b16 %v3849
      %v3899 = vunpack.c.l.b16 %v3850
      %v3900 = vunpack.c.l.b16 %v3851
      %v3901 = vunpack.c.l.b16 %v3852
      %v3902 = vunpack.c.l.b16 %v3853
      %v3903 = vunpack.c.l.b16 %v3854
      %v3904 = vpack.c.b16 %v3889, %v3888
      %v3905 = vpack.c.b16 %v3891, %v3890
      %v3906 = vpack.c.b16 %v3893, %v3892
      %v3907 = vpack.c.b16 %v3895, %v3894
      %v3908 = vpack.c.b16 %v3897, %v3896
      %v3909 = vpack.c.b16 %v3899, %v3898
      %v3910 = vpack.c.b16 %v3901, %v3900
      %v3911 = vpack.c.b16 %v3903, %v3902
      %v3936 = vunpack.c.l.b16 %v3856
      %v3937 = vunpack.c.h.b16 %v3856
      %v3938 = vunpack.c.l.b16 %v3857
      %v3939 = vunpack.c.h.b16 %v3857
      %v3940 = vunpack.c.l.b16 %v3858
      %v3941 = vunpack.c.h.b16 %v3858
      %v3942 = vunpack.c.l.b16 %v3859
      %v3943 = vunpack.c.h.b16 %v3859
      %v3944 = vunpack.c.l.b16 %v3860
      %v3945 = vunpack.c.h.b16 %v3860
      %v3946 = vunpack.c.l.b16 %v3861
      %v3947 = vunpack.c.h.b16 %v3861
      %v3948 = vunpack.c.l.b16 %v3862
      %v3949 = vunpack.c.h.b16 %v3862
      %v3950 = vunpack.c.l.b16 %v3863
      %v3951 = vunpack.c.h.b16 %v3863
      %v3952 = vunpack.c.l.b16 %v3864
      %v3953 = vunpack.c.h.b16 %v3864
      %v3954 = vunpack.c.l.b16 %v3865
      %v3955 = vunpack.c.h.b16 %v3865
      %v3956 = vunpack.c.l.b16 %v3866
      %v3957 = vunpack.c.h.b16 %v3866
      %v3958 = vunpack.c.l.b16 %v3867
      %v3959 = vunpack.c.h.b16 %v3867
      %v3960 = vunpack.c.l.b16 %v3868
      %v3961 = vunpack.c.h.b16 %v3868
      %v3962 = vunpack.c.l.b16 %v3869
      %v3963 = vunpack.c.h.b16 %v3869
      %v3964 = vunpack.c.l.b16 %v3870
      %v3965 = vunpack.c.h.b16 %v3870
      %v3966 = vunpack.c.l.b16 %v3871
      %v3967 = vunpack.c.h.b16 %v3871
      %v3968 = vpack.c.b16 %v3938, %v3936
      %v3969 = vpack.c.b16 %v3939, %v3937
      %v3970 = vpack.c.b16 %v3942, %v3940
      %v3971 = vpack.c.b16 %v3943, %v3941
      %v3972 = vpack.c.b16 %v3946, %v3944
      %v3973 = vpack.c.b16 %v3947, %v3945
      %v3974 = vpack.c.b16 %v3950, %v3948
      %v3975 = vpack.c.b16 %v3951, %v3949
      %v3976 = vpack.c.b16 %v3954, %v3952
      %v3977 = vpack.c.b16 %v3955, %v3953
      %v3978 = vpack.c.b16 %v3958, %v3956
      %v3979 = vpack.c.b16 %v3959, %v3957
      %v3980 = vpack.c.b16 %v3962, %v3960
      %v3981 = vpack.c.b16 %v3963, %v3961
      %v3982 = vpack.c.b16 %v3966, %v3964
      %v3983 = vpack.c.b16 %v3967, %v3965
      %4000 = vmatprep.subr.bf16.mxu0 %v3983
      %4001 = vmatpush1.bf16.msra.mxu0 %v3982
      %4002 = vmatprep.subr.bf16.mxu0 %v3981
      %4003 = vmatpush1.bf16.msra.mxu0 %v3980
      %4004 = vmatprep.subr.bf16.mxu0 %v3979
      %4005 = vmatpush1.bf16.msra.mxu0 %v3978
      %4006 = vmatprep.subr.bf16.mxu0 %v3977
      %4007 = vmatpush1.bf16.msra.mxu0 %v3976
      %4008 = vmatprep.subr.bf16.mxu0 %v3975
      %4009 = vmatpush1.bf16.msra.mxu0 %v3974
      %4010 = vmatprep.subr.bf16.mxu0 %v3973
      %4011 = vmatpush1.bf16.msra.mxu0 %v3972
      %4012 = vmatprep.subr.bf16.mxu0 %v3971
      %4013 = vmatpush1.bf16.msra.mxu0 %v3970
      %4014 = vmatprep.subr.bf16.mxu0 %v3969
      %4015 = vmatpush1.bf16.msra.mxu0 %v3968
      %4016 = vmatprep.subr.bf16.mxu0 0
      %4017 = vmatpush2.bf16.msra.mxu0 0
      %4018 = vmatprep.subr.bf16.mxu0 0
      %4019 = vmatpush2.bf16.msra.mxu0 0
      %4020 = vmatprep.subr.bf16.mxu0 0
      %4021 = vmatpush2.bf16.msra.mxu0 0
      %4022 = vmatprep.subr.bf16.mxu0 0
      %4023 = vmatpush2.bf16.msra.mxu0 0
      %4024 = vmatprep.subr.bf16.mxu0 0
      %4025 = vmatpush2.bf16.msra.mxu0 0
      %4026 = vmatprep.subr.bf16.mxu0 0
      %4027 = vmatpush2.bf16.msra.mxu0 0
      %4028 = vmatprep.subr.bf16.mxu0 0
      %4029 = vmatpush2.bf16.msra.mxu0 0
      %4030 = vmatprep.subr.bf16.mxu0 0
      %4031 = vmatpush2.bf16.msra.mxu0 0
      %4032 = vmatprep.mubr.bf16.mxu0 0
      %4033 = vmatmul.mubr.bf16.gmra.mxu0 %v3904
      %v4034 = vpop.f32.mrf.mxu0
      %v4035 = vadd.f32 0.0, %v4034
      %v4036 = vpop.f32.mrf.mxu0
      %v4037 = vadd.f32 0.0, %v4036
      %v4038 = vpop.f32.mrf.mxu0
      %v4039 = vadd.f32 0.0, %v4038
      %v4040 = vpop.f32.mrf.mxu0
      %v4041 = vadd.f32 0.0, %v4040
      %4042 = vmatprep.mubr.bf16.mxu0 0
      %4043 = vmatmul.mubr.bf16.gmra.mxu0 %v3905
      %v4044 = vpop.f32.mrf.mxu0
      %v4045 = vadd.f32 0.0, %v4044
      %v4046 = vpop.f32.mrf.mxu0
      %v4047 = vadd.f32 0.0, %v4046
      %v4048 = vpop.f32.mrf.mxu0
      %v4049 = vadd.f32 0.0, %v4048
      %v4050 = vpop.f32.mrf.mxu0
      %v4051 = vadd.f32 0.0, %v4050
      %4052 = vmatprep.mubr.bf16.mxu0 0
      %4053 = vmatmul.mubr.bf16.gmra.mxu0 %v3906
      %v4054 = vpop.f32.mrf.mxu0
      %v4055 = vadd.f32 0.0, %v4054
      %v4056 = vpop.f32.mrf.mxu0
      %v4057 = vadd.f32 0.0, %v4056
      %v4058 = vpop.f32.mrf.mxu0
      %v4059 = vadd.f32 0.0, %v4058
      %v4060 = vpop.f32.mrf.mxu0
      %v4061 = vadd.f32 0.0, %v4060
      %4062 = vmatprep.mubr.bf16.mxu0 0
      %4063 = vmatmul.mubr.bf16.gmra.mxu0 %v3907
      %v4064 = vpop.f32.mrf.mxu0
      %v4065 = vadd.f32 0.0, %v4064
      %v4066 = vpop.f32.mrf.mxu0
      %v4067 = vadd.f32 0.0, %v4066
      %v4068 = vpop.f32.mrf.mxu0
      %v4069 = vadd.f32 0.0, %v4068
      %v4070 = vpop.f32.mrf.mxu0
      %v4071 = vadd.f32 0.0, %v4070
      %4072 = vmatprep.mubr.bf16.mxu0 0
      %4073 = vmatmul.mubr.bf16.gmra.mxu0 %v3908
      %v4074 = vpop.f32.mrf.mxu0
      %v4075 = vadd.f32 0.0, %v4074
      %v4076 = vpop.f32.mrf.mxu0
      %v4077 = vadd.f32 0.0, %v4076
      %v4078 = vpop.f32.mrf.mxu0
      %v4079 = vadd.f32 0.0, %v4078
      %v4080 = vpop.f32.mrf.mxu0
      %v4081 = vadd.f32 0.0, %v4080
      %4082 = vmatprep.mubr.bf16.mxu0 0
      %4083 = vmatmul.mubr.bf16.gmra.mxu0 %v3909
      %v4084 = vpop.f32.mrf.mxu0
      %v4085 = vadd.f32 0.0, %v4084
      %v4086 = vpop.f32.mrf.mxu0
      %v4087 = vadd.f32 0.0, %v4086
      %v4088 = vpop.f32.mrf.mxu0
      %v4089 = vadd.f32 0.0, %v4088
      %v4090 = vpop.f32.mrf.mxu0
      %v4091 = vadd.f32 0.0, %v4090
      %4092 = vmatprep.mubr.bf16.mxu0 0
      %4093 = vmatmul.mubr.bf16.gmra.mxu0 %v3910
      %v4094 = vpop.f32.mrf.mxu0
      %v4095 = vadd.f32 0.0, %v4094
      %v4096 = vpop.f32.mrf.mxu0
      %v4097 = vadd.f32 0.0, %v4096
      %v4098 = vpop.f32.mrf.mxu0
      %v4099 = vadd.f32 0.0, %v4098
      %v4100 = vpop.f32.mrf.mxu0
      %v4101 = vadd.f32 0.0, %v4100
      %4102 = vmatprep.mubr.bf16.mxu0 0
      %4103 = vmatmul.mubr.bf16.gmra.mxu0 %v3911
      %v4104 = vpop.f32.mrf.mxu0
      %v4105 = vadd.f32 0.0, %v4104
      %v4106 = vpop.f32.mrf.mxu0
      %v4107 = vadd.f32 0.0, %v4106
      %v4108 = vpop.f32.mrf.mxu0
      %v4109 = vadd.f32 0.0, %v4108
      %v4110 = vpop.f32.mrf.mxu0
      %v4111 = vadd.f32 0.0, %v4110
      %4112 = vdwg.mxu0
      %v4113 = vadd.f32 %v3806, %v4035
      %v4114 = vadd.f32 %v3807, %v4037
      %v4115 = vadd.f32 %v3808, %v4039
      %v4116 = vadd.f32 %v3809, %v4041
      %v4117 = vadd.f32 %v3810, %v4045
      %v4118 = vadd.f32 %v3811, %v4047
      %v4119 = vadd.f32 %v3812, %v4049
      %v4120 = vadd.f32 %v3813, %v4051
      %v4121 = vadd.f32 %v3814, %v4055
      %v4122 = vadd.f32 %v3815, %v4057
      %v4123 = vadd.f32 %v3816, %v4059
      %v4124 = vadd.f32 %v3817, %v4061
      %v4125 = vadd.f32 %v3818, %v4065
      %v4126 = vadd.f32 %v3819, %v4067
      %v4127 = vadd.f32 %v3820, %v4069
      %v4128 = vadd.f32 %v3821, %v4071
      %v4129 = vadd.f32 %v3822, %v4075
      %v4130 = vadd.f32 %v3823, %v4077
      %v4131 = vadd.f32 %v3824, %v4079
      %v4132 = vadd.f32 %v3825, %v4081
      %v4133 = vadd.f32 %v3826, %v4085
      %v4134 = vadd.f32 %v3827, %v4087
      %v4135 = vadd.f32 %v3828, %v4089
      %v4136 = vadd.f32 %v3829, %v4091
      %v4137 = vadd.f32 %v3830, %v4095
      %v4138 = vadd.f32 %v3831, %v4097
      %v4139 = vadd.f32 %v3832, %v4099
      %v4140 = vadd.f32 %v3833, %v4101
      %v4141 = vadd.f32 %v3834, %v4105
      %v4142 = vadd.f32 %v3835, %v4107
      %v4143 = vadd.f32 %v3836, %v4109
      %v4144 = vadd.f32 %v3837, %v4111
      %v4145 = vld [vmem:[%s3838] sm:$0xf]
      %v4146 = vld [vmem:[%s3838 + $0x4] sm:$0xf]
      %v4147 = vld [vmem:[%s3838 + $0x8] sm:$0x1]
      %v4148 = vld [vmem:[%s3838 + $0xc] sm:$0xf]
      %v4149 = vld [vmem:[%s3838 + $0x10] sm:$0xf]
      %v4150 = vld [vmem:[%s3838 + $0x14] sm:$0x1]
      %v4151 = vld [vmem:[%s3838 + $0x18] sm:$0xf]
      %v4152 = vld [vmem:[%s3838 + $0x1c] sm:$0xf]
      %v4153 = vld [vmem:[%s3838 + $0x20] sm:$0x1]
      %v4154 = vld [vmem:[%s3838 + $0x24] sm:$0xf]
      %v4155 = vld [vmem:[%s3838 + $0x28] sm:$0xf]
      %v4156 = vld [vmem:[%s3838 + $0x2c] sm:$0x1]
      %v4157 = vld [vmem:[%s3838 + $0x30] sm:$0xf]
      %v4158 = vld [vmem:[%s3838 + $0x34] sm:$0xf]
      %v4159 = vld [vmem:[%s3838 + $0x38] sm:$0x1]
      %v4160 = vld [vmem:[%s3838 + $0x3c] sm:$0xf]
      %v4161 = vld [vmem:[%s3838 + $0x40] sm:$0xf]
      %v4162 = vld [vmem:[%s3838 + $0x44] sm:$0x1]
      %v4163 = vld [vmem:[%s3838 + $0x48] sm:$0xf]
      %v4164 = vld [vmem:[%s3838 + $0x4c] sm:$0xf]
      %v4165 = vld [vmem:[%s3838 + $0x50] sm:$0x1]
      %v4166 = vld [vmem:[%s3838 + $0x54] sm:$0xf]
      %v4167 = vld [vmem:[%s3838 + $0x58] sm:$0xf]
      %v4168 = vld [vmem:[%s3838 + $0x5c] sm:$0x1]
      %v4170 = vshrl.u32 %v4145, 16
      %v4172 = vrot.slane %v4170, 4
      %v4173 = vshll.u32 %v4145, 16
      %v4175 = vrot.slane %v4173, 5
      %v4176 = vor.u32 %v4172, %v4175
      %v4177 = vrot.slane %v4176, 4
      %v4179 = vshll.u32 %v4146, 16
      %v4181 = vrot.slane %v4179, 5
      %v4182 = vsel %vm442, %v4177, %v4181
      %v4183 = vshrl.u32 %v4146, 16
      %v4185 = vrot.slane %v4183, 4
      %v4186 = vor.u32 %v4185, %v4181
      %v4187 = vrot.slane %v4186, 4
      %v4189 = vshll.u32 %v4147, 16
      %v4191 = vrot.slane %v4189, 5
      %v4192 = vsel %vm442, %v4187, %v4191
      %v4194 = vshrl.u32 %v4148, 16
      %v4196 = vrot.slane %v4194, 4
      %v4197 = vshll.u32 %v4148, 16
      %v4199 = vrot.slane %v4197, 5
      %v4200 = vor.u32 %v4196, %v4199
      %v4201 = vrot.slane %v4200, 4
      %v4203 = vshll.u32 %v4149, 16
      %v4205 = vrot.slane %v4203, 5
      %v4206 = vsel %vm442, %v4201, %v4205
      %v4207 = vshrl.u32 %v4149, 16
      %v4209 = vrot.slane %v4207, 4
      %v4210 = vor.u32 %v4209, %v4205
      %v4211 = vrot.slane %v4210, 4
      %v4213 = vshll.u32 %v4150, 16
      %v4215 = vrot.slane %v4213, 5
      %v4216 = vsel %vm442, %v4211, %v4215
      %v4218 = vshrl.u32 %v4151, 16
      %v4220 = vrot.slane %v4218, 4
      %v4221 = vshll.u32 %v4151, 16
      %v4223 = vrot.slane %v4221, 5
      %v4224 = vor.u32 %v4220, %v4223
      %v4225 = vrot.slane %v4224, 4
      %v4227 = vshll.u32 %v4152, 16
      %v4229 = vrot.slane %v4227, 5
      %v4230 = vsel %vm442, %v4225, %v4229
      %v4231 = vshrl.u32 %v4152, 16
      %v4233 = vrot.slane %v4231, 4
      %v4234 = vor.u32 %v4233, %v4229
      %v4235 = vrot.slane %v4234, 4
      %v4237 = vshll.u32 %v4153, 16
      %v4239 = vrot.slane %v4237, 5
      %v4240 = vsel %vm442, %v4235, %v4239
      %v4242 = vshrl.u32 %v4154, 16
      %v4244 = vrot.slane %v4242, 4
      %v4245 = vshll.u32 %v4154, 16
      %v4247 = vrot.slane %v4245, 5
      %v4248 = vor.u32 %v4244, %v4247
      %v4249 = vrot.slane %v4248, 4
      %v4251 = vshll.u32 %v4155, 16
      %v4253 = vrot.slane %v4251, 5
      %v4254 = vsel %vm442, %v4249, %v4253
      %v4255 = vshrl.u32 %v4155, 16
      %v4257 = vrot.slane %v4255, 4
      %v4258 = vor.u32 %v4257, %v4253
      %v4259 = vrot.slane %v4258, 4
      %v4261 = vshll.u32 %v4156, 16
      %v4263 = vrot.slane %v4261, 5
      %v4264 = vsel %vm442, %v4259, %v4263
      %v4266 = vshrl.u32 %v4157, 16
      %v4268 = vrot.slane %v4266, 4
      %v4269 = vshll.u32 %v4157, 16
      %v4271 = vrot.slane %v4269, 5
      %v4272 = vor.u32 %v4268, %v4271
      %v4273 = vrot.slane %v4272, 4
      %v4275 = vshll.u32 %v4158, 16
      %v4277 = vrot.slane %v4275, 5
      %v4278 = vsel %vm442, %v4273, %v4277
      %v4279 = vshrl.u32 %v4158, 16
      %v4281 = vrot.slane %v4279, 4
      %v4282 = vor.u32 %v4281, %v4277
      %v4283 = vrot.slane %v4282, 4
      %v4285 = vshll.u32 %v4159, 16
      %v4287 = vrot.slane %v4285, 5
      %v4288 = vsel %vm442, %v4283, %v4287
      %v4290 = vshrl.u32 %v4160, 16
      %v4292 = vrot.slane %v4290, 4
      %v4293 = vshll.u32 %v4160, 16
      %v4295 = vrot.slane %v4293, 5
      %v4296 = vor.u32 %v4292, %v4295
      %v4297 = vrot.slane %v4296, 4
      %v4299 = vshll.u32 %v4161, 16
      %v4301 = vrot.slane %v4299, 5
      %v4302 = vsel %vm442, %v4297, %v4301
      %v4303 = vshrl.u32 %v4161, 16
      %v4305 = vrot.slane %v4303, 4
      %v4306 = vor.u32 %v4305, %v4301
      %v4307 = vrot.slane %v4306, 4
      %v4309 = vshll.u32 %v4162, 16
      %v4311 = vrot.slane %v4309, 5
      %v4312 = vsel %vm442, %v4307, %v4311
      %v4314 = vshrl.u32 %v4163, 16
      %v4316 = vrot.slane %v4314, 4
      %v4317 = vshll.u32 %v4163, 16
      %v4319 = vrot.slane %v4317, 5
      %v4320 = vor.u32 %v4316, %v4319
      %v4321 = vrot.slane %v4320, 4
      %v4323 = vshll.u32 %v4164, 16
      %v4325 = vrot.slane %v4323, 5
      %v4326 = vsel %vm442, %v4321, %v4325
      %v4327 = vshrl.u32 %v4164, 16
      %v4329 = vrot.slane %v4327, 4
      %v4330 = vor.u32 %v4329, %v4325
      %v4331 = vrot.slane %v4330, 4
      %v4333 = vshll.u32 %v4165, 16
      %v4335 = vrot.slane %v4333, 5
      %v4336 = vsel %vm442, %v4331, %v4335
      %v4338 = vshrl.u32 %v4166, 16
      %v4340 = vrot.slane %v4338, 4
      %v4341 = vshll.u32 %v4166, 16
      %v4343 = vrot.slane %v4341, 5
      %v4344 = vor.u32 %v4340, %v4343
      %v4345 = vrot.slane %v4344, 4
      %v4347 = vshll.u32 %v4167, 16
      %v4349 = vrot.slane %v4347, 5
      %v4350 = vsel %vm442, %v4345, %v4349
      %v4351 = vshrl.u32 %v4167, 16
      %v4353 = vrot.slane %v4351, 4
      %v4354 = vor.u32 %v4353, %v4349
      %v4355 = vrot.slane %v4354, 4
      %v4357 = vshll.u32 %v4168, 16
      %v4359 = vrot.slane %v4357, 5
      %v4360 = vsel %vm442, %v4355, %v4359
      %s4361 = scalar_lea.vmem %s6, 512
      %v4362 = vld [vmem:[%s4361] sm:$0xff]
      %v4363 = vld [vmem:[%s4361 + $0x8] sm:$0xff]
      %v4364 = vld [vmem:[%s4361 + $0x10] sm:$0xff]
      %v4365 = vld [vmem:[%s4361 + $0x18] sm:$0xff]
      %v4366 = vld [vmem:[%s4361 + $0x20] sm:$0xff]
      %v4367 = vld [vmem:[%s4361 + $0x28] sm:$0xff]
      %v4368 = vld [vmem:[%s4361 + $0x30] sm:$0xff]
      %v4369 = vld [vmem:[%s4361 + $0x38] sm:$0xff]
      %v4370 = vld [vmem:[%s4361 + $0x40] sm:$0xff]
      %v4371 = vld [vmem:[%s4361 + $0x48] sm:$0xff]
      %v4372 = vld [vmem:[%s4361 + $0x50] sm:$0xff]
      %v4373 = vld [vmem:[%s4361 + $0x58] sm:$0xff]
      %v4374 = vld [vmem:[%s4361 + $0x60] sm:$0xff]
      %v4375 = vld [vmem:[%s4361 + $0x68] sm:$0xff]
      %v4376 = vld [vmem:[%s4361 + $0x70] sm:$0xff]
      %v4377 = vld [vmem:[%s4361 + $0x78] sm:$0xff]
      %v4378 = vunpack.c.l.b16 %v4182
      %v4379 = vunpack.c.l.b16 %v4192
      %v4380 = vunpack.c.l.b16 %v4206
      %v4381 = vunpack.c.l.b16 %v4216
      %v4382 = vunpack.c.l.b16 %v4230
      %v4383 = vunpack.c.l.b16 %v4240
      %v4384 = vunpack.c.l.b16 %v4254
      %v4385 = vunpack.c.l.b16 %v4264
      %v4386 = vunpack.c.l.b16 %v4278
      %v4387 = vunpack.c.l.b16 %v4288
      %v4388 = vunpack.c.l.b16 %v4302
      %v4389 = vunpack.c.l.b16 %v4312
      %v4390 = vunpack.c.l.b16 %v4326
      %v4391 = vunpack.c.l.b16 %v4336
      %v4392 = vunpack.c.l.b16 %v4350
      %v4393 = vunpack.c.l.b16 %v4360
      %v4394 = vpack.c.b16 %v4379, %v4378
      %v4395 = vpack.c.b16 %v4381, %v4380
      %v4396 = vpack.c.b16 %v4383, %v4382
      %v4397 = vpack.c.b16 %v4385, %v4384
      %v4398 = vpack.c.b16 %v4387, %v4386
      %v4399 = vpack.c.b16 %v4389, %v4388
      %v4400 = vpack.c.b16 %v4391, %v4390
      %v4401 = vpack.c.b16 %v4393, %v4392
      %v4426 = vunpack.c.l.b16 %v4362
      %v4427 = vunpack.c.h.b16 %v4362
      %v4428 = vunpack.c.l.b16 %v4363
      %v4429 = vunpack.c.h.b16 %v4363
      %v4430 = vunpack.c.l.b16 %v4364
      %v4431 = vunpack.c.h.b16 %v4364
      %v4432 = vunpack.c.l.b16 %v4365
      %v4433 = vunpack.c.h.b16 %v4365
      %v4434 = vunpack.c.l.b16 %v4366
      %v4435 = vunpack.c.h.b16 %v4366
      %v4436 = vunpack.c.l.b16 %v4367
      %v4437 = vunpack.c.h.b16 %v4367
      %v4438 = vunpack.c.l.b16 %v4368
      %v4439 = vunpack.c.h.b16 %v4368
      %v4440 = vunpack.c.l.b16 %v4369
      %v4441 = vunpack.c.h.b16 %v4369
      %v4442 = vunpack.c.l.b16 %v4370
      %v4443 = vunpack.c.h.b16 %v4370
      %v4444 = vunpack.c.l.b16 %v4371
      %v4445 = vunpack.c.h.b16 %v4371
      %v4446 = vunpack.c.l.b16 %v4372
      %v4447 = vunpack.c.h.b16 %v4372
      %v4448 = vunpack.c.l.b16 %v4373
      %v4449 = vunpack.c.h.b16 %v4373
      %v4450 = vunpack.c.l.b16 %v4374
      %v4451 = vunpack.c.h.b16 %v4374
      %v4452 = vunpack.c.l.b16 %v4375
      %v4453 = vunpack.c.h.b16 %v4375
      %v4454 = vunpack.c.l.b16 %v4376
      %v4455 = vunpack.c.h.b16 %v4376
      %v4456 = vunpack.c.l.b16 %v4377
      %v4457 = vunpack.c.h.b16 %v4377
      %v4458 = vpack.c.b16 %v4428, %v4426
      %v4459 = vpack.c.b16 %v4429, %v4427
      %v4460 = vpack.c.b16 %v4432, %v4430
      %v4461 = vpack.c.b16 %v4433, %v4431
      %v4462 = vpack.c.b16 %v4436, %v4434
      %v4463 = vpack.c.b16 %v4437, %v4435
      %v4464 = vpack.c.b16 %v4440, %v4438
      %v4465 = vpack.c.b16 %v4441, %v4439
      %v4466 = vpack.c.b16 %v4444, %v4442
      %v4467 = vpack.c.b16 %v4445, %v4443
      %v4468 = vpack.c.b16 %v4448, %v4446
      %v4469 = vpack.c.b16 %v4449, %v4447
      %v4470 = vpack.c.b16 %v4452, %v4450
      %v4471 = vpack.c.b16 %v4453, %v4451
      %v4472 = vpack.c.b16 %v4456, %v4454
      %v4473 = vpack.c.b16 %v4457, %v4455
      %4490 = vmatprep.subr.bf16.mxu0 %v4473
      %4491 = vmatpush1.bf16.msra.mxu0 %v4472
      %4492 = vmatprep.subr.bf16.mxu0 %v4471
      %4493 = vmatpush1.bf16.msra.mxu0 %v4470
      %4494 = vmatprep.subr.bf16.mxu0 %v4469
      %4495 = vmatpush1.bf16.msra.mxu0 %v4468
      %4496 = vmatprep.subr.bf16.mxu0 %v4467
      %4497 = vmatpush1.bf16.msra.mxu0 %v4466
      %4498 = vmatprep.subr.bf16.mxu0 %v4465
      %4499 = vmatpush1.bf16.msra.mxu0 %v4464
      %4500 = vmatprep.subr.bf16.mxu0 %v4463
      %4501 = vmatpush1.bf16.msra.mxu0 %v4462
      %4502 = vmatprep.subr.bf16.mxu0 %v4461
      %4503 = vmatpush1.bf16.msra.mxu0 %v4460
      %4504 = vmatprep.subr.bf16.mxu0 %v4459
      %4505 = vmatpush1.bf16.msra.mxu0 %v4458
      %4506 = vmatprep.subr.bf16.mxu0 0
      %4507 = vmatpush2.bf16.msra.mxu0 0
      %4508 = vmatprep.subr.bf16.mxu0 0
      %4509 = vmatpush2.bf16.msra.mxu0 0
      %4510 = vmatprep.subr.bf16.mxu0 0
      %4511 = vmatpush2.bf16.msra.mxu0 0
      %4512 = vmatprep.subr.bf16.mxu0 0
      %4513 = vmatpush2.bf16.msra.mxu0 0
      %4514 = vmatprep.subr.bf16.mxu0 0
      %4515 = vmatpush2.bf16.msra.mxu0 0
      %4516 = vmatprep.subr.bf16.mxu0 0
      %4517 = vmatpush2.bf16.msra.mxu0 0
      %4518 = vmatprep.subr.bf16.mxu0 0
      %4519 = vmatpush2.bf16.msra.mxu0 0
      %4520 = vmatprep.subr.bf16.mxu0 0
      %4521 = vmatpush2.bf16.msra.mxu0 0
      %4522 = vmatprep.mubr.bf16.mxu0 0
      %4523 = vmatmul.mubr.bf16.gmra.mxu0 %v4394
      %v4524 = vpop.f32.mrf.mxu0
      %v4525 = vadd.f32 0.0, %v4524
      %v4526 = vpop.f32.mrf.mxu0
      %v4527 = vadd.f32 0.0, %v4526
      %v4528 = vpop.f32.mrf.mxu0
      %v4529 = vadd.f32 0.0, %v4528
      %v4530 = vpop.f32.mrf.mxu0
      %v4531 = vadd.f32 0.0, %v4530
      %4532 = vmatprep.mubr.bf16.mxu0 0
      %4533 = vmatmul.mubr.bf16.gmra.mxu0 %v4395
      %v4534 = vpop.f32.mrf.mxu0
      %v4535 = vadd.f32 0.0, %v4534
      %v4536 = vpop.f32.mrf.mxu0
      %v4537 = vadd.f32 0.0, %v4536
      %v4538 = vpop.f32.mrf.mxu0
      %v4539 = vadd.f32 0.0, %v4538
      %v4540 = vpop.f32.mrf.mxu0
      %v4541 = vadd.f32 0.0, %v4540
      %4542 = vmatprep.mubr.bf16.mxu0 0
      %4543 = vmatmul.mubr.bf16.gmra.mxu0 %v4396
      %v4544 = vpop.f32.mrf.mxu0
      %v4545 = vadd.f32 0.0, %v4544
      %v4546 = vpop.f32.mrf.mxu0
      %v4547 = vadd.f32 0.0, %v4546
      %v4548 = vpop.f32.mrf.mxu0
      %v4549 = vadd.f32 0.0, %v4548
      %v4550 = vpop.f32.mrf.mxu0
      %v4551 = vadd.f32 0.0, %v4550
      %4552 = vmatprep.mubr.bf16.mxu0 0
      %4553 = vmatmul.mubr.bf16.gmra.mxu0 %v4397
      %v4554 = vpop.f32.mrf.mxu0
      %v4555 = vadd.f32 0.0, %v4554
      %v4556 = vpop.f32.mrf.mxu0
      %v4557 = vadd.f32 0.0, %v4556
      %v4558 = vpop.f32.mrf.mxu0
      %v4559 = vadd.f32 0.0, %v4558
      %v4560 = vpop.f32.mrf.mxu0
      %v4561 = vadd.f32 0.0, %v4560
      %4562 = vmatprep.mubr.bf16.mxu0 0
      %4563 = vmatmul.mubr.bf16.gmra.mxu0 %v4398
      %v4564 = vpop.f32.mrf.mxu0
      %v4565 = vadd.f32 0.0, %v4564
      %v4566 = vpop.f32.mrf.mxu0
      %v4567 = vadd.f32 0.0, %v4566
      %v4568 = vpop.f32.mrf.mxu0
      %v4569 = vadd.f32 0.0, %v4568
      %v4570 = vpop.f32.mrf.mxu0
      %v4571 = vadd.f32 0.0, %v4570
      %4572 = vmatprep.mubr.bf16.mxu0 0
      %4573 = vmatmul.mubr.bf16.gmra.mxu0 %v4399
      %v4574 = vpop.f32.mrf.mxu0
      %v4575 = vadd.f32 0.0, %v4574
      %v4576 = vpop.f32.mrf.mxu0
      %v4577 = vadd.f32 0.0, %v4576
      %v4578 = vpop.f32.mrf.mxu0
      %v4579 = vadd.f32 0.0, %v4578
      %v4580 = vpop.f32.mrf.mxu0
      %v4581 = vadd.f32 0.0, %v4580
      %4582 = vmatprep.mubr.bf16.mxu0 0
      %4583 = vmatmul.mubr.bf16.gmra.mxu0 %v4400
      %v4584 = vpop.f32.mrf.mxu0
      %v4585 = vadd.f32 0.0, %v4584
      %v4586 = vpop.f32.mrf.mxu0
      %v4587 = vadd.f32 0.0, %v4586
      %v4588 = vpop.f32.mrf.mxu0
      %v4589 = vadd.f32 0.0, %v4588
      %v4590 = vpop.f32.mrf.mxu0
      %v4591 = vadd.f32 0.0, %v4590
      %4592 = vmatprep.mubr.bf16.mxu0 0
      %4593 = vmatmul.mubr.bf16.gmra.mxu0 %v4401
      %v4594 = vpop.f32.mrf.mxu0
      %v4595 = vadd.f32 0.0, %v4594
      %v4596 = vpop.f32.mrf.mxu0
      %v4597 = vadd.f32 0.0, %v4596
      %v4598 = vpop.f32.mrf.mxu0
      %v4599 = vadd.f32 0.0, %v4598
      %v4600 = vpop.f32.mrf.mxu0
      %v4601 = vadd.f32 0.0, %v4600
      %4602 = vdwg.mxu0
      %v4603 = vadd.f32 %v4113, %v4525
      %v4604 = vadd.f32 %v4114, %v4527
      %v4605 = vadd.f32 %v4115, %v4529
      %v4606 = vadd.f32 %v4116, %v4531
      %v4607 = vadd.f32 %v4117, %v4535
      %v4608 = vadd.f32 %v4118, %v4537
      %v4609 = vadd.f32 %v4119, %v4539
      %v4610 = vadd.f32 %v4120, %v4541
      %v4611 = vadd.f32 %v4121, %v4545
      %v4612 = vadd.f32 %v4122, %v4547
      %v4613 = vadd.f32 %v4123, %v4549
      %v4614 = vadd.f32 %v4124, %v4551
      %v4615 = vadd.f32 %v4125, %v4555
      %v4616 = vadd.f32 %v4126, %v4557
      %v4617 = vadd.f32 %v4127, %v4559
      %v4618 = vadd.f32 %v4128, %v4561
      %v4619 = vadd.f32 %v4129, %v4565
      %v4620 = vadd.f32 %v4130, %v4567
      %v4621 = vadd.f32 %v4131, %v4569
      %v4622 = vadd.f32 %v4132, %v4571
      %v4623 = vadd.f32 %v4133, %v4575
      %v4624 = vadd.f32 %v4134, %v4577
      %v4625 = vadd.f32 %v4135, %v4579
      %v4626 = vadd.f32 %v4136, %v4581
      %v4627 = vadd.f32 %v4137, %v4585
      %v4628 = vadd.f32 %v4138, %v4587
      %v4629 = vadd.f32 %v4139, %v4589
      %v4630 = vadd.f32 %v4140, %v4591
      %v4631 = vadd.f32 %v4141, %v4595
      %v4632 = vadd.f32 %v4142, %v4597
      %v4633 = vadd.f32 %v4143, %v4599
      %v4634 = vadd.f32 %v4144, %v4601
      %v4635 = vld [vmem:[%s3838] sm:$0xe]
      %v4636 = vld [vmem:[%s3838 + $0xc] sm:$0xe]
      %v4637 = vld [vmem:[%s3838 + $0x18] sm:$0xe]
      %v4638 = vld [vmem:[%s3838 + $0x24] sm:$0xe]
      %v4639 = vld [vmem:[%s3838 + $0x30] sm:$0xe]
      %v4640 = vld [vmem:[%s3838 + $0x3c] sm:$0xe]
      %v4641 = vld [vmem:[%s3838 + $0x48] sm:$0xe]
      %v4642 = vld [vmem:[%s3838 + $0x54] sm:$0xe]
      %v4667 = vrot.slane %v4635, 5
      %v4668 = vrot.slane %v4667, 4
      %v4669 = vrot.slane %v4146, 5
      %v4670 = vsel %vm1071, %v4668, %v4669
      %v4671 = vrot.slane %v4669, 4
      %v4672 = vrot.slane %v4147, 5
      %v4673 = vsel %vm1071, %v4671, %v4672
      %v4674 = vrot.slane %v4636, 5
      %v4675 = vrot.slane %v4674, 4
      %v4676 = vrot.slane %v4149, 5
      %v4677 = vsel %vm1071, %v4675, %v4676
      %v4678 = vrot.slane %v4676, 4
      %v4679 = vrot.slane %v4150, 5
      %v4680 = vsel %vm1071, %v4678, %v4679
      %v4681 = vrot.slane %v4637, 5
      %v4682 = vrot.slane %v4681, 4
      %v4683 = vrot.slane %v4152, 5
      %v4684 = vsel %vm1071, %v4682, %v4683
      %v4685 = vrot.slane %v4683, 4
      %v4686 = vrot.slane %v4153, 5
      %v4687 = vsel %vm1071, %v4685, %v4686
      %v4688 = vrot.slane %v4638, 5
      %v4689 = vrot.slane %v4688, 4
      %v4690 = vrot.slane %v4155, 5
      %v4691 = vsel %vm1071, %v4689, %v4690
      %v4692 = vrot.slane %v4690, 4
      %v4693 = vrot.slane %v4156, 5
      %v4694 = vsel %vm1071, %v4692, %v4693
      %v4695 = vrot.slane %v4639, 5
      %v4696 = vrot.slane %v4695, 4
      %v4697 = vrot.slane %v4158, 5
      %v4698 = vsel %vm1071, %v4696, %v4697
      %v4699 = vrot.slane %v4697, 4
      %v4700 = vrot.slane %v4159, 5
      %v4701 = vsel %vm1071, %v4699, %v4700
      %v4702 = vrot.slane %v4640, 5
      %v4703 = vrot.slane %v4702, 4
      %v4704 = vrot.slane %v4161, 5
      %v4705 = vsel %vm1071, %v4703, %v4704
      %v4706 = vrot.slane %v4704, 4
      %v4707 = vrot.slane %v4162, 5
      %v4708 = vsel %vm1071, %v4706, %v4707
      %v4709 = vrot.slane %v4641, 5
      %v4710 = vrot.slane %v4709, 4
      %v4711 = vrot.slane %v4164, 5
      %v4712 = vsel %vm1071, %v4710, %v4711
      %v4713 = vrot.slane %v4711, 4
      %v4714 = vrot.slane %v4165, 5
      %v4715 = vsel %vm1071, %v4713, %v4714
      %v4716 = vrot.slane %v4642, 5
      %v4717 = vrot.slane %v4716, 4
      %v4718 = vrot.slane %v4167, 5
      %v4719 = vsel %vm1071, %v4717, %v4718
      %v4720 = vrot.slane %v4718, 4
      %v4721 = vrot.slane %v4168, 5
      %v4722 = vsel %vm1071, %v4720, %v4721
      %s4723 = scalar_lea.vmem %s6, 640
      %v4724 = vld [vmem:[%s4723] sm:$0xff]
      %v4725 = vld [vmem:[%s4723 + $0x8] sm:$0xff]
      %v4726 = vld [vmem:[%s4723 + $0x10] sm:$0xff]
      %v4727 = vld [vmem:[%s4723 + $0x18] sm:$0xff]
      %v4728 = vld [vmem:[%s4723 + $0x20] sm:$0xff]
      %v4729 = vld [vmem:[%s4723 + $0x28] sm:$0xff]
      %v4730 = vld [vmem:[%s4723 + $0x30] sm:$0xff]
      %v4731 = vld [vmem:[%s4723 + $0x38] sm:$0xff]
      %v4732 = vld [vmem:[%s4723 + $0x40] sm:$0xff]
      %v4733 = vld [vmem:[%s4723 + $0x48] sm:$0xff]
      %v4734 = vld [vmem:[%s4723 + $0x50] sm:$0xff]
      %v4735 = vld [vmem:[%s4723 + $0x58] sm:$0xff]
      %v4736 = vld [vmem:[%s4723 + $0x60] sm:$0xff]
      %v4737 = vld [vmem:[%s4723 + $0x68] sm:$0xff]
      %v4738 = vld [vmem:[%s4723 + $0x70] sm:$0xff]
      %v4739 = vld [vmem:[%s4723 + $0x78] sm:$0xff]
      %v4740 = vunpack.c.l.b16 %v4670
      %v4741 = vunpack.c.l.b16 %v4673
      %v4742 = vunpack.c.l.b16 %v4677
      %v4743 = vunpack.c.l.b16 %v4680
      %v4744 = vunpack.c.l.b16 %v4684
      %v4745 = vunpack.c.l.b16 %v4687
      %v4746 = vunpack.c.l.b16 %v4691
      %v4747 = vunpack.c.l.b16 %v4694
      %v4748 = vunpack.c.l.b16 %v4698
      %v4749 = vunpack.c.l.b16 %v4701
      %v4750 = vunpack.c.l.b16 %v4705
      %v4751 = vunpack.c.l.b16 %v4708
      %v4752 = vunpack.c.l.b16 %v4712
      %v4753 = vunpack.c.l.b16 %v4715
      %v4754 = vunpack.c.l.b16 %v4719
      %v4755 = vunpack.c.l.b16 %v4722
      %v4756 = vpack.c.b16 %v4741, %v4740
      %v4757 = vpack.c.b16 %v4743, %v4742
      %v4758 = vpack.c.b16 %v4745, %v4744
      %v4759 = vpack.c.b16 %v4747, %v4746
      %v4760 = vpack.c.b16 %v4749, %v4748
      %v4761 = vpack.c.b16 %v4751, %v4750
      %v4762 = vpack.c.b16 %v4753, %v4752
      %v4763 = vpack.c.b16 %v4755, %v4754
      %v4788 = vunpack.c.l.b16 %v4724
      %v4789 = vunpack.c.h.b16 %v4724
      %v4790 = vunpack.c.l.b16 %v4725
      %v4791 = vunpack.c.h.b16 %v4725
      %v4792 = vunpack.c.l.b16 %v4726
      %v4793 = vunpack.c.h.b16 %v4726
      %v4794 = vunpack.c.l.b16 %v4727
      %v4795 = vunpack.c.h.b16 %v4727
      %v4796 = vunpack.c.l.b16 %v4728
      %v4797 = vunpack.c.h.b16 %v4728
      %v4798 = vunpack.c.l.b16 %v4729
      %v4799 = vunpack.c.h.b16 %v4729
      %v4800 = vunpack.c.l.b16 %v4730
      %v4801 = vunpack.c.h.b16 %v4730
      %v4802 = vunpack.c.l.b16 %v4731
      %v4803 = vunpack.c.h.b16 %v4731
      %v4804 = vunpack.c.l.b16 %v4732
      %v4805 = vunpack.c.h.b16 %v4732
      %v4806 = vunpack.c.l.b16 %v4733
      %v4807 = vunpack.c.h.b16 %v4733
      %v4808 = vunpack.c.l.b16 %v4734
      %v4809 = vunpack.c.h.b16 %v4734
      %v4810 = vunpack.c.l.b16 %v4735
      %v4811 = vunpack.c.h.b16 %v4735
      %v4812 = vunpack.c.l.b16 %v4736
      %v4813 = vunpack.c.h.b16 %v4736
      %v4814 = vunpack.c.l.b16 %v4737
      %v4815 = vunpack.c.h.b16 %v4737
      %v4816 = vunpack.c.l.b16 %v4738
      %v4817 = vunpack.c.h.b16 %v4738
      %v4818 = vunpack.c.l.b16 %v4739
      %v4819 = vunpack.c.h.b16 %v4739
      %v4820 = vpack.c.b16 %v4790, %v4788
      %v4821 = vpack.c.b16 %v4791, %v4789
      %v4822 = vpack.c.b16 %v4794, %v4792
      %v4823 = vpack.c.b16 %v4795, %v4793
      %v4824 = vpack.c.b16 %v4798, %v4796
      %v4825 = vpack.c.b16 %v4799, %v4797
      %v4826 = vpack.c.b16 %v4802, %v4800
      %v4827 = vpack.c.b16 %v4803, %v4801
      %v4828 = vpack.c.b16 %v4806, %v4804
      %v4829 = vpack.c.b16 %v4807, %v4805
      %v4830 = vpack.c.b16 %v4810, %v4808
      %v4831 = vpack.c.b16 %v4811, %v4809
      %v4832 = vpack.c.b16 %v4814, %v4812
      %v4833 = vpack.c.b16 %v4815, %v4813
      %v4834 = vpack.c.b16 %v4818, %v4816
      %v4835 = vpack.c.b16 %v4819, %v4817
      %4852 = vmatprep.subr.bf16.mxu0 %v4835
      %4853 = vmatpush1.bf16.msra.mxu0 %v4834
      %4854 = vmatprep.subr.bf16.mxu0 %v4833
      %4855 = vmatpush1.bf16.msra.mxu0 %v4832
      %4856 = vmatprep.subr.bf16.mxu0 %v4831
      %4857 = vmatpush1.bf16.msra.mxu0 %v4830
      %4858 = vmatprep.subr.bf16.mxu0 %v4829
      %4859 = vmatpush1.bf16.msra.mxu0 %v4828
      %4860 = vmatprep.subr.bf16.mxu0 %v4827
      %4861 = vmatpush1.bf16.msra.mxu0 %v4826
      %4862 = vmatprep.subr.bf16.mxu0 %v4825
      %4863 = vmatpush1.bf16.msra.mxu0 %v4824
      %4864 = vmatprep.subr.bf16.mxu0 %v4823
      %4865 = vmatpush1.bf16.msra.mxu0 %v4822
      %4866 = vmatprep.subr.bf16.mxu0 %v4821
      %4867 = vmatpush1.bf16.msra.mxu0 %v4820
      %4868 = vmatprep.subr.bf16.mxu0 0
      %4869 = vmatpush2.bf16.msra.mxu0 0
      %4870 = vmatprep.subr.bf16.mxu0 0
      %4871 = vmatpush2.bf16.msra.mxu0 0
      %4872 = vmatprep.subr.bf16.mxu0 0
      %4873 = vmatpush2.bf16.msra.mxu0 0
      %4874 = vmatprep.subr.bf16.mxu0 0
      %4875 = vmatpush2.bf16.msra.mxu0 0
      %4876 = vmatprep.subr.bf16.mxu0 0
      %4877 = vmatpush2.bf16.msra.mxu0 0
      %4878 = vmatprep.subr.bf16.mxu0 0
      %4879 = vmatpush2.bf16.msra.mxu0 0
      %4880 = vmatprep.subr.bf16.mxu0 0
      %4881 = vmatpush2.bf16.msra.mxu0 0
      %4882 = vmatprep.subr.bf16.mxu0 0
      %4883 = vmatpush2.bf16.msra.mxu0 0
      %4884 = vmatprep.mubr.bf16.mxu0 0
      %4885 = vmatmul.mubr.bf16.gmra.mxu0 %v4756
      %v4886 = vpop.f32.mrf.mxu0
      %v4887 = vadd.f32 0.0, %v4886
      %v4888 = vpop.f32.mrf.mxu0
      %v4889 = vadd.f32 0.0, %v4888
      %v4890 = vpop.f32.mrf.mxu0
      %v4891 = vadd.f32 0.0, %v4890
      %v4892 = vpop.f32.mrf.mxu0
      %v4893 = vadd.f32 0.0, %v4892
      %4894 = vmatprep.mubr.bf16.mxu0 0
      %4895 = vmatmul.mubr.bf16.gmra.mxu0 %v4757
      %v4896 = vpop.f32.mrf.mxu0
      %v4897 = vadd.f32 0.0, %v4896
      %v4898 = vpop.f32.mrf.mxu0
      %v4899 = vadd.f32 0.0, %v4898
      %v4900 = vpop.f32.mrf.mxu0
      %v4901 = vadd.f32 0.0, %v4900
      %v4902 = vpop.f32.mrf.mxu0
      %v4903 = vadd.f32 0.0, %v4902
      %4904 = vmatprep.mubr.bf16.mxu0 0
      %4905 = vmatmul.mubr.bf16.gmra.mxu0 %v4758
      %v4906 = vpop.f32.mrf.mxu0
      %v4907 = vadd.f32 0.0, %v4906
      %v4908 = vpop.f32.mrf.mxu0
      %v4909 = vadd.f32 0.0, %v4908
      %v4910 = vpop.f32.mrf.mxu0
      %v4911 = vadd.f32 0.0, %v4910
      %v4912 = vpop.f32.mrf.mxu0
      %v4913 = vadd.f32 0.0, %v4912
      %4914 = vmatprep.mubr.bf16.mxu0 0
      %4915 = vmatmul.mubr.bf16.gmra.mxu0 %v4759
      %v4916 = vpop.f32.mrf.mxu0
      %v4917 = vadd.f32 0.0, %v4916
      %v4918 = vpop.f32.mrf.mxu0
      %v4919 = vadd.f32 0.0, %v4918
      %v4920 = vpop.f32.mrf.mxu0
      %v4921 = vadd.f32 0.0, %v4920
      %v4922 = vpop.f32.mrf.mxu0
      %v4923 = vadd.f32 0.0, %v4922
      %4924 = vmatprep.mubr.bf16.mxu0 0
      %4925 = vmatmul.mubr.bf16.gmra.mxu0 %v4760
      %v4926 = vpop.f32.mrf.mxu0
      %v4927 = vadd.f32 0.0, %v4926
      %v4928 = vpop.f32.mrf.mxu0
      %v4929 = vadd.f32 0.0, %v4928
      %v4930 = vpop.f32.mrf.mxu0
      %v4931 = vadd.f32 0.0, %v4930
      %v4932 = vpop.f32.mrf.mxu0
      %v4933 = vadd.f32 0.0, %v4932
      %4934 = vmatprep.mubr.bf16.mxu0 0
      %4935 = vmatmul.mubr.bf16.gmra.mxu0 %v4761
      %v4936 = vpop.f32.mrf.mxu0
      %v4937 = vadd.f32 0.0, %v4936
      %v4938 = vpop.f32.mrf.mxu0
      %v4939 = vadd.f32 0.0, %v4938
      %v4940 = vpop.f32.mrf.mxu0
      %v4941 = vadd.f32 0.0, %v4940
      %v4942 = vpop.f32.mrf.mxu0
      %v4943 = vadd.f32 0.0, %v4942
      %4944 = vmatprep.mubr.bf16.mxu0 0
      %4945 = vmatmul.mubr.bf16.gmra.mxu0 %v4762
      %v4946 = vpop.f32.mrf.mxu0
      %v4947 = vadd.f32 0.0, %v4946
      %v4948 = vpop.f32.mrf.mxu0
      %v4949 = vadd.f32 0.0, %v4948
      %v4950 = vpop.f32.mrf.mxu0
      %v4951 = vadd.f32 0.0, %v4950
      %v4952 = vpop.f32.mrf.mxu0
      %v4953 = vadd.f32 0.0, %v4952
      %4954 = vmatprep.mubr.bf16.mxu0 0
      %4955 = vmatmul.mubr.bf16.gmra.mxu0 %v4763
      %v4956 = vpop.f32.mrf.mxu0
      %v4957 = vadd.f32 0.0, %v4956
      %v4958 = vpop.f32.mrf.mxu0
      %v4959 = vadd.f32 0.0, %v4958
      %v4960 = vpop.f32.mrf.mxu0
      %v4961 = vadd.f32 0.0, %v4960
      %v4962 = vpop.f32.mrf.mxu0
      %v4963 = vadd.f32 0.0, %v4962
      %4964 = vdwg.mxu0
      %v4965 = vadd.f32 %v4603, %v4887
      %v4966 = vadd.f32 %v4604, %v4889
      %v4967 = vadd.f32 %v4605, %v4891
      %v4968 = vadd.f32 %v4606, %v4893
      %v4969 = vadd.f32 %v4607, %v4897
      %v4970 = vadd.f32 %v4608, %v4899
      %v4971 = vadd.f32 %v4609, %v4901
      %v4972 = vadd.f32 %v4610, %v4903
      %v4973 = vadd.f32 %v4611, %v4907
      %v4974 = vadd.f32 %v4612, %v4909
      %v4975 = vadd.f32 %v4613, %v4911
      %v4976 = vadd.f32 %v4614, %v4913
      %v4977 = vadd.f32 %v4615, %v4917
      %v4978 = vadd.f32 %v4616, %v4919
      %v4979 = vadd.f32 %v4617, %v4921
      %v4980 = vadd.f32 %v4618, %v4923
      %v4981 = vadd.f32 %v4619, %v4927
      %v4982 = vadd.f32 %v4620, %v4929
      %v4983 = vadd.f32 %v4621, %v4931
      %v4984 = vadd.f32 %v4622, %v4933
      %v4985 = vadd.f32 %v4623, %v4937
      %v4986 = vadd.f32 %v4624, %v4939
      %v4987 = vadd.f32 %v4625, %v4941
      %v4988 = vadd.f32 %v4626, %v4943
      %v4989 = vadd.f32 %v4627, %v4947
      %v4990 = vadd.f32 %v4628, %v4949
      %v4991 = vadd.f32 %v4629, %v4951
      %v4992 = vadd.f32 %v4630, %v4953
      %v4993 = vadd.f32 %v4631, %v4957
      %v4994 = vadd.f32 %v4632, %v4959
      %v4995 = vadd.f32 %v4633, %v4961
      %v4996 = vadd.f32 %v4634, %v4963
      %s4997 = scalar_lea.vmem [#allocation2], 24
      %v4998 = vld [vmem:[%s4997] sm:$0xf]
      %v4999 = vld [vmem:[%s4997 + $0x4] sm:$0xf]
      %v5000 = vld [vmem:[%s4997 + $0xc] sm:$0xf]
      %v5001 = vld [vmem:[%s4997 + $0x10] sm:$0xf]
      %v5002 = vld [vmem:[%s4997 + $0x18] sm:$0xf]
      %v5003 = vld [vmem:[%s4997 + $0x1c] sm:$0xf]
      %v5004 = vld [vmem:[%s4997 + $0x24] sm:$0xf]
      %v5005 = vld [vmem:[%s4997 + $0x28] sm:$0xf]
      %v5006 = vld [vmem:[%s4997 + $0x30] sm:$0xf]
      %v5007 = vld [vmem:[%s4997 + $0x34] sm:$0xf]
      %v5008 = vld [vmem:[%s4997 + $0x3c] sm:$0xf]
      %v5009 = vld [vmem:[%s4997 + $0x40] sm:$0xf]
      %v5010 = vld [vmem:[%s4997 + $0x48] sm:$0xf]
      %v5011 = vld [vmem:[%s4997 + $0x4c] sm:$0xf]
      %v5012 = vld [vmem:[%s4997 + $0x54] sm:$0xf]
      %v5013 = vld [vmem:[%s4997 + $0x58] sm:$0xf]
      %s5014 = scalar_lea.vmem %s6, 768
      %v5015 = vld [vmem:[%s5014] sm:$0xff]
      %v5016 = vld [vmem:[%s5014 + $0x8] sm:$0xff]
      %v5017 = vld [vmem:[%s5014 + $0x10] sm:$0xff]
      %v5018 = vld [vmem:[%s5014 + $0x18] sm:$0xff]
      %v5019 = vld [vmem:[%s5014 + $0x20] sm:$0xff]
      %v5020 = vld [vmem:[%s5014 + $0x28] sm:$0xff]
      %v5021 = vld [vmem:[%s5014 + $0x30] sm:$0xff]
      %v5022 = vld [vmem:[%s5014 + $0x38] sm:$0xff]
      %v5023 = vld [vmem:[%s5014 + $0x40] sm:$0xff]
      %v5024 = vld [vmem:[%s5014 + $0x48] sm:$0xff]
      %v5025 = vld [vmem:[%s5014 + $0x50] sm:$0xff]
      %v5026 = vld [vmem:[%s5014 + $0x58] sm:$0xff]
      %v5027 = vld [vmem:[%s5014 + $0x60] sm:$0xff]
      %v5028 = vld [vmem:[%s5014 + $0x68] sm:$0xff]
      %v5029 = vld [vmem:[%s5014 + $0x70] sm:$0xff]
      %v5030 = vld [vmem:[%s5014 + $0x78] sm:$0xff]
      %v5047 = vunpack.c.l.b16 %v4998
      %v5048 = vunpack.c.l.b16 %v4999
      %v5049 = vunpack.c.l.b16 %v5000
      %v5050 = vunpack.c.l.b16 %v5001
      %v5051 = vunpack.c.l.b16 %v5002
      %v5052 = vunpack.c.l.b16 %v5003
      %v5053 = vunpack.c.l.b16 %v5004
      %v5054 = vunpack.c.l.b16 %v5005
      %v5055 = vunpack.c.l.b16 %v5006
      %v5056 = vunpack.c.l.b16 %v5007
      %v5057 = vunpack.c.l.b16 %v5008
      %v5058 = vunpack.c.l.b16 %v5009
      %v5059 = vunpack.c.l.b16 %v5010
      %v5060 = vunpack.c.l.b16 %v5011
      %v5061 = vunpack.c.l.b16 %v5012
      %v5062 = vunpack.c.l.b16 %v5013
      %v5063 = vpack.c.b16 %v5048, %v5047
      %v5064 = vpack.c.b16 %v5050, %v5049
      %v5065 = vpack.c.b16 %v5052, %v5051
      %v5066 = vpack.c.b16 %v5054, %v5053
      %v5067 = vpack.c.b16 %v5056, %v5055
      %v5068 = vpack.c.b16 %v5058, %v5057
      %v5069 = vpack.c.b16 %v5060, %v5059
      %v5070 = vpack.c.b16 %v5062, %v5061
      %v5095 = vunpack.c.l.b16 %v5015
      %v5096 = vunpack.c.h.b16 %v5015
      %v5097 = vunpack.c.l.b16 %v5016
      %v5098 = vunpack.c.h.b16 %v5016
      %v5099 = vunpack.c.l.b16 %v5017
      %v5100 = vunpack.c.h.b16 %v5017
      %v5101 = vunpack.c.l.b16 %v5018
      %v5102 = vunpack.c.h.b16 %v5018
      %v5103 = vunpack.c.l.b16 %v5019
      %v5104 = vunpack.c.h.b16 %v5019
      %v5105 = vunpack.c.l.b16 %v5020
      %v5106 = vunpack.c.h.b16 %v5020
      %v5107 = vunpack.c.l.b16 %v5021
      %v5108 = vunpack.c.h.b16 %v5021
      %v5109 = vunpack.c.l.b16 %v5022
      %v5110 = vunpack.c.h.b16 %v5022
      %v5111 = vunpack.c.l.b16 %v5023
      %v5112 = vunpack.c.h.b16 %v5023
      %v5113 = vunpack.c.l.b16 %v5024
      %v5114 = vunpack.c.h.b16 %v5024
      %v5115 = vunpack.c.l.b16 %v5025
      %v5116 = vunpack.c.h.b16 %v5025
      %v5117 = vunpack.c.l.b16 %v5026
      %v5118 = vunpack.c.h.b16 %v5026
      %v5119 = vunpack.c.l.b16 %v5027
      %v5120 = vunpack.c.h.b16 %v5027
      %v5121 = vunpack.c.l.b16 %v5028
      %v5122 = vunpack.c.h.b16 %v5028
      %v5123 = vunpack.c.l.b16 %v5029
      %v5124 = vunpack.c.h.b16 %v5029
      %v5125 = vunpack.c.l.b16 %v5030
      %v5126 = vunpack.c.h.b16 %v5030
      %v5127 = vpack.c.b16 %v5097, %v5095
      %v5128 = vpack.c.b16 %v5098, %v5096
      %v5129 = vpack.c.b16 %v5101, %v5099
      %v5130 = vpack.c.b16 %v5102, %v5100
      %v5131 = vpack.c.b16 %v5105, %v5103
      %v5132 = vpack.c.b16 %v5106, %v5104
      %v5133 = vpack.c.b16 %v5109, %v5107
      %v5134 = vpack.c.b16 %v5110, %v5108
      %v5135 = vpack.c.b16 %v5113, %v5111
      %v5136 = vpack.c.b16 %v5114, %v5112
      %v5137 = vpack.c.b16 %v5117, %v5115
      %v5138 = vpack.c.b16 %v5118, %v5116
      %v5139 = vpack.c.b16 %v5121, %v5119
      %v5140 = vpack.c.b16 %v5122, %v5120
      %v5141 = vpack.c.b16 %v5125, %v5123
      %v5142 = vpack.c.b16 %v5126, %v5124
      %5159 = vmatprep.subr.bf16.mxu0 %v5142
      %5160 = vmatpush1.bf16.msra.mxu0 %v5141
      %5161 = vmatprep.subr.bf16.mxu0 %v5140
      %5162 = vmatpush1.bf16.msra.mxu0 %v5139
      %5163 = vmatprep.subr.bf16.mxu0 %v5138
      %5164 = vmatpush1.bf16.msra.mxu0 %v5137
      %5165 = vmatprep.subr.bf16.mxu0 %v5136
      %5166 = vmatpush1.bf16.msra.mxu0 %v5135
      %5167 = vmatprep.subr.bf16.mxu0 %v5134
      %5168 = vmatpush1.bf16.msra.mxu0 %v5133
      %5169 = vmatprep.subr.bf16.mxu0 %v5132
      %5170 = vmatpush1.bf16.msra.mxu0 %v5131
      %5171 = vmatprep.subr.bf16.mxu0 %v5130
      %5172 = vmatpush1.bf16.msra.mxu0 %v5129
      %5173 = vmatprep.subr.bf16.mxu0 %v5128
      %5174 = vmatpush1.bf16.msra.mxu0 %v5127
      %5175 = vmatprep.subr.bf16.mxu0 0
      %5176 = vmatpush2.bf16.msra.mxu0 0
      %5177 = vmatprep.subr.bf16.mxu0 0
      %5178 = vmatpush2.bf16.msra.mxu0 0
      %5179 = vmatprep.subr.bf16.mxu0 0
      %5180 = vmatpush2.bf16.msra.mxu0 0
      %5181 = vmatprep.subr.bf16.mxu0 0
      %5182 = vmatpush2.bf16.msra.mxu0 0
      %5183 = vmatprep.subr.bf16.mxu0 0
      %5184 = vmatpush2.bf16.msra.mxu0 0
      %5185 = vmatprep.subr.bf16.mxu0 0
      %5186 = vmatpush2.bf16.msra.mxu0 0
      %5187 = vmatprep.subr.bf16.mxu0 0
      %5188 = vmatpush2.bf16.msra.mxu0 0
      %5189 = vmatprep.subr.bf16.mxu0 0
      %5190 = vmatpush2.bf16.msra.mxu0 0
      %5191 = vmatprep.mubr.bf16.mxu0 0
      %5192 = vmatmul.mubr.bf16.gmra.mxu0 %v5063
      %v5193 = vpop.f32.mrf.mxu0
      %v5194 = vadd.f32 0.0, %v5193
      %v5195 = vpop.f32.mrf.mxu0
      %v5196 = vadd.f32 0.0, %v5195
      %v5197 = vpop.f32.mrf.mxu0
      %v5198 = vadd.f32 0.0, %v5197
      %v5199 = vpop.f32.mrf.mxu0
      %v5200 = vadd.f32 0.0, %v5199
      %5201 = vmatprep.mubr.bf16.mxu0 0
      %5202 = vmatmul.mubr.bf16.gmra.mxu0 %v5064
      %v5203 = vpop.f32.mrf.mxu0
      %v5204 = vadd.f32 0.0, %v5203
      %v5205 = vpop.f32.mrf.mxu0
      %v5206 = vadd.f32 0.0, %v5205
      %v5207 = vpop.f32.mrf.mxu0
      %v5208 = vadd.f32 0.0, %v5207
      %v5209 = vpop.f32.mrf.mxu0
      %v5210 = vadd.f32 0.0, %v5209
      %5211 = vmatprep.mubr.bf16.mxu0 0
      %5212 = vmatmul.mubr.bf16.gmra.mxu0 %v5065
      %v5213 = vpop.f32.mrf.mxu0
      %v5214 = vadd.f32 0.0, %v5213
      %v5215 = vpop.f32.mrf.mxu0
      %v5216 = vadd.f32 0.0, %v5215
      %v5217 = vpop.f32.mrf.mxu0
      %v5218 = vadd.f32 0.0, %v5217
      %v5219 = vpop.f32.mrf.mxu0
      %v5220 = vadd.f32 0.0, %v5219
      %5221 = vmatprep.mubr.bf16.mxu0 0
      %5222 = vmatmul.mubr.bf16.gmra.mxu0 %v5066
      %v5223 = vpop.f32.mrf.mxu0
      %v5224 = vadd.f32 0.0, %v5223
      %v5225 = vpop.f32.mrf.mxu0
      %v5226 = vadd.f32 0.0, %v5225
      %v5227 = vpop.f32.mrf.mxu0
      %v5228 = vadd.f32 0.0, %v5227
      %v5229 = vpop.f32.mrf.mxu0
      %v5230 = vadd.f32 0.0, %v5229
      %5231 = vmatprep.mubr.bf16.mxu0 0
      %5232 = vmatmul.mubr.bf16.gmra.mxu0 %v5067
      %v5233 = vpop.f32.mrf.mxu0
      %v5234 = vadd.f32 0.0, %v5233
      %v5235 = vpop.f32.mrf.mxu0
      %v5236 = vadd.f32 0.0, %v5235
      %v5237 = vpop.f32.mrf.mxu0
      %v5238 = vadd.f32 0.0, %v5237
      %v5239 = vpop.f32.mrf.mxu0
      %v5240 = vadd.f32 0.0, %v5239
      %5241 = vmatprep.mubr.bf16.mxu0 0
      %5242 = vmatmul.mubr.bf16.gmra.mxu0 %v5068
      %v5243 = vpop.f32.mrf.mxu0
      %v5244 = vadd.f32 0.0, %v5243
      %v5245 = vpop.f32.mrf.mxu0
      %v5246 = vadd.f32 0.0, %v5245
      %v5247 = vpop.f32.mrf.mxu0
      %v5248 = vadd.f32 0.0, %v5247
      %v5249 = vpop.f32.mrf.mxu0
      %v5250 = vadd.f32 0.0, %v5249
      %5251 = vmatprep.mubr.bf16.mxu0 0
      %5252 = vmatmul.mubr.bf16.gmra.mxu0 %v5069
      %v5253 = vpop.f32.mrf.mxu0
      %v5254 = vadd.f32 0.0, %v5253
      %v5255 = vpop.f32.mrf.mxu0
      %v5256 = vadd.f32 0.0, %v5255
      %v5257 = vpop.f32.mrf.mxu0
      %v5258 = vadd.f32 0.0, %v5257
      %v5259 = vpop.f32.mrf.mxu0
      %v5260 = vadd.f32 0.0, %v5259
      %5261 = vmatprep.mubr.bf16.mxu0 0
      %5262 = vmatmul.mubr.bf16.gmra.mxu0 %v5070
      %v5263 = vpop.f32.mrf.mxu0
      %v5264 = vadd.f32 0.0, %v5263
      %v5265 = vpop.f32.mrf.mxu0
      %v5266 = vadd.f32 0.0, %v5265
      %v5267 = vpop.f32.mrf.mxu0
      %v5268 = vadd.f32 0.0, %v5267
      %v5269 = vpop.f32.mrf.mxu0
      %v5270 = vadd.f32 0.0, %v5269
      %5271 = vdwg.mxu0
      %v5272 = vadd.f32 %v4965, %v5194
      %v5273 = vadd.f32 %v4966, %v5196
      %v5274 = vadd.f32 %v4967, %v5198
      %v5275 = vadd.f32 %v4968, %v5200
      %v5276 = vadd.f32 %v4969, %v5204
      %v5277 = vadd.f32 %v4970, %v5206
      %v5278 = vadd.f32 %v4971, %v5208
      %v5279 = vadd.f32 %v4972, %v5210
      %v5280 = vadd.f32 %v4973, %v5214
      %v5281 = vadd.f32 %v4974, %v5216
      %v5282 = vadd.f32 %v4975, %v5218
      %v5283 = vadd.f32 %v4976, %v5220
      %v5284 = vadd.f32 %v4977, %v5224
      %v5285 = vadd.f32 %v4978, %v5226
      %v5286 = vadd.f32 %v4979, %v5228
      %v5287 = vadd.f32 %v4980, %v5230
      %v5288 = vadd.f32 %v4981, %v5234
      %v5289 = vadd.f32 %v4982, %v5236
      %v5290 = vadd.f32 %v4983, %v5238
      %v5291 = vadd.f32 %v4984, %v5240
      %v5292 = vadd.f32 %v4985, %v5244
      %v5293 = vadd.f32 %v4986, %v5246
      %v5294 = vadd.f32 %v4987, %v5248
      %v5295 = vadd.f32 %v4988, %v5250
      %v5296 = vadd.f32 %v4989, %v5254
      %v5297 = vadd.f32 %v4990, %v5256
      %v5298 = vadd.f32 %v4991, %v5258
      %v5299 = vadd.f32 %v4992, %v5260
      %v5300 = vadd.f32 %v4993, %v5264
      %v5301 = vadd.f32 %v4994, %v5266
      %v5302 = vadd.f32 %v4995, %v5268
      %v5303 = vadd.f32 %v4996, %v5270
      %v5304 = vld [vmem:[%s4997] sm:$0xf]
      %v5305 = vld [vmem:[%s4997 + $0x4] sm:$0xf]
      %v5306 = vld [vmem:[%s4997 + $0x8] sm:$0x1]
      %v5307 = vld [vmem:[%s4997 + $0xc] sm:$0xf]
      %v5308 = vld [vmem:[%s4997 + $0x10] sm:$0xf]
      %v5309 = vld [vmem:[%s4997 + $0x14] sm:$0x1]
      %v5310 = vld [vmem:[%s4997 + $0x18] sm:$0xf]
      %v5311 = vld [vmem:[%s4997 + $0x1c] sm:$0xf]
      %v5312 = vld [vmem:[%s4997 + $0x20] sm:$0x1]
      %v5313 = vld [vmem:[%s4997 + $0x24] sm:$0xf]
      %v5314 = vld [vmem:[%s4997 + $0x28] sm:$0xf]
      %v5315 = vld [vmem:[%s4997 + $0x2c] sm:$0x1]
      %v5316 = vld [vmem:[%s4997 + $0x30] sm:$0xf]
      %v5317 = vld [vmem:[%s4997 + $0x34] sm:$0xf]
      %v5318 = vld [vmem:[%s4997 + $0x38] sm:$0x1]
      %v5319 = vld [vmem:[%s4997 + $0x3c] sm:$0xf]
      %v5320 = vld [vmem:[%s4997 + $0x40] sm:$0xf]
      %v5321 = vld [vmem:[%s4997 + $0x44] sm:$0x1]
      %v5322 = vld [vmem:[%s4997 + $0x48] sm:$0xf]
      %v5323 = vld [vmem:[%s4997 + $0x4c] sm:$0xf]
      %v5324 = vld [vmem:[%s4997 + $0x50] sm:$0x1]
      %v5325 = vld [vmem:[%s4997 + $0x54] sm:$0xf]
      %v5326 = vld [vmem:[%s4997 + $0x58] sm:$0xf]
      %v5327 = vld [vmem:[%s4997 + $0x5c] sm:$0x1]
      %v5329 = vshrl.u32 %v5304, 16
      %v5331 = vrot.slane %v5329, 4
      %v5332 = vshll.u32 %v5304, 16
      %v5334 = vrot.slane %v5332, 5
      %v5335 = vor.u32 %v5331, %v5334
      %v5336 = vrot.slane %v5335, 4
      %v5338 = vshll.u32 %v5305, 16
      %v5340 = vrot.slane %v5338, 5
      %v5341 = vsel %vm442, %v5336, %v5340
      %v5342 = vshrl.u32 %v5305, 16
      %v5344 = vrot.slane %v5342, 4
      %v5345 = vor.u32 %v5344, %v5340
      %v5346 = vrot.slane %v5345, 4
      %v5348 = vshll.u32 %v5306, 16
      %v5350 = vrot.slane %v5348, 5
      %v5351 = vsel %vm442, %v5346, %v5350
      %v5353 = vshrl.u32 %v5307, 16
      %v5355 = vrot.slane %v5353, 4
      %v5356 = vshll.u32 %v5307, 16
      %v5358 = vrot.slane %v5356, 5
      %v5359 = vor.u32 %v5355, %v5358
      %v5360 = vrot.slane %v5359, 4
      %v5362 = vshll.u32 %v5308, 16
      %v5364 = vrot.slane %v5362, 5
      %v5365 = vsel %vm442, %v5360, %v5364
      %v5366 = vshrl.u32 %v5308, 16
      %v5368 = vrot.slane %v5366, 4
      %v5369 = vor.u32 %v5368, %v5364
      %v5370 = vrot.slane %v5369, 4
      %v5372 = vshll.u32 %v5309, 16
      %v5374 = vrot.slane %v5372, 5
      %v5375 = vsel %vm442, %v5370, %v5374
      %v5377 = vshrl.u32 %v5310, 16
      %v5379 = vrot.slane %v5377, 4
      %v5380 = vshll.u32 %v5310, 16
      %v5382 = vrot.slane %v5380, 5
      %v5383 = vor.u32 %v5379, %v5382
      %v5384 = vrot.slane %v5383, 4
      %v5386 = vshll.u32 %v5311, 16
      %v5388 = vrot.slane %v5386, 5
      %v5389 = vsel %vm442, %v5384, %v5388
      %v5390 = vshrl.u32 %v5311, 16
      %v5392 = vrot.slane %v5390, 4
      %v5393 = vor.u32 %v5392, %v5388
      %v5394 = vrot.slane %v5393, 4
      %v5396 = vshll.u32 %v5312, 16
      %v5398 = vrot.slane %v5396, 5
      %v5399 = vsel %vm442, %v5394, %v5398
      %v5401 = vshrl.u32 %v5313, 16
      %v5403 = vrot.slane %v5401, 4
      %v5404 = vshll.u32 %v5313, 16
      %v5406 = vrot.slane %v5404, 5
      %v5407 = vor.u32 %v5403, %v5406
      %v5408 = vrot.slane %v5407, 4
      %v5410 = vshll.u32 %v5314, 16
      %v5412 = vrot.slane %v5410, 5
      %v5413 = vsel %vm442, %v5408, %v5412
      %v5414 = vshrl.u32 %v5314, 16
      %v5416 = vrot.slane %v5414, 4
      %v5417 = vor.u32 %v5416, %v5412
      %v5418 = vrot.slane %v5417, 4
      %v5420 = vshll.u32 %v5315, 16
      %v5422 = vrot.slane %v5420, 5
      %v5423 = vsel %vm442, %v5418, %v5422
      %v5425 = vshrl.u32 %v5316, 16
      %v5427 = vrot.slane %v5425, 4
      %v5428 = vshll.u32 %v5316, 16
      %v5430 = vrot.slane %v5428, 5
      %v5431 = vor.u32 %v5427, %v5430
      %v5432 = vrot.slane %v5431, 4
      %v5434 = vshll.u32 %v5317, 16
      %v5436 = vrot.slane %v5434, 5
      %v5437 = vsel %vm442, %v5432, %v5436
      %v5438 = vshrl.u32 %v5317, 16
      %v5440 = vrot.slane %v5438, 4
      %v5441 = vor.u32 %v5440, %v5436
      %v5442 = vrot.slane %v5441, 4
      %v5444 = vshll.u32 %v5318, 16
      %v5446 = vrot.slane %v5444, 5
      %v5447 = vsel %vm442, %v5442, %v5446
      %v5449 = vshrl.u32 %v5319, 16
      %v5451 = vrot.slane %v5449, 4
      %v5452 = vshll.u32 %v5319, 16
      %v5454 = vrot.slane %v5452, 5
      %v5455 = vor.u32 %v5451, %v5454
      %v5456 = vrot.slane %v5455, 4
      %v5458 = vshll.u32 %v5320, 16
      %v5460 = vrot.slane %v5458, 5
      %v5461 = vsel %vm442, %v5456, %v5460
      %v5462 = vshrl.u32 %v5320, 16
      %v5464 = vrot.slane %v5462, 4
      %v5465 = vor.u32 %v5464, %v5460
      %v5466 = vrot.slane %v5465, 4
      %v5468 = vshll.u32 %v5321, 16
      %v5470 = vrot.slane %v5468, 5
      %v5471 = vsel %vm442, %v5466, %v5470
      %v5473 = vshrl.u32 %v5322, 16
      %v5475 = vrot.slane %v5473, 4
      %v5476 = vshll.u32 %v5322, 16
      %v5478 = vrot.slane %v5476, 5
      %v5479 = vor.u32 %v5475, %v5478
      %v5480 = vrot.slane %v5479, 4
      %v5482 = vshll.u32 %v5323, 16
      %v5484 = vrot.slane %v5482, 5
      %v5485 = vsel %vm442, %v5480, %v5484
      %v5486 = vshrl.u32 %v5323, 16
      %v5488 = vrot.slane %v5486, 4
      %v5489 = vor.u32 %v5488, %v5484
      %v5490 = vrot.slane %v5489, 4
      %v5492 = vshll.u32 %v5324, 16
      %v5494 = vrot.slane %v5492, 5
      %v5495 = vsel %vm442, %v5490, %v5494
      %v5497 = vshrl.u32 %v5325, 16
      %v5499 = vrot.slane %v5497, 4
      %v5500 = vshll.u32 %v5325, 16
      %v5502 = vrot.slane %v5500, 5
      %v5503 = vor.u32 %v5499, %v5502
      %v5504 = vrot.slane %v5503, 4
      %v5506 = vshll.u32 %v5326, 16
      %v5508 = vrot.slane %v5506, 5
      %v5509 = vsel %vm442, %v5504, %v5508
      %v5510 = vshrl.u32 %v5326, 16
      %v5512 = vrot.slane %v5510, 4
      %v5513 = vor.u32 %v5512, %v5508
      %v5514 = vrot.slane %v5513, 4
      %v5516 = vshll.u32 %v5327, 16
      %v5518 = vrot.slane %v5516, 5
      %v5519 = vsel %vm442, %v5514, %v5518
      %s5520 = scalar_lea.vmem %s6, 896
      %v5521 = vld [vmem:[%s5520] sm:$0xff]
      %v5522 = vld [vmem:[%s5520 + $0x8] sm:$0xff]
      %v5523 = vld [vmem:[%s5520 + $0x10] sm:$0xff]
      %v5524 = vld [vmem:[%s5520 + $0x18] sm:$0xff]
      %v5525 = vld [vmem:[%s5520 + $0x20] sm:$0xff]
      %v5526 = vld [vmem:[%s5520 + $0x28] sm:$0xff]
      %v5527 = vld [vmem:[%s5520 + $0x30] sm:$0xff]
      %v5528 = vld [vmem:[%s5520 + $0x38] sm:$0xff]
      %v5529 = vld [vmem:[%s5520 + $0x40] sm:$0xff]
      %v5530 = vld [vmem:[%s5520 + $0x48] sm:$0xff]
      %v5531 = vld [vmem:[%s5520 + $0x50] sm:$0xff]
      %v5532 = vld [vmem:[%s5520 + $0x58] sm:$0xff]
      %v5533 = vld [vmem:[%s5520 + $0x60] sm:$0xff]
      %v5534 = vld [vmem:[%s5520 + $0x68] sm:$0xff]
      %v5535 = vld [vmem:[%s5520 + $0x70] sm:$0xff]
      %v5536 = vld [vmem:[%s5520 + $0x78] sm:$0xff]
      %v5537 = vunpack.c.l.b16 %v5341
      %v5538 = vunpack.c.l.b16 %v5351
      %v5539 = vunpack.c.l.b16 %v5365
      %v5540 = vunpack.c.l.b16 %v5375
      %v5541 = vunpack.c.l.b16 %v5389
      %v5542 = vunpack.c.l.b16 %v5399
      %v5543 = vunpack.c.l.b16 %v5413
      %v5544 = vunpack.c.l.b16 %v5423
      %v5545 = vunpack.c.l.b16 %v5437
      %v5546 = vunpack.c.l.b16 %v5447
      %v5547 = vunpack.c.l.b16 %v5461
      %v5548 = vunpack.c.l.b16 %v5471
      %v5549 = vunpack.c.l.b16 %v5485
      %v5550 = vunpack.c.l.b16 %v5495
      %v5551 = vunpack.c.l.b16 %v5509
      %v5552 = vunpack.c.l.b16 %v5519
      %v5553 = vpack.c.b16 %v5538, %v5537
      %v5554 = vpack.c.b16 %v5540, %v5539
      %v5555 = vpack.c.b16 %v5542, %v5541
      %v5556 = vpack.c.b16 %v5544, %v5543
      %v5557 = vpack.c.b16 %v5546, %v5545
      %v5558 = vpack.c.b16 %v5548, %v5547
      %v5559 = vpack.c.b16 %v5550, %v5549
      %v5560 = vpack.c.b16 %v5552, %v5551
      %v5585 = vunpack.c.l.b16 %v5521
      %v5586 = vunpack.c.h.b16 %v5521
      %v5587 = vunpack.c.l.b16 %v5522
      %v5588 = vunpack.c.h.b16 %v5522
      %v5589 = vunpack.c.l.b16 %v5523
      %v5590 = vunpack.c.h.b16 %v5523
      %v5591 = vunpack.c.l.b16 %v5524
      %v5592 = vunpack.c.h.b16 %v5524
      %v5593 = vunpack.c.l.b16 %v5525
      %v5594 = vunpack.c.h.b16 %v5525
      %v5595 = vunpack.c.l.b16 %v5526
      %v5596 = vunpack.c.h.b16 %v5526
      %v5597 = vunpack.c.l.b16 %v5527
      %v5598 = vunpack.c.h.b16 %v5527
      %v5599 = vunpack.c.l.b16 %v5528
      %v5600 = vunpack.c.h.b16 %v5528
      %v5601 = vunpack.c.l.b16 %v5529
      %v5602 = vunpack.c.h.b16 %v5529
      %v5603 = vunpack.c.l.b16 %v5530
      %v5604 = vunpack.c.h.b16 %v5530
      %v5605 = vunpack.c.l.b16 %v5531
      %v5606 = vunpack.c.h.b16 %v5531
      %v5607 = vunpack.c.l.b16 %v5532
      %v5608 = vunpack.c.h.b16 %v5532
      %v5609 = vunpack.c.l.b16 %v5533
      %v5610 = vunpack.c.h.b16 %v5533
      %v5611 = vunpack.c.l.b16 %v5534
      %v5612 = vunpack.c.h.b16 %v5534
      %v5613 = vunpack.c.l.b16 %v5535
      %v5614 = vunpack.c.h.b16 %v5535
      %v5615 = vunpack.c.l.b16 %v5536
      %v5616 = vunpack.c.h.b16 %v5536
      %v5617 = vpack.c.b16 %v5587, %v5585
      %v5618 = vpack.c.b16 %v5588, %v5586
      %v5619 = vpack.c.b16 %v5591, %v5589
      %v5620 = vpack.c.b16 %v5592, %v5590
      %v5621 = vpack.c.b16 %v5595, %v5593
      %v5622 = vpack.c.b16 %v5596, %v5594
      %v5623 = vpack.c.b16 %v5599, %v5597
      %v5624 = vpack.c.b16 %v5600, %v5598
      %v5625 = vpack.c.b16 %v5603, %v5601
      %v5626 = vpack.c.b16 %v5604, %v5602
      %v5627 = vpack.c.b16 %v5607, %v5605
      %v5628 = vpack.c.b16 %v5608, %v5606
      %v5629 = vpack.c.b16 %v5611, %v5609
      %v5630 = vpack.c.b16 %v5612, %v5610
      %v5631 = vpack.c.b16 %v5615, %v5613
      %v5632 = vpack.c.b16 %v5616, %v5614
      %5649 = vmatprep.subr.bf16.mxu0 %v5632
      %5650 = vmatpush1.bf16.msra.mxu0 %v5631
      %5651 = vmatprep.subr.bf16.mxu0 %v5630
      %5652 = vmatpush1.bf16.msra.mxu0 %v5629
      %5653 = vmatprep.subr.bf16.mxu0 %v5628
      %5654 = vmatpush1.bf16.msra.mxu0 %v5627
      %5655 = vmatprep.subr.bf16.mxu0 %v5626
      %5656 = vmatpush1.bf16.msra.mxu0 %v5625
      %5657 = vmatprep.subr.bf16.mxu0 %v5624
      %5658 = vmatpush1.bf16.msra.mxu0 %v5623
      %5659 = vmatprep.subr.bf16.mxu0 %v5622
      %5660 = vmatpush1.bf16.msra.mxu0 %v5621
      %5661 = vmatprep.subr.bf16.mxu0 %v5620
      %5662 = vmatpush1.bf16.msra.mxu0 %v5619
      %5663 = vmatprep.subr.bf16.mxu0 %v5618
      %5664 = vmatpush1.bf16.msra.mxu0 %v5617
      %5665 = vmatprep.subr.bf16.mxu0 0
      %5666 = vmatpush2.bf16.msra.mxu0 0
      %5667 = vmatprep.subr.bf16.mxu0 0
      %5668 = vmatpush2.bf16.msra.mxu0 0
      %5669 = vmatprep.subr.bf16.mxu0 0
      %5670 = vmatpush2.bf16.msra.mxu0 0
      %5671 = vmatprep.subr.bf16.mxu0 0
      %5672 = vmatpush2.bf16.msra.mxu0 0
      %5673 = vmatprep.subr.bf16.mxu0 0
      %5674 = vmatpush2.bf16.msra.mxu0 0
      %5675 = vmatprep.subr.bf16.mxu0 0
      %5676 = vmatpush2.bf16.msra.mxu0 0
      %5677 = vmatprep.subr.bf16.mxu0 0
      %5678 = vmatpush2.bf16.msra.mxu0 0
      %5679 = vmatprep.subr.bf16.mxu0 0
      %5680 = vmatpush2.bf16.msra.mxu0 0
      %5681 = vmatprep.mubr.bf16.mxu0 0
      %5682 = vmatmul.mubr.bf16.gmra.mxu0 %v5553
      %v5683 = vpop.f32.mrf.mxu0
      %v5684 = vadd.f32 0.0, %v5683
      %v5685 = vpop.f32.mrf.mxu0
      %v5686 = vadd.f32 0.0, %v5685
      %v5687 = vpop.f32.mrf.mxu0
      %v5688 = vadd.f32 0.0, %v5687
      %v5689 = vpop.f32.mrf.mxu0
      %v5690 = vadd.f32 0.0, %v5689
      %5691 = vmatprep.mubr.bf16.mxu0 0
      %5692 = vmatmul.mubr.bf16.gmra.mxu0 %v5554
      %v5693 = vpop.f32.mrf.mxu0
      %v5694 = vadd.f32 0.0, %v5693
      %v5695 = vpop.f32.mrf.mxu0
      %v5696 = vadd.f32 0.0, %v5695
      %v5697 = vpop.f32.mrf.mxu0
      %v5698 = vadd.f32 0.0, %v5697
      %v5699 = vpop.f32.mrf.mxu0
      %v5700 = vadd.f32 0.0, %v5699
      %5701 = vmatprep.mubr.bf16.mxu0 0
      %5702 = vmatmul.mubr.bf16.gmra.mxu0 %v5555
      %v5703 = vpop.f32.mrf.mxu0
      %v5704 = vadd.f32 0.0, %v5703
      %v5705 = vpop.f32.mrf.mxu0
      %v5706 = vadd.f32 0.0, %v5705
      %v5707 = vpop.f32.mrf.mxu0
      %v5708 = vadd.f32 0.0, %v5707
      %v5709 = vpop.f32.mrf.mxu0
      %v5710 = vadd.f32 0.0, %v5709
      %5711 = vmatprep.mubr.bf16.mxu0 0
      %5712 = vmatmul.mubr.bf16.gmra.mxu0 %v5556
      %v5713 = vpop.f32.mrf.mxu0
      %v5714 = vadd.f32 0.0, %v5713
      %v5715 = vpop.f32.mrf.mxu0
      %v5716 = vadd.f32 0.0, %v5715
      %v5717 = vpop.f32.mrf.mxu0
      %v5718 = vadd.f32 0.0, %v5717
      %v5719 = vpop.f32.mrf.mxu0
      %v5720 = vadd.f32 0.0, %v5719
      %5721 = vmatprep.mubr.bf16.mxu0 0
      %5722 = vmatmul.mubr.bf16.gmra.mxu0 %v5557
      %v5723 = vpop.f32.mrf.mxu0
      %v5724 = vadd.f32 0.0, %v5723
      %v5725 = vpop.f32.mrf.mxu0
      %v5726 = vadd.f32 0.0, %v5725
      %v5727 = vpop.f32.mrf.mxu0
      %v5728 = vadd.f32 0.0, %v5727
      %v5729 = vpop.f32.mrf.mxu0
      %v5730 = vadd.f32 0.0, %v5729
      %5731 = vmatprep.mubr.bf16.mxu0 0
      %5732 = vmatmul.mubr.bf16.gmra.mxu0 %v5558
      %v5733 = vpop.f32.mrf.mxu0
      %v5734 = vadd.f32 0.0, %v5733
      %v5735 = vpop.f32.mrf.mxu0
      %v5736 = vadd.f32 0.0, %v5735
      %v5737 = vpop.f32.mrf.mxu0
      %v5738 = vadd.f32 0.0, %v5737
      %v5739 = vpop.f32.mrf.mxu0
      %v5740 = vadd.f32 0.0, %v5739
      %5741 = vmatprep.mubr.bf16.mxu0 0
      %5742 = vmatmul.mubr.bf16.gmra.mxu0 %v5559
      %v5743 = vpop.f32.mrf.mxu0
      %v5744 = vadd.f32 0.0, %v5743
      %v5745 = vpop.f32.mrf.mxu0
      %v5746 = vadd.f32 0.0, %v5745
      %v5747 = vpop.f32.mrf.mxu0
      %v5748 = vadd.f32 0.0, %v5747
      %v5749 = vpop.f32.mrf.mxu0
      %v5750 = vadd.f32 0.0, %v5749
      %5751 = vmatprep.mubr.bf16.mxu0 0
      %5752 = vmatmul.mubr.bf16.gmra.mxu0 %v5560
      %v5753 = vpop.f32.mrf.mxu0
      %v5754 = vadd.f32 0.0, %v5753
      %v5755 = vpop.f32.mrf.mxu0
      %v5756 = vadd.f32 0.0, %v5755
      %v5757 = vpop.f32.mrf.mxu0
      %v5758 = vadd.f32 0.0, %v5757
      %v5759 = vpop.f32.mrf.mxu0
      %v5760 = vadd.f32 0.0, %v5759
      %5761 = vdwg.mxu0
      %v5762 = vadd.f32 %v5272, %v5684
      %v5763 = vadd.f32 %v5273, %v5686
      %v5764 = vadd.f32 %v5274, %v5688
      %v5765 = vadd.f32 %v5275, %v5690
      %v5766 = vadd.f32 %v5276, %v5694
      %v5767 = vadd.f32 %v5277, %v5696
      %v5768 = vadd.f32 %v5278, %v5698
      %v5769 = vadd.f32 %v5279, %v5700
      %v5770 = vadd.f32 %v5280, %v5704
      %v5771 = vadd.f32 %v5281, %v5706
      %v5772 = vadd.f32 %v5282, %v5708
      %v5773 = vadd.f32 %v5283, %v5710
      %v5774 = vadd.f32 %v5284, %v5714
      %v5775 = vadd.f32 %v5285, %v5716
      %v5776 = vadd.f32 %v5286, %v5718
      %v5777 = vadd.f32 %v5287, %v5720
      %v5778 = vadd.f32 %v5288, %v5724
      %v5779 = vadd.f32 %v5289, %v5726
      %v5780 = vadd.f32 %v5290, %v5728
      %v5781 = vadd.f32 %v5291, %v5730
      %v5782 = vadd.f32 %v5292, %v5734
      %v5783 = vadd.f32 %v5293, %v5736
      %v5784 = vadd.f32 %v5294, %v5738
      %v5785 = vadd.f32 %v5295, %v5740
      %v5786 = vadd.f32 %v5296, %v5744
      %v5787 = vadd.f32 %v5297, %v5746
      %v5788 = vadd.f32 %v5298, %v5748
      %v5789 = vadd.f32 %v5299, %v5750
      %v5790 = vadd.f32 %v5300, %v5754
      %v5791 = vadd.f32 %v5301, %v5756
      %v5792 = vadd.f32 %v5302, %v5758
      %v5793 = vadd.f32 %v5303, %v5760
      %v5794 = vld [vmem:[%s4997] sm:$0xe]
      %v5795 = vld [vmem:[%s4997 + $0xc] sm:$0xe]
      %v5796 = vld [vmem:[%s4997 + $0x18] sm:$0xe]
      %v5797 = vld [vmem:[%s4997 + $0x24] sm:$0xe]
      %v5798 = vld [vmem:[%s4997 + $0x30] sm:$0xe]
      %v5799 = vld [vmem:[%s4997 + $0x3c] sm:$0xe]
      %v5800 = vld [vmem:[%s4997 + $0x48] sm:$0xe]
      %v5801 = vld [vmem:[%s4997 + $0x54] sm:$0xe]
      %v5826 = vrot.slane %v5794, 5
      %v5827 = vrot.slane %v5826, 4
      %v5828 = vrot.slane %v5305, 5
      %v5829 = vsel %vm1071, %v5827, %v5828
      %v5830 = vrot.slane %v5828, 4
      %v5831 = vrot.slane %v5306, 5
      %v5832 = vsel %vm1071, %v5830, %v5831
      %v5833 = vrot.slane %v5795, 5
      %v5834 = vrot.slane %v5833, 4
      %v5835 = vrot.slane %v5308, 5
      %v5836 = vsel %vm1071, %v5834, %v5835
      %v5837 = vrot.slane %v5835, 4
      %v5838 = vrot.slane %v5309, 5
      %v5839 = vsel %vm1071, %v5837, %v5838
      %v5840 = vrot.slane %v5796, 5
      %v5841 = vrot.slane %v5840, 4
      %v5842 = vrot.slane %v5311, 5
      %v5843 = vsel %vm1071, %v5841, %v5842
      %v5844 = vrot.slane %v5842, 4
      %v5845 = vrot.slane %v5312, 5
      %v5846 = vsel %vm1071, %v5844, %v5845
      %v5847 = vrot.slane %v5797, 5
      %v5848 = vrot.slane %v5847, 4
      %v5849 = vrot.slane %v5314, 5
      %v5850 = vsel %vm1071, %v5848, %v5849
      %v5851 = vrot.slane %v5849, 4
      %v5852 = vrot.slane %v5315, 5
      %v5853 = vsel %vm1071, %v5851, %v5852
      %v5854 = vrot.slane %v5798, 5
      %v5855 = vrot.slane %v5854, 4
      %v5856 = vrot.slane %v5317, 5
      %v5857 = vsel %vm1071, %v5855, %v5856
      %v5858 = vrot.slane %v5856, 4
      %v5859 = vrot.slane %v5318, 5
      %v5860 = vsel %vm1071, %v5858, %v5859
      %v5861 = vrot.slane %v5799, 5
      %v5862 = vrot.slane %v5861, 4
      %v5863 = vrot.slane %v5320, 5
      %v5864 = vsel %vm1071, %v5862, %v5863
      %v5865 = vrot.slane %v5863, 4
      %v5866 = vrot.slane %v5321, 5
      %v5867 = vsel %vm1071, %v5865, %v5866
      %v5868 = vrot.slane %v5800, 5
      %v5869 = vrot.slane %v5868, 4
      %v5870 = vrot.slane %v5323, 5
      %v5871 = vsel %vm1071, %v5869, %v5870
      %v5872 = vrot.slane %v5870, 4
      %v5873 = vrot.slane %v5324, 5
      %v5874 = vsel %vm1071, %v5872, %v5873
      %v5875 = vrot.slane %v5801, 5
      %v5876 = vrot.slane %v5875, 4
      %v5877 = vrot.slane %v5326, 5
      %v5878 = vsel %vm1071, %v5876, %v5877
      %v5879 = vrot.slane %v5877, 4
      %v5880 = vrot.slane %v5327, 5
      %v5881 = vsel %vm1071, %v5879, %v5880
      %s5882 = scalar_lea.vmem %s6, 1024
      %v5883 = vld [vmem:[%s5882] sm:$0xff]
      %v5884 = vld [vmem:[%s5882 + $0x8] sm:$0xff]
      %v5885 = vld [vmem:[%s5882 + $0x10] sm:$0xff]
      %v5886 = vld [vmem:[%s5882 + $0x18] sm:$0xff]
      %v5887 = vld [vmem:[%s5882 + $0x20] sm:$0xff]
      %v5888 = vld [vmem:[%s5882 + $0x28] sm:$0xff]
      %v5889 = vld [vmem:[%s5882 + $0x30] sm:$0xff]
      %v5890 = vld [vmem:[%s5882 + $0x38] sm:$0xff]
      %v5891 = vld [vmem:[%s5882 + $0x40] sm:$0xff]
      %v5892 = vld [vmem:[%s5882 + $0x48] sm:$0xff]
      %v5893 = vld [vmem:[%s5882 + $0x50] sm:$0xff]
      %v5894 = vld [vmem:[%s5882 + $0x58] sm:$0xff]
      %v5895 = vld [vmem:[%s5882 + $0x60] sm:$0xff]
      %v5896 = vld [vmem:[%s5882 + $0x68] sm:$0xff]
      %v5897 = vld [vmem:[%s5882 + $0x70] sm:$0xff]
      %v5898 = vld [vmem:[%s5882 + $0x78] sm:$0xff]
      %v5899 = vunpack.c.l.b16 %v5829
      %v5900 = vunpack.c.l.b16 %v5832
      %v5901 = vunpack.c.l.b16 %v5836
      %v5902 = vunpack.c.l.b16 %v5839
      %v5903 = vunpack.c.l.b16 %v5843
      %v5904 = vunpack.c.l.b16 %v5846
      %v5905 = vunpack.c.l.b16 %v5850
      %v5906 = vunpack.c.l.b16 %v5853
      %v5907 = vunpack.c.l.b16 %v5857
      %v5908 = vunpack.c.l.b16 %v5860
      %v5909 = vunpack.c.l.b16 %v5864
      %v5910 = vunpack.c.l.b16 %v5867
      %v5911 = vunpack.c.l.b16 %v5871
      %v5912 = vunpack.c.l.b16 %v5874
      %v5913 = vunpack.c.l.b16 %v5878
      %v5914 = vunpack.c.l.b16 %v5881
      %v5915 = vpack.c.b16 %v5900, %v5899
      %v5916 = vpack.c.b16 %v5902, %v5901
      %v5917 = vpack.c.b16 %v5904, %v5903
      %v5918 = vpack.c.b16 %v5906, %v5905
      %v5919 = vpack.c.b16 %v5908, %v5907
      %v5920 = vpack.c.b16 %v5910, %v5909
      %v5921 = vpack.c.b16 %v5912, %v5911
      %v5922 = vpack.c.b16 %v5914, %v5913
      %v5947 = vunpack.c.l.b16 %v5883
      %v5948 = vunpack.c.h.b16 %v5883
      %v5949 = vunpack.c.l.b16 %v5884
      %v5950 = vunpack.c.h.b16 %v5884
      %v5951 = vunpack.c.l.b16 %v5885
      %v5952 = vunpack.c.h.b16 %v5885
      %v5953 = vunpack.c.l.b16 %v5886
      %v5954 = vunpack.c.h.b16 %v5886
      %v5955 = vunpack.c.l.b16 %v5887
      %v5956 = vunpack.c.h.b16 %v5887
      %v5957 = vunpack.c.l.b16 %v5888
      %v5958 = vunpack.c.h.b16 %v5888
      %v5959 = vunpack.c.l.b16 %v5889
      %v5960 = vunpack.c.h.b16 %v5889
      %v5961 = vunpack.c.l.b16 %v5890
      %v5962 = vunpack.c.h.b16 %v5890
      %v5963 = vunpack.c.l.b16 %v5891
      %v5964 = vunpack.c.h.b16 %v5891
      %v5965 = vunpack.c.l.b16 %v5892
      %v5966 = vunpack.c.h.b16 %v5892
      %v5967 = vunpack.c.l.b16 %v5893
      %v5968 = vunpack.c.h.b16 %v5893
      %v5969 = vunpack.c.l.b16 %v5894
      %v5970 = vunpack.c.h.b16 %v5894
      %v5971 = vunpack.c.l.b16 %v5895
      %v5972 = vunpack.c.h.b16 %v5895
      %v5973 = vunpack.c.l.b16 %v5896
      %v5974 = vunpack.c.h.b16 %v5896
      %v5975 = vunpack.c.l.b16 %v5897
      %v5976 = vunpack.c.h.b16 %v5897
      %v5977 = vunpack.c.l.b16 %v5898
      %v5978 = vunpack.c.h.b16 %v5898
      %v5979 = vpack.c.b16 %v5949, %v5947
      %v5980 = vpack.c.b16 %v5950, %v5948
      %v5981 = vpack.c.b16 %v5953, %v5951
      %v5982 = vpack.c.b16 %v5954, %v5952
      %v5983 = vpack.c.b16 %v5957, %v5955
      %v5984 = vpack.c.b16 %v5958, %v5956
      %v5985 = vpack.c.b16 %v5961, %v5959
      %v5986 = vpack.c.b16 %v5962, %v5960
      %v5987 = vpack.c.b16 %v5965, %v5963
      %v5988 = vpack.c.b16 %v5966, %v5964
      %v5989 = vpack.c.b16 %v5969, %v5967
      %v5990 = vpack.c.b16 %v5970, %v5968
      %v5991 = vpack.c.b16 %v5973, %v5971
      %v5992 = vpack.c.b16 %v5974, %v5972
      %v5993 = vpack.c.b16 %v5977, %v5975
      %v5994 = vpack.c.b16 %v5978, %v5976
      %6011 = vmatprep.subr.bf16.mxu0 %v5994
      %6012 = vmatpush1.bf16.msra.mxu0 %v5993
      %6013 = vmatprep.subr.bf16.mxu0 %v5992
      %6014 = vmatpush1.bf16.msra.mxu0 %v5991
      %6015 = vmatprep.subr.bf16.mxu0 %v5990
      %6016 = vmatpush1.bf16.msra.mxu0 %v5989
      %6017 = vmatprep.subr.bf16.mxu0 %v5988
      %6018 = vmatpush1.bf16.msra.mxu0 %v5987
      %6019 = vmatprep.subr.bf16.mxu0 %v5986
      %6020 = vmatpush1.bf16.msra.mxu0 %v5985
      %6021 = vmatprep.subr.bf16.mxu0 %v5984
      %6022 = vmatpush1.bf16.msra.mxu0 %v5983
      %6023 = vmatprep.subr.bf16.mxu0 %v5982
      %6024 = vmatpush1.bf16.msra.mxu0 %v5981
      %6025 = vmatprep.subr.bf16.mxu0 %v5980
      %6026 = vmatpush1.bf16.msra.mxu0 %v5979
      %6027 = vmatprep.subr.bf16.mxu0 0
      %6028 = vmatpush2.bf16.msra.mxu0 0
      %6029 = vmatprep.subr.bf16.mxu0 0
      %6030 = vmatpush2.bf16.msra.mxu0 0
      %6031 = vmatprep.subr.bf16.mxu0 0
      %6032 = vmatpush2.bf16.msra.mxu0 0
      %6033 = vmatprep.subr.bf16.mxu0 0
      %6034 = vmatpush2.bf16.msra.mxu0 0
      %6035 = vmatprep.subr.bf16.mxu0 0
      %6036 = vmatpush2.bf16.msra.mxu0 0
      %6037 = vmatprep.subr.bf16.mxu0 0
      %6038 = vmatpush2.bf16.msra.mxu0 0
      %6039 = vmatprep.subr.bf16.mxu0 0
      %6040 = vmatpush2.bf16.msra.mxu0 0
      %6041 = vmatprep.subr.bf16.mxu0 0
      %6042 = vmatpush2.bf16.msra.mxu0 0
      %6043 = vmatprep.mubr.bf16.mxu0 0
      %6044 = vmatmul.mubr.bf16.gmra.mxu0 %v5915
      %v6045 = vpop.f32.mrf.mxu0
      %v6046 = vadd.f32 0.0, %v6045
      %v6047 = vpop.f32.mrf.mxu0
      %v6048 = vadd.f32 0.0, %v6047
      %v6049 = vpop.f32.mrf.mxu0
      %v6050 = vadd.f32 0.0, %v6049
      %v6051 = vpop.f32.mrf.mxu0
      %v6052 = vadd.f32 0.0, %v6051
      %6053 = vmatprep.mubr.bf16.mxu0 0
      %6054 = vmatmul.mubr.bf16.gmra.mxu0 %v5916
      %v6055 = vpop.f32.mrf.mxu0
      %v6056 = vadd.f32 0.0, %v6055
      %v6057 = vpop.f32.mrf.mxu0
      %v6058 = vadd.f32 0.0, %v6057
      %v6059 = vpop.f32.mrf.mxu0
      %v6060 = vadd.f32 0.0, %v6059
      %v6061 = vpop.f32.mrf.mxu0
      %v6062 = vadd.f32 0.0, %v6061
      %6063 = vmatprep.mubr.bf16.mxu0 0
      %6064 = vmatmul.mubr.bf16.gmra.mxu0 %v5917
      %v6065 = vpop.f32.mrf.mxu0
      %v6066 = vadd.f32 0.0, %v6065
      %v6067 = vpop.f32.mrf.mxu0
      %v6068 = vadd.f32 0.0, %v6067
      %v6069 = vpop.f32.mrf.mxu0
      %v6070 = vadd.f32 0.0, %v6069
      %v6071 = vpop.f32.mrf.mxu0
      %v6072 = vadd.f32 0.0, %v6071
      %6073 = vmatprep.mubr.bf16.mxu0 0
      %6074 = vmatmul.mubr.bf16.gmra.mxu0 %v5918
      %v6075 = vpop.f32.mrf.mxu0
      %v6076 = vadd.f32 0.0, %v6075
      %v6077 = vpop.f32.mrf.mxu0
      %v6078 = vadd.f32 0.0, %v6077
      %v6079 = vpop.f32.mrf.mxu0
      %v6080 = vadd.f32 0.0, %v6079
      %v6081 = vpop.f32.mrf.mxu0
      %v6082 = vadd.f32 0.0, %v6081
      %6083 = vmatprep.mubr.bf16.mxu0 0
      %6084 = vmatmul.mubr.bf16.gmra.mxu0 %v5919
      %v6085 = vpop.f32.mrf.mxu0
      %v6086 = vadd.f32 0.0, %v6085
      %v6087 = vpop.f32.mrf.mxu0
      %v6088 = vadd.f32 0.0, %v6087
      %v6089 = vpop.f32.mrf.mxu0
      %v6090 = vadd.f32 0.0, %v6089
      %v6091 = vpop.f32.mrf.mxu0
      %v6092 = vadd.f32 0.0, %v6091
      %6093 = vmatprep.mubr.bf16.mxu0 0
      %6094 = vmatmul.mubr.bf16.gmra.mxu0 %v5920
      %v6095 = vpop.f32.mrf.mxu0
      %v6096 = vadd.f32 0.0, %v6095
      %v6097 = vpop.f32.mrf.mxu0
      %v6098 = vadd.f32 0.0, %v6097
      %v6099 = vpop.f32.mrf.mxu0
      %v6100 = vadd.f32 0.0, %v6099
      %v6101 = vpop.f32.mrf.mxu0
      %v6102 = vadd.f32 0.0, %v6101
      %6103 = vmatprep.mubr.bf16.mxu0 0
      %6104 = vmatmul.mubr.bf16.gmra.mxu0 %v5921
      %v6105 = vpop.f32.mrf.mxu0
      %v6106 = vadd.f32 0.0, %v6105
      %v6107 = vpop.f32.mrf.mxu0
      %v6108 = vadd.f32 0.0, %v6107
      %v6109 = vpop.f32.mrf.mxu0
      %v6110 = vadd.f32 0.0, %v6109
      %v6111 = vpop.f32.mrf.mxu0
      %v6112 = vadd.f32 0.0, %v6111
      %6113 = vmatprep.mubr.bf16.mxu0 0
      %6114 = vmatmul.mubr.bf16.gmra.mxu0 %v5922
      %v6115 = vpop.f32.mrf.mxu0
      %v6116 = vadd.f32 0.0, %v6115
      %v6117 = vpop.f32.mrf.mxu0
      %v6118 = vadd.f32 0.0, %v6117
      %v6119 = vpop.f32.mrf.mxu0
      %v6120 = vadd.f32 0.0, %v6119
      %v6121 = vpop.f32.mrf.mxu0
      %v6122 = vadd.f32 0.0, %v6121
      %6123 = vdwg.mxu0
      %v6124 = vadd.f32 %v5762, %v6046
      %v6125 = vadd.f32 %v5763, %v6048
      %v6126 = vadd.f32 %v5764, %v6050
      %v6127 = vadd.f32 %v5765, %v6052
      %v6128 = vadd.f32 %v5766, %v6056
      %v6129 = vadd.f32 %v5767, %v6058
      %v6130 = vadd.f32 %v5768, %v6060
      %v6131 = vadd.f32 %v5769, %v6062
      %v6132 = vadd.f32 %v5770, %v6066
      %v6133 = vadd.f32 %v5771, %v6068
      %v6134 = vadd.f32 %v5772, %v6070
      %v6135 = vadd.f32 %v5773, %v6072
      %v6136 = vadd.f32 %v5774, %v6076
      %v6137 = vadd.f32 %v5775, %v6078
      %v6138 = vadd.f32 %v5776, %v6080
      %v6139 = vadd.f32 %v5777, %v6082
      %v6140 = vadd.f32 %v5778, %v6086
      %v6141 = vadd.f32 %v5779, %v6088
      %v6142 = vadd.f32 %v5780, %v6090
      %v6143 = vadd.f32 %v5781, %v6092
      %v6144 = vadd.f32 %v5782, %v6096
      %v6145 = vadd.f32 %v5783, %v6098
      %v6146 = vadd.f32 %v5784, %v6100
      %v6147 = vadd.f32 %v5785, %v6102
      %v6148 = vadd.f32 %v5786, %v6106
      %v6149 = vadd.f32 %v5787, %v6108
      %v6150 = vadd.f32 %v5788, %v6110
      %v6151 = vadd.f32 %v5789, %v6112
      %v6152 = vadd.f32 %v5790, %v6116
      %v6153 = vadd.f32 %v5791, %v6118
      %v6154 = vadd.f32 %v5792, %v6120
      %v6155 = vadd.f32 %v5793, %v6122
      %v6156 = vld [vmem:[%s7] sm:$0x3]
      %v6158 = vlaneseq
      %v6159 = vshrl.u32 %v6158, 7
      %v6160 = vsub.s32 0, %v6159
      %v6161 = vrot.slane %v6156, %v6160
      %v6162 = vlaneseq
      %v6163 = vshrl.u32 %v6162, 7
      %v6164 = vsub.s32 1, %v6163
      %v6165 = vrot.slane %v6156, %v6164
      %v6168 = vadd.f32 %v6124, %v6161
      %v6169 = vadd.f32 %v6125, %v6165
      %v6170 = vadd.f32 %v6126, %v6161
      %v6171 = vadd.f32 %v6127, %v6165
      %v6172 = vadd.f32 %v6128, %v6161
      %v6173 = vadd.f32 %v6129, %v6165
      %v6174 = vadd.f32 %v6130, %v6161
      %v6175 = vadd.f32 %v6131, %v6165
      %v6176 = vadd.f32 %v6132, %v6161
      %v6177 = vadd.f32 %v6133, %v6165
      %v6178 = vadd.f32 %v6134, %v6161
      %v6179 = vadd.f32 %v6135, %v6165
      %v6180 = vadd.f32 %v6136, %v6161
      %v6181 = vadd.f32 %v6137, %v6165
      %v6182 = vadd.f32 %v6138, %v6161
      %v6183 = vadd.f32 %v6139, %v6165
      %v6184 = vadd.f32 %v6140, %v6161
      %v6185 = vadd.f32 %v6141, %v6165
      %v6186 = vadd.f32 %v6142, %v6161
      %v6187 = vadd.f32 %v6143, %v6165
      %v6188 = vadd.f32 %v6144, %v6161
      %v6189 = vadd.f32 %v6145, %v6165
      %v6190 = vadd.f32 %v6146, %v6161
      %v6191 = vadd.f32 %v6147, %v6165
      %v6192 = vadd.f32 %v6148, %v6161
      %v6193 = vadd.f32 %v6149, %v6165
      %v6194 = vadd.f32 %v6150, %v6161
      %v6195 = vadd.f32 %v6151, %v6165
      %v6196 = vadd.f32 %v6152, %v6161
      %v6197 = vadd.f32 %v6153, %v6165
      %v6198 = vadd.f32 %v6154, %v6161
      %v6199 = vadd.f32 %v6155, %v6165
      %v6200 = vld [vmem:[%s379] sm:$0xff]
      %v6201 = vld [vmem:[%s379 + $0x8] sm:$0xff]
      %v6202 = vld [vmem:[%s379 + $0x10] sm:$0xff]
      %v6203 = vld [vmem:[%s379 + $0x18] sm:$0xff]
      %v6204 = vld [vmem:[%s379 + $0x20] sm:$0xff]
      %v6205 = vld [vmem:[%s379 + $0x28] sm:$0xff]
      %v6206 = vld [vmem:[%s379 + $0x30] sm:$0xff]
      %v6207 = vld [vmem:[%s379 + $0x38] sm:$0xff]
      %v6208 = vld [vmem:[%s379 + $0x40] sm:$0xff]
      %v6209 = vld [vmem:[%s379 + $0x48] sm:$0xff]
      %v6210 = vld [vmem:[%s379 + $0x50] sm:$0xff]
      %v6211 = vld [vmem:[%s379 + $0x58] sm:$0xff]
      %v6212 = vld [vmem:[%s379 + $0x60] sm:$0xff]
      %v6213 = vld [vmem:[%s379 + $0x68] sm:$0xff]
      %v6214 = vld [vmem:[%s379 + $0x70] sm:$0xff]
      %v6215 = vld [vmem:[%s379 + $0x78] sm:$0xff]
      %v6216 = vld [vmem:[%s383] sm:$0x1]
      %v6218 = vlaneseq
      %v6219 = vshrl.u32 %v6218, 7
      %v6220 = vsub.s32 0, %v6219
      %v6221 = vrot.slane %v6216, %v6220
      %v6223 = vsub.f32 %v6200, %v6221
      %v6224 = vsub.f32 %v6201, %v6221
      %v6225 = vsub.f32 %v6202, %v6221
      %v6226 = vsub.f32 %v6203, %v6221
      %v6227 = vsub.f32 %v6204, %v6221
      %v6228 = vsub.f32 %v6205, %v6221
      %v6229 = vsub.f32 %v6206, %v6221
      %v6230 = vsub.f32 %v6207, %v6221
      %v6231 = vsub.f32 %v6208, %v6221
      %v6232 = vsub.f32 %v6209, %v6221
      %v6233 = vsub.f32 %v6210, %v6221
      %v6234 = vsub.f32 %v6211, %v6221
      %v6235 = vsub.f32 %v6212, %v6221
      %v6236 = vsub.f32 %v6213, %v6221
      %v6237 = vsub.f32 %v6214, %v6221
      %v6238 = vsub.f32 %v6215, %v6221
      %v6239 = vld [vmem:[%s386] sm:$0x1]
      %v6241 = vlaneseq
      %v6242 = vshrl.u32 %v6241, 7
      %v6243 = vsub.s32 0, %v6242
      %v6244 = vrot.slane %v6239, %v6243
      %v6246 = vmul.f32 %v6223, %v6244
      %v6247 = vmul.f32 %v6224, %v6244
      %v6248 = vmul.f32 %v6225, %v6244
      %v6249 = vmul.f32 %v6226, %v6244
      %v6250 = vmul.f32 %v6227, %v6244
      %v6251 = vmul.f32 %v6228, %v6244
      %v6252 = vmul.f32 %v6229, %v6244
      %v6253 = vmul.f32 %v6230, %v6244
      %v6254 = vmul.f32 %v6231, %v6244
      %v6255 = vmul.f32 %v6232, %v6244
      %v6256 = vmul.f32 %v6233, %v6244
      %v6257 = vmul.f32 %v6234, %v6244
      %v6258 = vmul.f32 %v6235, %v6244
      %v6259 = vmul.f32 %v6236, %v6244
      %v6260 = vmul.f32 %v6237, %v6244
      %v6261 = vmul.f32 %v6238, %v6244
      %v6262 = vmul.f32 %v6246, %v6168
      %v6263 = vmul.f32 %v6247, %v6170
      %v6264 = vmul.f32 %v6248, %v6172
      %v6265 = vmul.f32 %v6249, %v6174
      %v6266 = vmul.f32 %v6250, %v6176
      %v6267 = vmul.f32 %v6251, %v6178
      %v6268 = vmul.f32 %v6252, %v6180
      %v6269 = vmul.f32 %v6253, %v6182
      %v6270 = vmul.f32 %v6254, %v6184
      %v6271 = vmul.f32 %v6255, %v6186
      %v6272 = vmul.f32 %v6256, %v6188
      %v6273 = vmul.f32 %v6257, %v6190
      %v6274 = vmul.f32 %v6258, %v6192
      %v6275 = vmul.f32 %v6259, %v6194
      %v6276 = vmul.f32 %v6260, %v6196
      %v6277 = vmul.f32 %v6261, %v6198
      %v6278 = vadd.f32 %v6262, %v6169
      %v6279 = vadd.f32 %v6263, %v6171
      %v6280 = vadd.f32 %v6264, %v6173
      %v6281 = vadd.f32 %v6265, %v6175
      %v6282 = vadd.f32 %v6266, %v6177
      %v6283 = vadd.f32 %v6267, %v6179
      %v6284 = vadd.f32 %v6268, %v6181
      %v6285 = vadd.f32 %v6269, %v6183
      %v6286 = vadd.f32 %v6270, %v6185
      %v6287 = vadd.f32 %v6271, %v6187
      %v6288 = vadd.f32 %v6272, %v6189
      %v6289 = vadd.f32 %v6273, %v6191
      %v6290 = vadd.f32 %v6274, %v6193
      %v6291 = vadd.f32 %v6275, %v6195
      %v6292 = vadd.f32 %v6276, %v6197
      %v6293 = vadd.f32 %v6277, %v6199
      %6294 = vst [vmem:[%s396] sm:$0xff] %v6278
      %6295 = vst [vmem:[%s396 + $0x8] sm:$0xff] %v6279
      %6296 = vst [vmem:[%s396 + $0x10] sm:$0xff] %v6280
      %6297 = vst [vmem:[%s396 + $0x18] sm:$0xff] %v6281
      %6298 = vst [vmem:[%s396 + $0x20] sm:$0xff] %v6282
      %6299 = vst [vmem:[%s396 + $0x28] sm:$0xff] %v6283
      %6300 = vst [vmem:[%s396 + $0x30] sm:$0xff] %v6284
      %6301 = vst [vmem:[%s396 + $0x38] sm:$0xff] %v6285
      %6302 = vst [vmem:[%s396 + $0x40] sm:$0xff] %v6286
      %6303 = vst [vmem:[%s396 + $0x48] sm:$0xff] %v6287
      %6304 = vst [vmem:[%s396 + $0x50] sm:$0xff] %v6288
      %6305 = vst [vmem:[%s396 + $0x58] sm:$0xff] %v6289
      %6306 = vst [vmem:[%s396 + $0x60] sm:$0xff] %v6290
      %6307 = vst [vmem:[%s396 + $0x68] sm:$0xff] %v6291
      %6308 = vst [vmem:[%s396 + $0x70] sm:$0xff] %v6292
      %6309 = vst [vmem:[%s396 + $0x78] sm:$0xff] %v6293
      %s6310 = smul.u32 8, %s24
      %p6311 = scmp.lt.s32.totalorder %s23, 1
      %s6312 = scalar_select %p6311, %s23, 1
      %p6313 = scmp.lt.s32.totalorder %s6310, 15
      %s6314 = scalar_select %p6313, %s6310, 15
      %s6315 = smul.addr %s6314, 2
      %s6316 = smul.addr %s6312, 32
      %s6317 = sadd.s32 %s6315, %s6316
      %s6318 = smul.addr %s6317, 8
      %s6319 = scalar_lea.vmem %s8, %s6318
      // Predicated region
      $region53: #{spade_pallas.1} parent=51 // pred_check
        %p6320 = pneg %p241
      $region54: #{spade_pallas.1} parent=51 // pred_check_branch
        %6322 = sbr.rel (%p6320) target = $region56
      $region55: #{spade_pallas.1} parent=51 // pred_region
        %s6323 = smul.u32 8, %s24
      $region56: #{spade_pallas.1} parent=51 // pred_fallthru
        _
    $region52: #{spade_pallas.1} parent=5 // pred_fallthru
      _
    %p6324 = scmp.le.s32.totalorder 2, %s14
    // Predicated region
    $region57: #{spade_pallas.1} parent=5 // pred_check
      %p6325 = pneg %p6324
    $region58: #{spade_pallas.1} parent=5 // pred_check_branch
      %6327 = sbr.rel (%p6325) target = $region60
    $region59: #{spade_pallas.1} parent=5 // pred_region
      %s6328 = ssub.s32 %s14, 2
      // Predicated region
      $region61: #{spade_pallas.1} parent=59 // pred_check
        %p6329 = pneg %p247
      $region62: #{spade_pallas.1} parent=59 // pred_check_branch
        %6331 = sbr.rel (%p6329) target = $region64
      $region63: #{spade_pallas.1} parent=59 // pred_region
        %s6332 = smul.u32 8, %s26
        %p6333 = scmp.lt.s32.totalorder %s25, 1
        %s6334 = scalar_select %p6333, %s25, 1
        %p6335 = scmp.lt.s32.totalorder %s6332, 15
        %s6336 = scalar_select %p6335, %s6332, 15
        %s6337 = smul.addr %s6336, 2
        %s6338 = smul.addr %s6334, 32
        %s6339 = sadd.s32 %s6337, %s6338
        %s6340 = smul.addr %s6339, 8
        %s6341 = scalar_lea.vmem %s8, %s6340
      $region64: #{spade_pallas.1} parent=59 // pred_fallthru
        _
    $region60: #{spade_pallas.1} parent=5 // pred_fallthru
      _
  $region6: #{spade_pallas.1} parent=0 // loop_footer
    %s18 = sadd.s32 1, %s14
  $region7: #{spade_pallas.1} parent=0 // loop_footer_branch
    %13 = sbr.rel target = $region3
  $region8: #{spade_pallas.1} parent=0 // loop_exit
    _

</llo_original>
